<compile_context>
chip_gen: v7x
topology: tpu7x:2x2x1
jax: 0.10.0
libtpu: 0.0.40
codegen_flags: <defaults>
</compile_context>

<pallas_src>
import functools

import jax
import jax.numpy as jnp
from jax.experimental import pallas as pl
from jax.experimental.pallas import tpu as pltpu

# braindecode ShallowFBCSPNet defaults
N_FILTERS_TIME = 40
FILTER_TIME_LENGTH = 25
N_FILTERS_SPAT = 40
POOL_TIME_LENGTH = 75
POOL_TIME_STRIDE = 15
BN_EPS = 1e-5
SAFE_LOG_EPS = 1e-6
F_PAD = 128          # lane-pad the 40 spatial filters to a full 128-lane vreg width


def _shallow_fbcsp_kernel(x_ref, w_ref, b_ref, wc_ref, bc_ref,
                          feat_ref, pred_ref, *, T1, P):
    # x_ref:    (T, C)            bf16  one sample (batch squeezed by BlockSpec)
    # w_ref:    (25, C, F_PAD)    bf16  fused conv_time*conv_spat*BN weight
    # b_ref:    (1, F_PAD)        f32   fused bias (conv_time bias + BN folded)
    # wc_ref:   (P*F_PAD, K)      f32   classifier weight (zero rows for lane padding)
    # bc_ref:   (1, K)            f32
    # feat_ref: (P, F_PAD)        f32   'drop'-layer features (lane padded)
    # pred_ref: (1, K)            f32   log-softmax output
    x = x_ref[...]                                    # (T, C) bf16
    w = w_ref[...]                                    # (25, C, F_PAD) bf16

    # ---- fused conv_time + conv_spat + eval-BN: 25 accumulated MXU matmuls ----
    s = jnp.zeros((T1, F_PAD), jnp.float32)
    for k in range(FILTER_TIME_LENGTH):               # static 25-tap unroll
        s = s + jnp.dot(x[k:k + T1, :], w[k],
                        preferred_element_type=jnp.float32)
    s = s + b_ref[...]                                # (T1, F_PAD)

    # ---- square nonlinearity ----
    s = s * s

    # ---- AvgPool2d((75,1),(15,1)) via chunk-sums (75 = 5 * 15) ----
    n_chunks = P + 4
    cs = jnp.sum(
        s[:n_chunks * POOL_TIME_STRIDE, :].reshape(n_chunks, POOL_TIME_STRIDE, F_PAD),
        axis=1)                                       # (n_chunks, F_PAD)
    win = cs[0:P, :]
    for j in range(1, 5):
        win = win + cs[j:j + P, :]
    feat = win * (1.0 / POOL_TIME_LENGTH)

    # ---- safe_log; Dropout is identity in eval -> 'drop'-layer features ----
    feat = jnp.log(jnp.maximum(feat, SAFE_LOG_EPS))
    feat_ref[...] = feat

    # ---- conv_classifier (full-extent conv == dense) + LogSoftmax ----
    logits = jnp.dot(feat.reshape(1, P * F_PAD), wc_ref[...],
                     preferred_element_type=jnp.float32) + bc_ref[...]
    m = jnp.max(logits, axis=1, keepdims=True)
    z = logits - m
    lse = jnp.log(jnp.sum(jnp.exp(z), axis=1, keepdims=True))
    pred_ref[...] = z - lse


def shallow_fbcsp_forward(x, params):
    """x: (B, n_chans, n_times) f32. Returns (features NCHW (B,40,P,1), log-probs (B,K))."""
    B, C, T = x.shape
    T1 = T - FILTER_TIME_LENGTH + 1
    P = (T1 - POOL_TIME_LENGTH) // POOL_TIME_STRIDE + 1
    F, Fs = N_FILTERS_TIME, N_FILTERS_SPAT
    K = params["b_cls"].shape[0]

    # ---- host-side fusion: conv_time * conv_spat, then fold eval BatchNorm ----
    wt = params["w_time"].astype(jnp.float32)                 # (F, 25)
    bt = params["b_time"].astype(jnp.float32)                 # (F,)
    ws = params["w_spat"][:, :, 0, :].astype(jnp.float32)     # (Fs, F, C)
    wcomb = jnp.einsum('fk,gfc->kcg', wt, ws)                 # (25, C, Fs)
    bcomb = jnp.einsum('f,gfc->g', bt, ws)                    # (Fs,)
    scale = params["bn_gamma"] * jax.lax.rsqrt(params["bn_var"] + BN_EPS)
    wcomb = wcomb * scale[None, None, :]
    bfused = (bcomb - params["bn_mean"]) * scale + params["bn_beta"]

    # lane-pad Fs=40 -> 128 (zero columns; sliced away in the wrapper)
    wcomb_p = jnp.zeros((FILTER_TIME_LENGTH, C, F_PAD), jnp.float32).at[:, :, :Fs].set(wcomb)
    bfused_p = jnp.zeros((1, F_PAD), jnp.float32).at[0, :Fs].set(bfused)

    # classifier weight (K, Fs, P, 1) -> flat [(p*F_PAD + f), k], zero rows for padding
    wc = jnp.transpose(params["w_cls"][:, :, :, 0], (2, 1, 0)).astype(jnp.float32)  # (P, Fs, K)
    wc_p = (jnp.zeros((P, F_PAD, K), jnp.float32).at[:, :Fs, :].set(wc)
            .reshape(P * F_PAD, K))
    bc = params["b_cls"].reshape(1, K).astype(jnp.float32)

    # x (B, C, T) -> (B, T, C), bf16 for the MXU contraction (f32 accumulation in-kernel)
    x_btc = jnp.transpose(x, (0, 2, 1)).astype(jnp.bfloat16)
    wcomb_bf = wcomb_p.astype(jnp.bfloat16)

    kernel = functools.partial(_shallow_fbcsp_kernel, T1=T1, P=P)

    feat, pred = pl.pallas_call(
        kernel,
        grid=(B,),
        in_specs=[
            pl.BlockSpec((None, T, C), lambda b: (b, 0, 0)),                    # x, per sample
            pl.BlockSpec((FILTER_TIME_LENGTH, C, F_PAD), lambda b: (0, 0, 0)),  # fused weight
            pl.BlockSpec((1, F_PAD), lambda b: (0, 0)),                         # fused bias
            pl.BlockSpec((P * F_PAD, K), lambda b: (0, 0)),                     # classifier W
            pl.BlockSpec((1, K), lambda b: (0, 0)),                             # classifier b
        ],
        out_specs=(
            pl.BlockSpec((None, P, F_PAD), lambda b: (b, 0, 0)),                # features
            pl.BlockSpec((None, 1, K), lambda b: (b, 0, 0)),                    # log-probs
        ),
        out_shape=(jax.ShapeDtypeStruct((B, P, F_PAD), jnp.float32),
                   jax.ShapeDtypeStruct((B, 1, K), jnp.float32)),
        compiler_params=pltpu.CompilerParams(
            dimension_semantics=("parallel",),          # megacore split on v7x
            vmem_limit_bytes=48 * 1024 * 1024),
    )(x_btc, wcomb_bf, bfused_p, wc_p, bc)

    # features back to PyTorch NCHW convention: (B, 40, P, 1)
    features_nchw = jnp.transpose(feat[:, :, :Fs], (0, 2, 1))[..., None]
    prediction = pred[:, 0, :]
    return features_nchw, prediction


# ---------------- pure-JAX f32 reference (mirrors the PyTorch module) ----------------
def reference_forward(x, params):
    B, C, T = x.shape
    T1 = T - FILTER_TIME_LENGTH + 1
    P = (T1 - POOL_TIME_LENGTH) // POOL_TIME_STRIDE + 1
    F, Fs = N_FILTERS_TIME, N_FILTERS_SPAT
    xt = jnp.transpose(x, (0, 2, 1))                                   # (B, T, C)
    ct = jnp.zeros((B, F, T1, C), jnp.float32)
    for k in range(FILTER_TIME_LENGTH):
        ct = ct + xt[:, None, k:k + T1, :] * params["w_time"][:, k][None, :, None, None]
    ct = ct + params["b_time"][None, :, None, None]
    cs = jnp.einsum('bftc,gfc->bgt', ct, params["w_spat"][:, :, 0, :])
    scale = params["bn_gamma"] * jax.lax.rsqrt(params["bn_var"] + BN_EPS)
    cs = (cs - params["bn_mean"][None, :, None]) * scale[None, :, None] \
        + params["bn_beta"][None, :, None]
    sq = cs * cs
    pooled = jnp.stack(
        [jnp.mean(sq[:, :, p * POOL_TIME_STRIDE:p * POOL_TIME_STRIDE + POOL_TIME_LENGTH], axis=2)
         for p in range(P)], axis=2)                                    # (B, Fs, P)
    feat = jnp.log(jnp.maximum(pooled, SAFE_LOG_EPS))
    logits = jnp.einsum('bfp,kfp->bk', feat, params["w_cls"][:, :, :, 0]) + params["b_cls"][None, :]
    return feat[..., None], jax.nn.log_softmax(logits, axis=1)


def init_params(key, n_chans, n_times, n_classes):
    T1 = n_times - FILTER_TIME_LENGTH + 1
    P = (T1 - POOL_TIME_LENGTH) // POOL_TIME_STRIDE + 1
    ks = jax.random.split(key, 8)
    return {
        "w_time": 0.1 * jax.random.normal(ks[0], (N_FILTERS_TIME, FILTER_TIME_LENGTH), jnp.float32),
        "b_time": 0.05 * jax.random.normal(ks[1], (N_FILTERS_TIME,), jnp.float32),
        "w_spat": 0.1 * jax.random.normal(ks[2], (N_FILTERS_SPAT, N_FILTERS_TIME, 1, n_chans), jnp.float32),
        "bn_gamma": 1.0 + 0.1 * jax.random.normal(ks[3], (N_FILTERS_SPAT,), jnp.float32),
        "bn_beta": 0.1 * jax.random.normal(ks[4], (N_FILTERS_SPAT,), jnp.float32),
        "bn_mean": 0.01 * jax.random.normal(ks[5], (N_FILTERS_SPAT,), jnp.float32),
        "bn_var": 1.0 + 0.1 * jax.random.uniform(ks[6], (N_FILTERS_SPAT,), jnp.float32),
        "w_cls": 0.1 * jax.random.normal(ks[7], (n_classes, N_FILTERS_SPAT, P, 1), jnp.float32),
        "b_cls": jnp.zeros((n_classes,), jnp.float32),
    }


if __name__ == "__main__":
    # n_times must allow the 25-tap conv followed by 75/15 pooling
    B, C, T, K = 2, 4, 129, 3          # -> T1 = 105, P = 3 (final_conv_length('auto') = 3)
    key = jax.random.PRNGKey(0)
    k_x, k_p = jax.random.split(key)
    x = jax.random.normal(k_x, (B, C, T), jnp.float32)
    params = init_params(k_p, C, T, K)

    features, prediction = jax.jit(shallow_fbcsp_forward)(x, params)
    jax.block_until_ready((features, prediction))

    ref_feat, ref_pred = reference_forward(x, params)

    P = (T - FILTER_TIME_LENGTH + 1 - POOL_TIME_LENGTH) // POOL_TIME_STRIDE + 1
    assert features.shape == (B, N_FILTERS_SPAT, P, 1)
    assert prediction.shape == (B, K)
    # log-softmax: rows must sum to 1 in prob space
    assert jnp.allclose(jnp.sum(jnp.exp(prediction), axis=1), 1.0, atol=1e-4)
    # match the pure-JAX reference (loose tolerance: bf16 inputs on the MXU path)
    assert jnp.allclose(features, ref_feat, atol=1e-1)
    assert jnp.allclose(prediction, ref_pred, atol=1e-1)
    print("KERNEL_OK")
</pallas_src>

<mosaic_0001>
module attributes {stable_mosaic.version = 11 : i64} {
  func.func @_shallow_fbcsp_kernel(%arg0: i32, %arg1: memref<1x129x4xbf16, #tpu.memory_space<vmem>>, %arg2: memref<25x4x128xbf16, #tpu.memory_space<vmem>>, %arg3: memref<1x128xf32, #tpu.memory_space<vmem>>, %arg4: memref<384x3xf32, #tpu.memory_space<vmem>>, %arg5: memref<1x3xf32, #tpu.memory_space<vmem>>, %arg6: memref<1x3x128xf32, #tpu.memory_space<vmem>>, %arg7: memref<1x1x3xf32, #tpu.memory_space<vmem>>) attributes {dimension_semantics = [#tpu.dimension_semantics<parallel>], iteration_bounds = array<i64: 2>, scalar_prefetch = 0 : i64, scratch_operands = 0 : i64, tpu.core_type = #tpu.core_type<tc>, window_params = [{transform_indices = @transform_0, window_bounds = array<i64: 1, 129, 4>}, {pipeline_mode = #tpu.pipeline_mode<synchronous>, transform_indices = @transform_1, window_bounds = array<i64: 25, 4, 128>}, {pipeline_mode = #tpu.pipeline_mode<synchronous>, transform_indices = @transform_2, window_bounds = array<i64: 1, 128>}, {pipeline_mode = #tpu.pipeline_mode<synchronous>, transform_indices = @transform_3, window_bounds = array<i64: 384, 3>}, {pipeline_mode = #tpu.pipeline_mode<synchronous>, transform_indices = @transform_4, window_bounds = array<i64: 1, 3>}, {transform_indices = @transform_5, window_bounds = array<i64: 1, 3, 128>}, {transform_indices = @transform_6, window_bounds = array<i64: 1, 1, 3>}]} {
    %c0 = arith.constant 0 : index
    %c0_0 = arith.constant 0 : index
    %c0_1 = arith.constant 0 : index
    %0 = vector.load %arg1[%c0, %c0_0, %c0_1] : memref<1x129x4xbf16, #tpu.memory_space<vmem>>, vector<1x129x4xbf16>
    %1 = vector.shape_cast %0 : vector<1x129x4xbf16> to vector<129x4xbf16>
    %c0_2 = arith.constant 0 : index
    %c0_3 = arith.constant 0 : index
    %c0_4 = arith.constant 0 : index
    %2 = vector.load %arg2[%c0_2, %c0_3, %c0_4] : memref<25x4x128xbf16, #tpu.memory_space<vmem>>, vector<25x4x128xbf16>
    %cst = arith.constant 0.000000e+00 : f32
    %3 = vector.broadcast %cst : f32 to vector<105x128xf32>
    %4 = vector.extract_strided_slice %1 {offsets = [0, 0], sizes = [105, 4], strides = [1, 1]} : vector<129x4xbf16> to vector<105x4xbf16>
    %5 = vector.extract_strided_slice %2 {offsets = [0, 0, 0], sizes = [1, 4, 128], strides = [1, 1, 1]} : vector<25x4x128xbf16> to vector<1x4x128xbf16>
    %6 = vector.shape_cast %5 : vector<1x4x128xbf16> to vector<4x128xbf16>
    %cst_5 = arith.constant dense<0.000000e+00> : vector<105x128xf32>
    %7 = tpu.matmul %4, %6, %cst_5 {dimension_numbers = #tpu.dot_dimension_numbers<[1], [0], [0], [1], [0, 0, 1, 1], [], []>} : vector<105x4xbf16>, vector<4x128xbf16>, vector<105x128xf32> -> vector<105x128xf32>
    %8 = arith.addf %3, %7 : vector<105x128xf32>
    %9 = vector.extract_strided_slice %1 {offsets = [1, 0], sizes = [105, 4], strides = [1, 1]} : vector<129x4xbf16> to vector<105x4xbf16>
    %10 = vector.extract_strided_slice %2 {offsets = [1, 0, 0], sizes = [1, 4, 128], strides = [1, 1, 1]} : vector<25x4x128xbf16> to vector<1x4x128xbf16>
    %11 = vector.shape_cast %10 : vector<1x4x128xbf16> to vector<4x128xbf16>
    %cst_6 = arith.constant dense<0.000000e+00> : vector<105x128xf32>
    %12 = tpu.matmul %9, %11, %cst_6 {dimension_numbers = #tpu.dot_dimension_numbers<[1], [0], [0], [1], [0, 0, 1, 1], [], []>} : vector<105x4xbf16>, vector<4x128xbf16>, vector<105x128xf32> -> vector<105x128xf32>
    %13 = arith.addf %8, %12 : vector<105x128xf32>
    %14 = vector.extract_strided_slice %1 {offsets = [2, 0], sizes = [105, 4], strides = [1, 1]} : vector<129x4xbf16> to vector<105x4xbf16>
    %15 = vector.extract_strided_slice %2 {offsets = [2, 0, 0], sizes = [1, 4, 128], strides = [1, 1, 1]} : vector<25x4x128xbf16> to vector<1x4x128xbf16>
    %16 = vector.shape_cast %15 : vector<1x4x128xbf16> to vector<4x128xbf16>
    %cst_7 = arith.constant dense<0.000000e+00> : vector<105x128xf32>
    %17 = tpu.matmul %14, %16, %cst_7 {dimension_numbers = #tpu.dot_dimension_numbers<[1], [0], [0], [1], [0, 0, 1, 1], [], []>} : vector<105x4xbf16>, vector<4x128xbf16>, vector<105x128xf32> -> vector<105x128xf32>
    %18 = arith.addf %13, %17 : vector<105x128xf32>
    %19 = vector.extract_strided_slice %1 {offsets = [3, 0], sizes = [105, 4], strides = [1, 1]} : vector<129x4xbf16> to vector<105x4xbf16>
    %20 = vector.extract_strided_slice %2 {offsets = [3, 0, 0], sizes = [1, 4, 128], strides = [1, 1, 1]} : vector<25x4x128xbf16> to vector<1x4x128xbf16>
    %21 = vector.shape_cast %20 : vector<1x4x128xbf16> to vector<4x128xbf16>
    %cst_8 = arith.constant dense<0.000000e+00> : vector<105x128xf32>
    %22 = tpu.matmul %19, %21, %cst_8 {dimension_numbers = #tpu.dot_dimension_numbers<[1], [0], [0], [1], [0, 0, 1, 1], [], []>} : vector<105x4xbf16>, vector<4x128xbf16>, vector<105x128xf32> -> vector<105x128xf32>
    %23 = arith.addf %18, %22 : vector<105x128xf32>
    %24 = vector.extract_strided_slice %1 {offsets = [4, 0], sizes = [105, 4], strides = [1, 1]} : vector<129x4xbf16> to vector<105x4xbf16>
    %25 = vector.extract_strided_slice %2 {offsets = [4, 0, 0], sizes = [1, 4, 128], strides = [1, 1, 1]} : vector<25x4x128xbf16> to vector<1x4x128xbf16>
    %26 = vector.shape_cast %25 : vector<1x4x128xbf16> to vector<4x128xbf16>
    %cst_9 = arith.constant dense<0.000000e+00> : vector<105x128xf32>
    %27 = tpu.matmul %24, %26, %cst_9 {dimension_numbers = #tpu.dot_dimension_numbers<[1], [0], [0], [1], [0, 0, 1, 1], [], []>} : vector<105x4xbf16>, vector<4x128xbf16>, vector<105x128xf32> -> vector<105x128xf32>
    %28 = arith.addf %23, %27 : vector<105x128xf32>
    %29 = vector.extract_strided_slice %1 {offsets = [5, 0], sizes = [105, 4], strides = [1, 1]} : vector<129x4xbf16> to vector<105x4xbf16>
    %30 = vector.extract_strided_slice %2 {offsets = [5, 0, 0], sizes = [1, 4, 128], strides = [1, 1, 1]} : vector<25x4x128xbf16> to vector<1x4x128xbf16>
    %31 = vector.shape_cast %30 : vector<1x4x128xbf16> to vector<4x128xbf16>
    %cst_10 = arith.constant dense<0.000000e+00> : vector<105x128xf32>
    %32 = tpu.matmul %29, %31, %cst_10 {dimension_numbers = #tpu.dot_dimension_numbers<[1], [0], [0], [1], [0, 0, 1, 1], [], []>} : vector<105x4xbf16>, vector<4x128xbf16>, vector<105x128xf32> -> vector<105x128xf32>
    %33 = arith.addf %28, %32 : vector<105x128xf32>
    %34 = vector.extract_strided_slice %1 {offsets = [6, 0], sizes = [105, 4], strides = [1, 1]} : vector<129x4xbf16> to vector<105x4xbf16>
    %35 = vector.extract_strided_slice %2 {offsets = [6, 0, 0], sizes = [1, 4, 128], strides = [1, 1, 1]} : vector<25x4x128xbf16> to vector<1x4x128xbf16>
    %36 = vector.shape_cast %35 : vector<1x4x128xbf16> to vector<4x128xbf16>
    %cst_11 = arith.constant dense<0.000000e+00> : vector<105x128xf32>
    %37 = tpu.matmul %34, %36, %cst_11 {dimension_numbers = #tpu.dot_dimension_numbers<[1], [0], [0], [1], [0, 0, 1, 1], [], []>} : vector<105x4xbf16>, vector<4x128xbf16>, vector<105x128xf32> -> vector<105x128xf32>
    %38 = arith.addf %33, %37 : vector<105x128xf32>
    %39 = vector.extract_strided_slice %1 {offsets = [7, 0], sizes = [105, 4], strides = [1, 1]} : vector<129x4xbf16> to vector<105x4xbf16>
    %40 = vector.extract_strided_slice %2 {offsets = [7, 0, 0], sizes = [1, 4, 128], strides = [1, 1, 1]} : vector<25x4x128xbf16> to vector<1x4x128xbf16>
    %41 = vector.shape_cast %40 : vector<1x4x128xbf16> to vector<4x128xbf16>
    %cst_12 = arith.constant dense<0.000000e+00> : vector<105x128xf32>
    %42 = tpu.matmul %39, %41, %cst_12 {dimension_numbers = #tpu.dot_dimension_numbers<[1], [0], [0], [1], [0, 0, 1, 1], [], []>} : vector<105x4xbf16>, vector<4x128xbf16>, vector<105x128xf32> -> vector<105x128xf32>
    %43 = arith.addf %38, %42 : vector<105x128xf32>
    %44 = vector.extract_strided_slice %1 {offsets = [8, 0], sizes = [105, 4], strides = [1, 1]} : vector<129x4xbf16> to vector<105x4xbf16>
    %45 = vector.extract_strided_slice %2 {offsets = [8, 0, 0], sizes = [1, 4, 128], strides = [1, 1, 1]} : vector<25x4x128xbf16> to vector<1x4x128xbf16>
    %46 = vector.shape_cast %45 : vector<1x4x128xbf16> to vector<4x128xbf16>
    %cst_13 = arith.constant dense<0.000000e+00> : vector<105x128xf32>
    %47 = tpu.matmul %44, %46, %cst_13 {dimension_numbers = #tpu.dot_dimension_numbers<[1], [0], [0], [1], [0, 0, 1, 1], [], []>} : vector<105x4xbf16>, vector<4x128xbf16>, vector<105x128xf32> -> vector<105x128xf32>
    %48 = arith.addf %43, %47 : vector<105x128xf32>
    %49 = vector.extract_strided_slice %1 {offsets = [9, 0], sizes = [105, 4], strides = [1, 1]} : vector<129x4xbf16> to vector<105x4xbf16>
    %50 = vector.extract_strided_slice %2 {offsets = [9, 0, 0], sizes = [1, 4, 128], strides = [1, 1, 1]} : vector<25x4x128xbf16> to vector<1x4x128xbf16>
    %51 = vector.shape_cast %50 : vector<1x4x128xbf16> to vector<4x128xbf16>
    %cst_14 = arith.constant dense<0.000000e+00> : vector<105x128xf32>
    %52 = tpu.matmul %49, %51, %cst_14 {dimension_numbers = #tpu.dot_dimension_numbers<[1], [0], [0], [1], [0, 0, 1, 1], [], []>} : vector<105x4xbf16>, vector<4x128xbf16>, vector<105x128xf32> -> vector<105x128xf32>
    %53 = arith.addf %48, %52 : vector<105x128xf32>
    %54 = vector.extract_strided_slice %1 {offsets = [10, 0], sizes = [105, 4], strides = [1, 1]} : vector<129x4xbf16> to vector<105x4xbf16>
    %55 = vector.extract_strided_slice %2 {offsets = [10, 0, 0], sizes = [1, 4, 128], strides = [1, 1, 1]} : vector<25x4x128xbf16> to vector<1x4x128xbf16>
    %56 = vector.shape_cast %55 : vector<1x4x128xbf16> to vector<4x128xbf16>
    %cst_15 = arith.constant dense<0.000000e+00> : vector<105x128xf32>
    %57 = tpu.matmul %54, %56, %cst_15 {dimension_numbers = #tpu.dot_dimension_numbers<[1], [0], [0], [1], [0, 0, 1, 1], [], []>} : vector<105x4xbf16>, vector<4x128xbf16>, vector<105x128xf32> -> vector<105x128xf32>
    %58 = arith.addf %53, %57 : vector<105x128xf32>
    %59 = vector.extract_strided_slice %1 {offsets = [11, 0], sizes = [105, 4], strides = [1, 1]} : vector<129x4xbf16> to vector<105x4xbf16>
    %60 = vector.extract_strided_slice %2 {offsets = [11, 0, 0], sizes = [1, 4, 128], strides = [1, 1, 1]} : vector<25x4x128xbf16> to vector<1x4x128xbf16>
    %61 = vector.shape_cast %60 : vector<1x4x128xbf16> to vector<4x128xbf16>
    %cst_16 = arith.constant dense<0.000000e+00> : vector<105x128xf32>
    %62 = tpu.matmul %59, %61, %cst_16 {dimension_numbers = #tpu.dot_dimension_numbers<[1], [0], [0], [1], [0, 0, 1, 1], [], []>} : vector<105x4xbf16>, vector<4x128xbf16>, vector<105x128xf32> -> vector<105x128xf32>
    %63 = arith.addf %58, %62 : vector<105x128xf32>
    %64 = vector.extract_strided_slice %1 {offsets = [12, 0], sizes = [105, 4], strides = [1, 1]} : vector<129x4xbf16> to vector<105x4xbf16>
    %65 = vector.extract_strided_slice %2 {offsets = [12, 0, 0], sizes = [1, 4, 128], strides = [1, 1, 1]} : vector<25x4x128xbf16> to vector<1x4x128xbf16>
    %66 = vector.shape_cast %65 : vector<1x4x128xbf16> to vector<4x128xbf16>
    %cst_17 = arith.constant dense<0.000000e+00> : vector<105x128xf32>
    %67 = tpu.matmul %64, %66, %cst_17 {dimension_numbers = #tpu.dot_dimension_numbers<[1], [0], [0], [1], [0, 0, 1, 1], [], []>} : vector<105x4xbf16>, vector<4x128xbf16>, vector<105x128xf32> -> vector<105x128xf32>
    %68 = arith.addf %63, %67 : vector<105x128xf32>
    %69 = vector.extract_strided_slice %1 {offsets = [13, 0], sizes = [105, 4], strides = [1, 1]} : vector<129x4xbf16> to vector<105x4xbf16>
    %70 = vector.extract_strided_slice %2 {offsets = [13, 0, 0], sizes = [1, 4, 128], strides = [1, 1, 1]} : vector<25x4x128xbf16> to vector<1x4x128xbf16>
    %71 = vector.shape_cast %70 : vector<1x4x128xbf16> to vector<4x128xbf16>
    %cst_18 = arith.constant dense<0.000000e+00> : vector<105x128xf32>
    %72 = tpu.matmul %69, %71, %cst_18 {dimension_numbers = #tpu.dot_dimension_numbers<[1], [0], [0], [1], [0, 0, 1, 1], [], []>} : vector<105x4xbf16>, vector<4x128xbf16>, vector<105x128xf32> -> vector<105x128xf32>
    %73 = arith.addf %68, %72 : vector<105x128xf32>
    %74 = vector.extract_strided_slice %1 {offsets = [14, 0], sizes = [105, 4], strides = [1, 1]} : vector<129x4xbf16> to vector<105x4xbf16>
    %75 = vector.extract_strided_slice %2 {offsets = [14, 0, 0], sizes = [1, 4, 128], strides = [1, 1, 1]} : vector<25x4x128xbf16> to vector<1x4x128xbf16>
    %76 = vector.shape_cast %75 : vector<1x4x128xbf16> to vector<4x128xbf16>
    %cst_19 = arith.constant dense<0.000000e+00> : vector<105x128xf32>
    %77 = tpu.matmul %74, %76, %cst_19 {dimension_numbers = #tpu.dot_dimension_numbers<[1], [0], [0], [1], [0, 0, 1, 1], [], []>} : vector<105x4xbf16>, vector<4x128xbf16>, vector<105x128xf32> -> vector<105x128xf32>
    %78 = arith.addf %73, %77 : vector<105x128xf32>
    %79 = vector.extract_strided_slice %1 {offsets = [15, 0], sizes = [105, 4], strides = [1, 1]} : vector<129x4xbf16> to vector<105x4xbf16>
    %80 = vector.extract_strided_slice %2 {offsets = [15, 0, 0], sizes = [1, 4, 128], strides = [1, 1, 1]} : vector<25x4x128xbf16> to vector<1x4x128xbf16>
    %81 = vector.shape_cast %80 : vector<1x4x128xbf16> to vector<4x128xbf16>
    %cst_20 = arith.constant dense<0.000000e+00> : vector<105x128xf32>
    %82 = tpu.matmul %79, %81, %cst_20 {dimension_numbers = #tpu.dot_dimension_numbers<[1], [0], [0], [1], [0, 0, 1, 1], [], []>} : vector<105x4xbf16>, vector<4x128xbf16>, vector<105x128xf32> -> vector<105x128xf32>
    %83 = arith.addf %78, %82 : vector<105x128xf32>
    %84 = vector.extract_strided_slice %1 {offsets = [16, 0], sizes = [105, 4], strides = [1, 1]} : vector<129x4xbf16> to vector<105x4xbf16>
    %85 = vector.extract_strided_slice %2 {offsets = [16, 0, 0], sizes = [1, 4, 128], strides = [1, 1, 1]} : vector<25x4x128xbf16> to vector<1x4x128xbf16>
    %86 = vector.shape_cast %85 : vector<1x4x128xbf16> to vector<4x128xbf16>
    %cst_21 = arith.constant dense<0.000000e+00> : vector<105x128xf32>
    %87 = tpu.matmul %84, %86, %cst_21 {dimension_numbers = #tpu.dot_dimension_numbers<[1], [0], [0], [1], [0, 0, 1, 1], [], []>} : vector<105x4xbf16>, vector<4x128xbf16>, vector<105x128xf32> -> vector<105x128xf32>
    %88 = arith.addf %83, %87 : vector<105x128xf32>
    %89 = vector.extract_strided_slice %1 {offsets = [17, 0], sizes = [105, 4], strides = [1, 1]} : vector<129x4xbf16> to vector<105x4xbf16>
    %90 = vector.extract_strided_slice %2 {offsets = [17, 0, 0], sizes = [1, 4, 128], strides = [1, 1, 1]} : vector<25x4x128xbf16> to vector<1x4x128xbf16>
    %91 = vector.shape_cast %90 : vector<1x4x128xbf16> to vector<4x128xbf16>
    %cst_22 = arith.constant dense<0.000000e+00> : vector<105x128xf32>
    %92 = tpu.matmul %89, %91, %cst_22 {dimension_numbers = #tpu.dot_dimension_numbers<[1], [0], [0], [1], [0, 0, 1, 1], [], []>} : vector<105x4xbf16>, vector<4x128xbf16>, vector<105x128xf32> -> vector<105x128xf32>
    %93 = arith.addf %88, %92 : vector<105x128xf32>
    %94 = vector.extract_strided_slice %1 {offsets = [18, 0], sizes = [105, 4], strides = [1, 1]} : vector<129x4xbf16> to vector<105x4xbf16>
    %95 = vector.extract_strided_slice %2 {offsets = [18, 0, 0], sizes = [1, 4, 128], strides = [1, 1, 1]} : vector<25x4x128xbf16> to vector<1x4x128xbf16>
    %96 = vector.shape_cast %95 : vector<1x4x128xbf16> to vector<4x128xbf16>
    %cst_23 = arith.constant dense<0.000000e+00> : vector<105x128xf32>
    %97 = tpu.matmul %94, %96, %cst_23 {dimension_numbers = #tpu.dot_dimension_numbers<[1], [0], [0], [1], [0, 0, 1, 1], [], []>} : vector<105x4xbf16>, vector<4x128xbf16>, vector<105x128xf32> -> vector<105x128xf32>
    %98 = arith.addf %93, %97 : vector<105x128xf32>
    %99 = vector.extract_strided_slice %1 {offsets = [19, 0], sizes = [105, 4], strides = [1, 1]} : vector<129x4xbf16> to vector<105x4xbf16>
    %100 = vector.extract_strided_slice %2 {offsets = [19, 0, 0], sizes = [1, 4, 128], strides = [1, 1, 1]} : vector<25x4x128xbf16> to vector<1x4x128xbf16>
    %101 = vector.shape_cast %100 : vector<1x4x128xbf16> to vector<4x128xbf16>
    %cst_24 = arith.constant dense<0.000000e+00> : vector<105x128xf32>
    %102 = tpu.matmul %99, %101, %cst_24 {dimension_numbers = #tpu.dot_dimension_numbers<[1], [0], [0], [1], [0, 0, 1, 1], [], []>} : vector<105x4xbf16>, vector<4x128xbf16>, vector<105x128xf32> -> vector<105x128xf32>
    %103 = arith.addf %98, %102 : vector<105x128xf32>
    %104 = vector.extract_strided_slice %1 {offsets = [20, 0], sizes = [105, 4], strides = [1, 1]} : vector<129x4xbf16> to vector<105x4xbf16>
    %105 = vector.extract_strided_slice %2 {offsets = [20, 0, 0], sizes = [1, 4, 128], strides = [1, 1, 1]} : vector<25x4x128xbf16> to vector<1x4x128xbf16>
    %106 = vector.shape_cast %105 : vector<1x4x128xbf16> to vector<4x128xbf16>
    %cst_25 = arith.constant dense<0.000000e+00> : vector<105x128xf32>
    %107 = tpu.matmul %104, %106, %cst_25 {dimension_numbers = #tpu.dot_dimension_numbers<[1], [0], [0], [1], [0, 0, 1, 1], [], []>} : vector<105x4xbf16>, vector<4x128xbf16>, vector<105x128xf32> -> vector<105x128xf32>
    %108 = arith.addf %103, %107 : vector<105x128xf32>
    %109 = vector.extract_strided_slice %1 {offsets = [21, 0], sizes = [105, 4], strides = [1, 1]} : vector<129x4xbf16> to vector<105x4xbf16>
    %110 = vector.extract_strided_slice %2 {offsets = [21, 0, 0], sizes = [1, 4, 128], strides = [1, 1, 1]} : vector<25x4x128xbf16> to vector<1x4x128xbf16>
    %111 = vector.shape_cast %110 : vector<1x4x128xbf16> to vector<4x128xbf16>
    %cst_26 = arith.constant dense<0.000000e+00> : vector<105x128xf32>
    %112 = tpu.matmul %109, %111, %cst_26 {dimension_numbers = #tpu.dot_dimension_numbers<[1], [0], [0], [1], [0, 0, 1, 1], [], []>} : vector<105x4xbf16>, vector<4x128xbf16>, vector<105x128xf32> -> vector<105x128xf32>
    %113 = arith.addf %108, %112 : vector<105x128xf32>
    %114 = vector.extract_strided_slice %1 {offsets = [22, 0], sizes = [105, 4], strides = [1, 1]} : vector<129x4xbf16> to vector<105x4xbf16>
    %115 = vector.extract_strided_slice %2 {offsets = [22, 0, 0], sizes = [1, 4, 128], strides = [1, 1, 1]} : vector<25x4x128xbf16> to vector<1x4x128xbf16>
    %116 = vector.shape_cast %115 : vector<1x4x128xbf16> to vector<4x128xbf16>
    %cst_27 = arith.constant dense<0.000000e+00> : vector<105x128xf32>
    %117 = tpu.matmul %114, %116, %cst_27 {dimension_numbers = #tpu.dot_dimension_numbers<[1], [0], [0], [1], [0, 0, 1, 1], [], []>} : vector<105x4xbf16>, vector<4x128xbf16>, vector<105x128xf32> -> vector<105x128xf32>
    %118 = arith.addf %113, %117 : vector<105x128xf32>
    %119 = vector.extract_strided_slice %1 {offsets = [23, 0], sizes = [105, 4], strides = [1, 1]} : vector<129x4xbf16> to vector<105x4xbf16>
    %120 = vector.extract_strided_slice %2 {offsets = [23, 0, 0], sizes = [1, 4, 128], strides = [1, 1, 1]} : vector<25x4x128xbf16> to vector<1x4x128xbf16>
    %121 = vector.shape_cast %120 : vector<1x4x128xbf16> to vector<4x128xbf16>
    %cst_28 = arith.constant dense<0.000000e+00> : vector<105x128xf32>
    %122 = tpu.matmul %119, %121, %cst_28 {dimension_numbers = #tpu.dot_dimension_numbers<[1], [0], [0], [1], [0, 0, 1, 1], [], []>} : vector<105x4xbf16>, vector<4x128xbf16>, vector<105x128xf32> -> vector<105x128xf32>
    %123 = arith.addf %118, %122 : vector<105x128xf32>
    %124 = vector.extract_strided_slice %1 {offsets = [24, 0], sizes = [105, 4], strides = [1, 1]} : vector<129x4xbf16> to vector<105x4xbf16>
    %125 = vector.extract_strided_slice %2 {offsets = [24, 0, 0], sizes = [1, 4, 128], strides = [1, 1, 1]} : vector<25x4x128xbf16> to vector<1x4x128xbf16>
    %126 = vector.shape_cast %125 : vector<1x4x128xbf16> to vector<4x128xbf16>
    %cst_29 = arith.constant dense<0.000000e+00> : vector<105x128xf32>
    %127 = tpu.matmul %124, %126, %cst_29 {dimension_numbers = #tpu.dot_dimension_numbers<[1], [0], [0], [1], [0, 0, 1, 1], [], []>} : vector<105x4xbf16>, vector<4x128xbf16>, vector<105x128xf32> -> vector<105x128xf32>
    %128 = arith.addf %123, %127 : vector<105x128xf32>
    %c0_30 = arith.constant 0 : index
    %c0_31 = arith.constant 0 : index
    %129 = vector.load %arg3[%c0_30, %c0_31] : memref<1x128xf32, #tpu.memory_space<vmem>>, vector<1x128xf32>
    %130 = vector.broadcast %129 : vector<1x128xf32> to vector<105x128xf32>
    %131 = arith.addf %128, %130 : vector<105x128xf32>
    %132 = arith.mulf %131, %131 : vector<105x128xf32>
    %133 = vector.shape_cast %132 : vector<105x128xf32> to vector<7x15x128xf32>
    %cst_32 = arith.constant dense<0.000000e+00> : vector<7x128xf32>
    %134 = vector.multi_reduction <add>, %133, %cst_32 [1] : vector<7x15x128xf32> to vector<7x128xf32>
    %135 = vector.extract_strided_slice %134 {offsets = [0, 0], sizes = [3, 128], strides = [1, 1]} : vector<7x128xf32> to vector<3x128xf32>
    %136 = vector.extract_strided_slice %134 {offsets = [1, 0], sizes = [3, 128], strides = [1, 1]} : vector<7x128xf32> to vector<3x128xf32>
    %137 = arith.addf %135, %136 : vector<3x128xf32>
    %138 = vector.extract_strided_slice %134 {offsets = [2, 0], sizes = [3, 128], strides = [1, 1]} : vector<7x128xf32> to vector<3x128xf32>
    %139 = arith.addf %137, %138 : vector<3x128xf32>
    %140 = vector.extract_strided_slice %134 {offsets = [3, 0], sizes = [3, 128], strides = [1, 1]} : vector<7x128xf32> to vector<3x128xf32>
    %141 = arith.addf %139, %140 : vector<3x128xf32>
    %142 = vector.extract_strided_slice %134 {offsets = [4, 0], sizes = [3, 128], strides = [1, 1]} : vector<7x128xf32> to vector<3x128xf32>
    %143 = arith.addf %141, %142 : vector<3x128xf32>
    %cst_33 = arith.constant 0.0133333337 : f32
    %144 = vector.broadcast %cst_33 : f32 to vector<3x128xf32>
    %145 = arith.mulf %143, %144 : vector<3x128xf32>
    %cst_34 = arith.constant 9.99999997E-7 : f32
    %146 = vector.broadcast %cst_34 : f32 to vector<3x128xf32>
    %147 = arith.maximumf %145, %146 : vector<3x128xf32>
    %148 = math.log %147 : vector<3x128xf32>
    %c0_35 = arith.constant 0 : index
    %c0_36 = arith.constant 0 : index
    %c0_37 = arith.constant 0 : index
    %149 = vector.load %arg6[%c0_35, %c0_36, %c0_37] : memref<1x3x128xf32, #tpu.memory_space<vmem>>, vector<1x3x128xf32>
    %150 = vector.shape_cast %149 : vector<1x3x128xf32> to vector<3x128xf32>
    %151 = vector.shape_cast %148 : vector<3x128xf32> to vector<1x3x128xf32>
    tpu.vector_store %arg6[%c0_35, %c0_36, %c0_37], %151 {strides = array<i32>} : memref<1x3x128xf32, #tpu.memory_space<vmem>>, vector<1x3x128xf32>,
    %152 = vector.shape_cast %148 : vector<3x128xf32> to vector<1x384xf32>
    %c0_38 = arith.constant 0 : index
    %c0_39 = arith.constant 0 : index
    %153 = vector.load %arg4[%c0_38, %c0_39] : memref<384x3xf32, #tpu.memory_space<vmem>>, vector<384x3xf32>
    %cst_40 = arith.constant dense<0.000000e+00> : vector<1x3xf32>
    %154 = tpu.matmul %152, %153, %cst_40 {dimension_numbers = #tpu.dot_dimension_numbers<[1], [0], [0], [1], [0, 0, 1, 1], [], []>} : vector<1x384xf32>, vector<384x3xf32>, vector<1x3xf32> -> vector<1x3xf32>
    %c0_41 = arith.constant 0 : index
    %c0_42 = arith.constant 0 : index
    %155 = vector.load %arg5[%c0_41, %c0_42] : memref<1x3xf32, #tpu.memory_space<vmem>>, vector<1x3xf32>
    %156 = arith.addf %154, %155 : vector<1x3xf32>
    %cst_43 = arith.constant dense<0xFF800000> : vector<1xf32>
    %157 = vector.multi_reduction <maximumf>, %156, %cst_43 [1] : vector<1x3xf32> to vector<1xf32>
    %158 = vector.shape_cast %157 : vector<1xf32> to vector<1x1xf32>
    %159 = vector.broadcast %158 : vector<1x1xf32> to vector<1x3xf32>
    %160 = arith.subf %156, %159 : vector<1x3xf32>
    %161 = math.exp %160 : vector<1x3xf32>
    %cst_44 = arith.constant dense<0.000000e+00> : vector<1xf32>
    %162 = vector.multi_reduction <add>, %161, %cst_44 [1] : vector<1x3xf32> to vector<1xf32>
    %163 = vector.shape_cast %162 : vector<1xf32> to vector<1x1xf32>
    %164 = math.log %163 : vector<1x1xf32>
    %165 = vector.broadcast %164 : vector<1x1xf32> to vector<1x3xf32>
    %166 = arith.subf %160, %165 : vector<1x3xf32>
    %c0_45 = arith.constant 0 : index
    %c0_46 = arith.constant 0 : index
    %c0_47 = arith.constant 0 : index
    %167 = vector.load %arg7[%c0_45, %c0_46, %c0_47] : memref<1x1x3xf32, #tpu.memory_space<vmem>>, vector<1x1x3xf32>
    %168 = vector.shape_cast %167 : vector<1x1x3xf32> to vector<1x3xf32>
    %169 = vector.shape_cast %166 : vector<1x3xf32> to vector<1x1x3xf32>
    tpu.vector_store %arg7[%c0_45, %c0_46, %c0_47], %169 {strides = array<i32>} : memref<1x1x3xf32, #tpu.memory_space<vmem>>, vector<1x1x3xf32>,
    return
  }
  func.func @transform_0(%arg0: i32) -> (i32, i32, i32) {
    %c0_i32 = arith.constant 0 : i32
    %c0_i32_0 = arith.constant 0 : i32
    %c0_i32_1 = arith.constant 0 : i32
    return %arg0, %c0_i32, %c0_i32_0 : i32, i32, i32
  }
  func.func @transform_1(%arg0: i32) -> (i32, i32, i32) {
    %c0_i32 = arith.constant 0 : i32
    %c0_i32_0 = arith.constant 0 : i32
    %c0_i32_1 = arith.constant 0 : i32
    %c0_i32_2 = arith.constant 0 : i32
    return %c0_i32, %c0_i32_0, %c0_i32_1 : i32, i32, i32
  }
  func.func @transform_2(%arg0: i32) -> (i32, i32) {
    %c0_i32 = arith.constant 0 : i32
    %c0_i32_0 = arith.constant 0 : i32
    %c0_i32_1 = arith.constant 0 : i32
    return %c0_i32, %c0_i32_0 : i32, i32
  }
  func.func @transform_3(%arg0: i32) -> (i32, i32) {
    %c0_i32 = arith.constant 0 : i32
    %c0_i32_0 = arith.constant 0 : i32
    %c0_i32_1 = arith.constant 0 : i32
    return %c0_i32, %c0_i32_0 : i32, i32
  }
  func.func @transform_4(%arg0: i32) -> (i32, i32) {
    %c0_i32 = arith.constant 0 : i32
    %c0_i32_0 = arith.constant 0 : i32
    %c0_i32_1 = arith.constant 0 : i32
    return %c0_i32, %c0_i32_0 : i32, i32
  }
  func.func @transform_5(%arg0: i32) -> (i32, i32, i32) {
    %c0_i32 = arith.constant 0 : i32
    %c0_i32_0 = arith.constant 0 : i32
    %c0_i32_1 = arith.constant 0 : i32
    return %arg0, %c0_i32, %c0_i32_0 : i32, i32, i32
  }
  func.func @transform_6(%arg0: i32) -> (i32, i32, i32) {
    %c0_i32 = arith.constant 0 : i32
    %c0_i32_0 = arith.constant 0 : i32
    %c0_i32_1 = arith.constant 0 : i32
    return %arg0, %c0_i32, %c0_i32_0 : i32, i32, i32
  }
}

</mosaic_0001>

<llo_original>
// kernel: shallow_fbcsp_forward.1
$region0: #{shallow_fbcsp_forward.1}
  #allocation0 [shape = 'u32[]', space=smem, size = 0x4, offset = 0x4, fixed_abs, tag = 'smem constant byte address 0x4 - core index']
  #allocation1 [shape = 'u32[144,128]{1,0:T(1,128)}', space=vmem, size = 0x12000, scoped, tag = 'internal scratch']
  %s0 = inlined_call_operand.vmem [shape: bf16[2,129,4], index: 0, kind: input, shape index: {}]
  %s1 = inlined_call_operand.vmem [shape: bf16[25,4,128], index: 1, kind: input, shape index: {}]
  %s2 = inlined_call_operand.vmem [shape: f32[1,128], index: 2, kind: input, shape index: {}]
  %s3 = inlined_call_operand.vmem [shape: f32[384,3], index: 3, kind: input, shape index: {}]
  %s4 = inlined_call_operand.vmem [shape: f32[1,3], index: 4, kind: input, shape index: {}]
  %s5 = inlined_call_operand.vmem [shape: f32[2,3,128], index: 5, kind: output, shape index: {0}]
  %s6 = inlined_call_operand.hbm [shape: f32[2,1,3], index: 6, kind: output, shape index: {1}]
  %7 = xla_tuple %s5, %s6
  %s8 = sld [smem:[#allocation0]]
  $region61: #{shallow_fbcsp_forward.1} parent=0
    _
  %s10 = ssub.s32 1, %s8
  %s11 = scalar_select 0, %s10, %s8
  $region1: #{shallow_fbcsp_forward.1} parent=0
    #allocation2 [shape = 'u8[1024]{0}', space=vmem, size = 0x400, scoped, tag = 'output window, operand 1']
    #allocation3 [shape = 's32[2]{0}', space=sflag, size = 0x8, scoped, tag = 'scoped memory for shallow_fbcsp_forward.1']
    %12 = vsyncpa [#allocation3], 0
    %s13 = scalar_lea.sflag [#allocation3], 1
    %14 = vsyncpa %s13, 0
    loop: start=0, step=1, limit=4
    $region2: #{shallow_fbcsp_forward.1} parent=1 // loop_pre_header
      _
    $region3: #{shallow_fbcsp_forward.1} parent=1 // loop_header
      %s16 = sphi 0, %s20
      %p17 = scmp.ge.s32.totalorder %s16, 4
      %s26 = sphi 0, %s28
      %s29 = sphi 0, %s26
      %s30 = sphi 0, %s29
      %s46 = sphi 0, %s30
      %s50 = sphi 0, %s50
      %s52 = sphi 0, %s50
      %s53 = sphi 0, %s52
      %s67 = sphi 0, %s53
      %s71 = sphi 0, %s71
      %s73 = sphi 0, %s71
      %s74 = sphi 0, %s73
      %s88 = sphi 0, %s74
      %s92 = sphi 0, %s92
      %s94 = sphi 0, %s92
      %s95 = sphi 0, %s94
      %s109 = sphi 0, %s95
      %s113 = sphi 0, %s113
      %s115 = sphi 0, %s113
      %s116 = sphi 0, %s115
      %s130 = sphi 0, %s116
      %s136 = sphi 0, %s138
      %s139 = sphi 0, %s136
      %s140 = sphi 0, %s139
      %s156 = sphi 0, %s140
      %s162 = sphi 0, %s164
      %s165 = sphi 0, %s162
      %s166 = sphi 0, %s165
      %s182 = sphi 0, %s166
    $region4: #{shallow_fbcsp_forward.1} parent=1 // loop_header_branch
      %19 = sbr.rel (%p17) target = $region8
    $region5: #{shallow_fbcsp_forward.1} parent=1 // loop_body
      %s21 = ssub.s32 %s16, 1
      %s22 = ssub.s32 %s16, 2
      %s23 = sadd.s32 %s16, 1
      %s24 = ssub.s32 %s16, %s23
      %p25 = scmp.eq.s32.totalorder %s24, 0
      %s27 = sadd.s32 %s26, 1
      %s28 = scalar_select %p25, %s26, %s27
      %p31 = pneg %p25
      %p32 = scmp.eq.s32.totalorder %s16, 1
      %p33 = por %p31, %p32
      %p34 = scmp.ne.s32.totalorder %s26, %s29
      %p35 = scmp.eq.s32.totalorder %s16, 0
      %p36 = por %p34, %p35
      %p37 = scmp.ne.s32.totalorder %s26, %s29
      %p38 = scmp.eq.s32.totalorder %s21, 1
      %p39 = por %p37, %p38
      %p40 = scmp.ne.s32.totalorder %s29, %s30
      %p41 = scmp.eq.s32.totalorder %s21, 0
      %p42 = por %p40, %p41
      %p43 = scmp.ne.s32.totalorder %s29, %s30
      %p44 = scmp.eq.s32.totalorder %s22, 1
      %p45 = por %p43, %p44
      %p47 = scmp.ne.s32.totalorder %s30, %s46
      %p48 = scmp.eq.s32.totalorder %s22, 0
      %p49 = por %p47, %p48
      %s51 = sadd.s32 %s50, 1
      %p54 = scmp.eq.s32.totalorder %s16, 1
      %p55 = scmp.ne.s32.totalorder %s50, %s52
      %p56 = scmp.eq.s32.totalorder %s16, 0
      %p57 = por %p55, %p56
      %p58 = scmp.ne.s32.totalorder %s50, %s52
      %p59 = scmp.eq.s32.totalorder %s21, 1
      %p60 = por %p58, %p59
      %p61 = scmp.ne.s32.totalorder %s52, %s53
      %p62 = scmp.eq.s32.totalorder %s21, 0
      %p63 = por %p61, %p62
      %p64 = scmp.ne.s32.totalorder %s52, %s53
      %p65 = scmp.eq.s32.totalorder %s22, 1
      %p66 = por %p64, %p65
      %p68 = scmp.ne.s32.totalorder %s53, %s67
      %p69 = scmp.eq.s32.totalorder %s22, 0
      %p70 = por %p68, %p69
      %s72 = sadd.s32 %s71, 1
      %p75 = scmp.eq.s32.totalorder %s16, 1
      %p76 = scmp.ne.s32.totalorder %s71, %s73
      %p77 = scmp.eq.s32.totalorder %s16, 0
      %p78 = por %p76, %p77
      %p79 = scmp.ne.s32.totalorder %s71, %s73
      %p80 = scmp.eq.s32.totalorder %s21, 1
      %p81 = por %p79, %p80
      %p82 = scmp.ne.s32.totalorder %s73, %s74
      %p83 = scmp.eq.s32.totalorder %s21, 0
      %p84 = por %p82, %p83
      %p85 = scmp.ne.s32.totalorder %s73, %s74
      %p86 = scmp.eq.s32.totalorder %s22, 1
      %p87 = por %p85, %p86
      %p89 = scmp.ne.s32.totalorder %s74, %s88
      %p90 = scmp.eq.s32.totalorder %s22, 0
      %p91 = por %p89, %p90
      %s93 = sadd.s32 %s92, 1
      %p96 = scmp.eq.s32.totalorder %s16, 1
      %p97 = scmp.ne.s32.totalorder %s92, %s94
      %p98 = scmp.eq.s32.totalorder %s16, 0
      %p99 = por %p97, %p98
      %p100 = scmp.ne.s32.totalorder %s92, %s94
      %p101 = scmp.eq.s32.totalorder %s21, 1
      %p102 = por %p100, %p101
      %p103 = scmp.ne.s32.totalorder %s94, %s95
      %p104 = scmp.eq.s32.totalorder %s21, 0
      %p105 = por %p103, %p104
      %p106 = scmp.ne.s32.totalorder %s94, %s95
      %p107 = scmp.eq.s32.totalorder %s22, 1
      %p108 = por %p106, %p107
      %p110 = scmp.ne.s32.totalorder %s95, %s109
      %p111 = scmp.eq.s32.totalorder %s22, 0
      %p112 = por %p110, %p111
      %s114 = sadd.s32 %s113, 1
      %p117 = scmp.eq.s32.totalorder %s16, 1
      %p118 = scmp.ne.s32.totalorder %s113, %s115
      %p119 = scmp.eq.s32.totalorder %s16, 0
      %p120 = por %p118, %p119
      %p121 = scmp.ne.s32.totalorder %s113, %s115
      %p122 = scmp.eq.s32.totalorder %s21, 1
      %p123 = por %p121, %p122
      %p124 = scmp.ne.s32.totalorder %s115, %s116
      %p125 = scmp.eq.s32.totalorder %s21, 0
      %p126 = por %p124, %p125
      %p127 = scmp.ne.s32.totalorder %s115, %s116
      %p128 = scmp.eq.s32.totalorder %s22, 1
      %p129 = por %p127, %p128
      %p131 = scmp.ne.s32.totalorder %s116, %s130
      %p132 = scmp.eq.s32.totalorder %s22, 0
      %p133 = por %p131, %p132
      %s134 = ssub.s32 %s16, %s23
      %p135 = scmp.eq.s32.totalorder %s134, 0
      %s137 = sadd.s32 %s136, 1
      %s138 = scalar_select %p135, %s136, %s137
      %p141 = pneg %p135
      %p142 = scmp.eq.s32.totalorder %s16, 1
      %p143 = por %p141, %p142
      %p144 = scmp.ne.s32.totalorder %s136, %s139
      %p145 = scmp.eq.s32.totalorder %s16, 0
      %p146 = por %p144, %p145
      %p147 = scmp.ne.s32.totalorder %s136, %s139
      %p148 = scmp.eq.s32.totalorder %s21, 1
      %p149 = por %p147, %p148
      %p150 = scmp.ne.s32.totalorder %s139, %s140
      %p151 = scmp.eq.s32.totalorder %s21, 0
      %p152 = por %p150, %p151
      %p153 = scmp.ne.s32.totalorder %s139, %s140
      %p154 = scmp.eq.s32.totalorder %s22, 1
      %p155 = por %p153, %p154
      %p157 = scmp.ne.s32.totalorder %s140, %s156
      %p158 = scmp.eq.s32.totalorder %s22, 0
      %p159 = por %p157, %p158
      %s160 = ssub.s32 %s16, %s23
      %p161 = scmp.eq.s32.totalorder %s160, 0
      %s163 = sadd.s32 %s162, 1
      %s164 = scalar_select %p161, %s162, %s163
      %p167 = pneg %p161
      %p168 = scmp.eq.s32.totalorder %s16, 1
      %p169 = por %p167, %p168
      %p170 = scmp.ne.s32.totalorder %s162, %s165
      %p171 = scmp.eq.s32.totalorder %s16, 0
      %p172 = por %p170, %p171
      %p173 = scmp.ne.s32.totalorder %s162, %s165
      %p174 = scmp.eq.s32.totalorder %s21, 1
      %p175 = por %p173, %p174
      %p176 = scmp.ne.s32.totalorder %s165, %s166
      %p177 = scmp.eq.s32.totalorder %s21, 0
      %p178 = por %p176, %p177
      %p179 = scmp.ne.s32.totalorder %s165, %s166
      %p180 = scmp.eq.s32.totalorder %s22, 1
      %p181 = por %p179, %p180
      %p183 = scmp.ne.s32.totalorder %s166, %s182
      %p184 = scmp.eq.s32.totalorder %s22, 0
      %p185 = por %p183, %p184
      %p186 = scmp.le.s32.totalorder 1, %s16
      %p187 = scmp.lt.s32.totalorder %s16, 3
      %p188 = pnand %p186, %p187
      %p189 = pneg %p188
      // Predicated region
      $region9: #{shallow_fbcsp_forward.1} parent=5 // pred_check
        _
      $region10: #{shallow_fbcsp_forward.1} parent=5 // pred_check_branch
        %191 = sbr.rel (%p188) target = $region12
      $region11: #{shallow_fbcsp_forward.1} parent=5 // pred_region
        %s192 = ssub.s32 %s16, 1
        // Predicated region
        $region13: #{shallow_fbcsp_forward.1} parent=11 // pred_check
          %p193 = pneg %p63
        $region14: #{shallow_fbcsp_forward.1} parent=11 // pred_check_branch
          %195 = sbr.rel (%p193) target = $region16
        $region15: #{shallow_fbcsp_forward.1} parent=11 // pred_region
          _
        $region16: #{shallow_fbcsp_forward.1} parent=11 // pred_fallthru
          _
        // Predicated region
        $region17: #{shallow_fbcsp_forward.1} parent=11 // pred_check
          %p196 = pneg %p84
        $region18: #{shallow_fbcsp_forward.1} parent=11 // pred_check_branch
          %198 = sbr.rel (%p196) target = $region20
        $region19: #{shallow_fbcsp_forward.1} parent=11 // pred_region
          _
        $region20: #{shallow_fbcsp_forward.1} parent=11 // pred_fallthru
          _
        // Predicated region
        $region21: #{shallow_fbcsp_forward.1} parent=11 // pred_check
          %p199 = pneg %p105
        $region22: #{shallow_fbcsp_forward.1} parent=11 // pred_check_branch
          %201 = sbr.rel (%p199) target = $region24
        $region23: #{shallow_fbcsp_forward.1} parent=11 // pred_region
          _
        $region24: #{shallow_fbcsp_forward.1} parent=11 // pred_fallthru
          _
        // Predicated region
        $region25: #{shallow_fbcsp_forward.1} parent=11 // pred_check
          %p202 = pneg %p126
        $region26: #{shallow_fbcsp_forward.1} parent=11 // pred_check_branch
          %204 = sbr.rel (%p202) target = $region28
        $region27: #{shallow_fbcsp_forward.1} parent=11 // pred_region
          _
        $region28: #{shallow_fbcsp_forward.1} parent=11 // pred_fallthru
          _
      $region12: #{shallow_fbcsp_forward.1} parent=5 // pred_fallthru
        _
      %p205 = scmp.lt.s32.totalorder %s16, 2
      // Predicated region
      $region29: #{shallow_fbcsp_forward.1} parent=5 // pred_check
        %p206 = pneg %p205
      $region30: #{shallow_fbcsp_forward.1} parent=5 // pred_check_branch
        %208 = sbr.rel (%p206) target = $region32
      $region31: #{shallow_fbcsp_forward.1} parent=5 // pred_region
        // Predicated region
        $region33: #{shallow_fbcsp_forward.1} parent=31 // pred_check
          %p209 = pneg %p36
        $region34: #{shallow_fbcsp_forward.1} parent=31 // pred_check_branch
          %211 = sbr.rel (%p209) target = $region36
        $region35: #{shallow_fbcsp_forward.1} parent=31 // pred_region
          %p212 = scmp.lt.s32.totalorder %s16, 1
          %s213 = scalar_select %p212, %s16, 1
          %s214 = smul.addr %s213, 17
          %s215 = smul.addr %s214, 4
          %s216 = scalar_lea.vmem %s0, %s215
        $region36: #{shallow_fbcsp_forward.1} parent=31 // pred_fallthru
          _
      $region32: #{shallow_fbcsp_forward.1} parent=5 // pred_fallthru
        _
      %p217 = scmp.le.s32.totalorder 1, %s16
      %p218 = scmp.lt.s32.totalorder %s16, 3
      %p219 = pnand %p217, %p218
      %p220 = pneg %p219
      // Predicated region
      $region37: #{shallow_fbcsp_forward.1} parent=5 // pred_check
        _
      $region38: #{shallow_fbcsp_forward.1} parent=5 // pred_check_branch
        %222 = sbr.rel (%p219) target = $region40
      $region39: #{shallow_fbcsp_forward.1} parent=5 // pred_region
        %s223 = ssub.s32 %s16, 1
        %p224 = scmp.lt.s32.totalorder %s21, 1
        %s225 = scalar_select %p224, %s21, 1
        %s226 = smul.addr %s225, 17
        %s227 = smul.addr %s226, 4
        %s228 = scalar_lea.vmem %s0, %s227
        %p229 = pneg %p42
        %p230 = pneg %p39
        %p231 = pneg %p63
        %p232 = pneg %p60
        %p233 = pneg %p84
        %p234 = pneg %p81
        %p235 = pneg %p105
        %p236 = pneg %p102
        %p237 = pneg %p126
        %p238 = pneg %p123
        %p239 = pneg %p152
        %p240 = pneg %p149
        %p241 = scmp.lt.s32.totalorder %s21, 1
        %s242 = scalar_select %p241, %s21, 1
        %s243 = smul.addr %s242, 4
        %s244 = scalar_lea.vmem %s5, %s243
        %p245 = pneg %p178
        %p246 = pneg %p175
        %s247 = sand.u32 %s165, 1
        %s248 = scalar_lea.sflag [#allocation3], %s247
        %s249 = sand.u32 %s165, 1
        %s250 = scalar_lea.vmem [#allocation2], %s249
        %p251 = scmp.lt.s32.totalorder %s21, 1
        %s252 = scalar_select %p251, %s21, 1
        %s253 = smul.addr %s252, 17
        %s254 = smul.addr %s253, 4
        %s255 = scalar_lea.vmem %s0, %s254
        %p256 = scmp.lt.s32.totalorder %s21, 1
        %s257 = scalar_select %p256, %s21, 1
        %s258 = smul.addr %s257, 4
        %s259 = scalar_lea.vmem %s5, %s258
        %v261 = vld [vmem:[%s255] sm:$0xf]
        %v262 = vld [vmem:[%s255 + $0x4] sm:$0xf]
        %v263 = vld [vmem:[%s255 + $0x8] sm:$0xf]
        %v264 = vld [vmem:[%s255 + $0xc] sm:$0xf]
        %v265 = vld [vmem:[%s255 + $0x10] sm:$0xf]
        %v266 = vld [vmem:[%s255 + $0x14] sm:$0xf]
        %v267 = vld [vmem:[%s255 + $0x18] sm:$0xf]
        %v268 = vld [vmem:[%s255 + $0x1c] sm:$0xf]
        %v269 = vld [vmem:[%s255 + $0x20] sm:$0xf]
        %v270 = vld [vmem:[%s255 + $0x24] sm:$0xf]
        %v271 = vld [vmem:[%s255 + $0x28] sm:$0xf]
        %v272 = vld [vmem:[%s255 + $0x2c] sm:$0xf]
        %v273 = vld [vmem:[%s255 + $0x30] sm:$0xf]
        %v274 = vld [vmem:[%s255 + $0x34] sm:$0xf]
        %v275 = vld [vmem:[%s255 + $0x38] sm:$0xf]
        %v276 = vld [vmem:[%s255 + $0x3c] sm:$0xf]
        %v277 = vld [vmem:[%s255 + $0x40] sm:$0x1]
        %v278 = vld [vmem:[%s1] sm:$0x3]
        %v279 = vld [vmem:[%s1 + $0x2] sm:$0x3]
        %v280 = vld [vmem:[%s1 + $0x4] sm:$0x3]
        %v281 = vld [vmem:[%s1 + $0x6] sm:$0x3]
        %v282 = vld [vmem:[%s1 + $0x8] sm:$0x3]
        %v283 = vld [vmem:[%s1 + $0xa] sm:$0x3]
        %v284 = vld [vmem:[%s1 + $0xc] sm:$0x3]
        %v285 = vld [vmem:[%s1 + $0xe] sm:$0x3]
        %v286 = vld [vmem:[%s1 + $0x10] sm:$0x3]
        %v287 = vld [vmem:[%s1 + $0x12] sm:$0x3]
        %v288 = vld [vmem:[%s1 + $0x14] sm:$0x3]
        %v289 = vld [vmem:[%s1 + $0x16] sm:$0x3]
        %v290 = vld [vmem:[%s1 + $0x18] sm:$0x3]
        %v291 = vld [vmem:[%s1 + $0x1a] sm:$0x3]
        %v292 = vld [vmem:[%s1 + $0x1c] sm:$0x3]
        %v293 = vld [vmem:[%s1 + $0x1e] sm:$0x3]
        %v294 = vld [vmem:[%s1 + $0x20] sm:$0x3]
        %v295 = vld [vmem:[%s1 + $0x22] sm:$0x3]
        %v296 = vld [vmem:[%s1 + $0x24] sm:$0x3]
        %v297 = vld [vmem:[%s1 + $0x26] sm:$0x3]
        %v298 = vld [vmem:[%s1 + $0x28] sm:$0x3]
        %v299 = vld [vmem:[%s1 + $0x2a] sm:$0x3]
        %v300 = vld [vmem:[%s1 + $0x2c] sm:$0x3]
        %v301 = vld [vmem:[%s1 + $0x2e] sm:$0x3]
        %v302 = vld [vmem:[%s1 + $0x30] sm:$0x3]
        %v317 = vunpack.c.l.b16 %v261
        %v318 = vunpack.c.l.b16 %v262
        %v319 = vunpack.c.l.b16 %v263
        %v320 = vunpack.c.l.b16 %v264
        %v321 = vunpack.c.l.b16 %v265
        %v322 = vunpack.c.l.b16 %v266
        %v323 = vunpack.c.l.b16 %v267
        %v324 = vunpack.c.l.b16 %v268
        %v325 = vunpack.c.l.b16 %v269
        %v326 = vunpack.c.l.b16 %v270
        %v327 = vunpack.c.l.b16 %v271
        %v328 = vunpack.c.l.b16 %v272
        %v329 = vunpack.c.l.b16 %v273
        %v330 = vunpack.c.l.b16 %v274
        %v331 = vpack.c.b16 %v318, %v317
        %v332 = vpack.c.b16 %v320, %v319
        %v333 = vpack.c.b16 %v322, %v321
        %v334 = vpack.c.b16 %v324, %v323
        %v335 = vpack.c.b16 %v326, %v325
        %v336 = vpack.c.b16 %v328, %v327
        %v337 = vpack.c.b16 %v330, %v329
        %vm338 = vsmask.f32 7424
        %v340 = vshrl.u32 %v331, 16
        %v342 = vshll.u32 %v331, 16
        %v344 = vrot.slane %v342, 1
        %v345 = vor.u32 %v340, %v344
        %v347 = vshll.u32 %v332, 16
        %v349 = vrot.slane %v347, 1
        %v350 = vsel %vm338, %v345, %v349
        %v351 = vshrl.u32 %v332, 16
        %v353 = vor.u32 %v351, %v349
        %v355 = vshll.u32 %v333, 16
        %v357 = vrot.slane %v355, 1
        %v358 = vsel %vm338, %v353, %v357
        %v359 = vshrl.u32 %v333, 16
        %v361 = vor.u32 %v359, %v357
        %v363 = vshll.u32 %v334, 16
        %v365 = vrot.slane %v363, 1
        %v366 = vsel %vm338, %v361, %v365
        %v367 = vshrl.u32 %v334, 16
        %v369 = vor.u32 %v367, %v365
        %v371 = vshll.u32 %v335, 16
        %v373 = vrot.slane %v371, 1
        %v374 = vsel %vm338, %v369, %v373
        %v375 = vshrl.u32 %v335, 16
        %v377 = vor.u32 %v375, %v373
        %v379 = vshll.u32 %v336, 16
        %v381 = vrot.slane %v379, 1
        %v382 = vsel %vm338, %v377, %v381
        %v383 = vshrl.u32 %v336, 16
        %v385 = vor.u32 %v383, %v381
        %v387 = vshll.u32 %v337, 16
        %v389 = vrot.slane %v387, 1
        %v390 = vsel %vm338, %v385, %v389
        %v391 = vshrl.u32 %v337, 16
        %v393 = vor.u32 %v391, %v389
        %vm394 = vcmask 31744
        %v396 = vsel %vm394, %v350, 0
        %v399 = vsel %vm394, %v358, 0
        %v402 = vsel %vm394, %v366, 0
        %v405 = vsel %vm394, %v374, 0
        %v408 = vsel %vm394, %v382, 0
        %v411 = vsel %vm394, %v390, 0
        %v414 = vsel %vm394, %v393, 0
        %vm416 = vcmask 1041408
        %v418 = vsel %vm416, %v279, 0
        %420 = vmatprep.subr.bf16.mxu0 0
        %421 = vmatpush1.bf16.msra.mxu0 %v418
        %422 = vmatprep.subr.bf16.mxu0 0
        %423 = vmatpush1.bf16.msra.mxu0 0
        %424 = vmatprep.subr.bf16.mxu0 0
        %425 = vmatpush1.bf16.msra.mxu0 0
        %426 = vmatprep.subr.bf16.mxu0 0
        %427 = vmatpush1.bf16.msra.mxu0 0
        %428 = vmatprep.subr.bf16.mxu0 0
        %429 = vmatpush1.bf16.msra.mxu0 0
        %430 = vmatprep.subr.bf16.mxu0 0
        %431 = vmatpush1.bf16.msra.mxu0 0
        %432 = vmatprep.subr.bf16.mxu0 0
        %433 = vmatpush1.bf16.msra.mxu0 0
        %434 = vmatprep.subr.bf16.mxu0 0
        %435 = vmatpush1.bf16.msra.mxu0 0
        %436 = vmatprep.subr.bf16.mxu0 0
        %437 = vmatpush1.bf16.msra.mxu0 0
        %438 = vmatprep.subr.bf16.mxu0 0
        %439 = vmatpush1.bf16.msra.mxu0 0
        %440 = vmatprep.subr.bf16.mxu0 0
        %441 = vmatpush1.bf16.msra.mxu0 0
        %442 = vmatprep.subr.bf16.mxu0 0
        %443 = vmatpush1.bf16.msra.mxu0 0
        %444 = vmatprep.subr.bf16.mxu0 0
        %445 = vmatpush1.bf16.msra.mxu0 0
        %446 = vmatprep.subr.bf16.mxu0 0
        %447 = vmatpush1.bf16.msra.mxu0 0
        %448 = vmatprep.subr.bf16.mxu0 0
        %449 = vmatpush1.bf16.msra.mxu0 0
        %450 = vmatprep.subr.bf16.mxu0 0
        %451 = vmatpush1.bf16.msra.mxu0 0
        %452 = vmatprep.mubr.bf16.mxu0 0
        %453 = vmatmul.mubr.bf16.gmra.mrb[0].mxu0 %v396
        %v454 = vpop.f32.mrb[0].mxu0
        %v455 = vadd.f32 0.0, %v454
        %v456 = vpop.f32.mrb[0].mxu0
        %v457 = vpop.f32.mrb[0].mxu0
        %v458 = vadd.f32 0.0, %v457
        %v459 = vpop.f32.mrb[0].mxu0
        %460 = vmatprep.mubr.bf16.mxu0 0
        %461 = vmatmul.mubr.bf16.gmra.mrb[0].mxu0 %v399
        %v462 = vpop.f32.mrb[0].mxu0
        %v463 = vadd.f32 0.0, %v462
        %v464 = vpop.f32.mrb[0].mxu0
        %v465 = vpop.f32.mrb[0].mxu0
        %v466 = vadd.f32 0.0, %v465
        %v467 = vpop.f32.mrb[0].mxu0
        %468 = vmatprep.mubr.bf16.mxu0 0
        %469 = vmatmul.mubr.bf16.gmra.mrb[0].mxu0 %v402
        %v470 = vpop.f32.mrb[0].mxu0
        %v471 = vadd.f32 0.0, %v470
        %v472 = vpop.f32.mrb[0].mxu0
        %v473 = vpop.f32.mrb[0].mxu0
        %v474 = vadd.f32 0.0, %v473
        %v475 = vpop.f32.mrb[0].mxu0
        %476 = vmatprep.mubr.bf16.mxu0 0
        %477 = vmatmul.mubr.bf16.gmra.mrb[0].mxu0 %v405
        %v478 = vpop.f32.mrb[0].mxu0
        %v479 = vadd.f32 0.0, %v478
        %v480 = vpop.f32.mrb[0].mxu0
        %v481 = vpop.f32.mrb[0].mxu0
        %v482 = vadd.f32 0.0, %v481
        %v483 = vpop.f32.mrb[0].mxu0
        %484 = vmatprep.mubr.bf16.mxu0 0
        %485 = vmatmul.mubr.bf16.gmra.mrb[0].mxu0 %v408
        %v486 = vpop.f32.mrb[0].mxu0
        %v487 = vadd.f32 0.0, %v486
        %v488 = vpop.f32.mrb[0].mxu0
        %v489 = vpop.f32.mrb[0].mxu0
        %v490 = vadd.f32 0.0, %v489
        %v491 = vpop.f32.mrb[0].mxu0
        %492 = vmatprep.mubr.bf16.mxu0 0
        %493 = vmatmul.mubr.bf16.gmra.mrb[0].mxu0 %v411
        %v494 = vpop.f32.mrb[0].mxu0
        %v495 = vadd.f32 0.0, %v494
        %v496 = vpop.f32.mrb[0].mxu0
        %v497 = vpop.f32.mrb[0].mxu0
        %v498 = vadd.f32 0.0, %v497
        %v499 = vpop.f32.mrb[0].mxu0
        %500 = vmatprep.mubr.bf16.mxu0 0
        %501 = vmatmul.mubr.bf16.gmra.mrb[0].mxu0 %v414
        %v502 = vpop.f32.mrb[0].mxu0
        %v503 = vadd.f32 0.0, %v502
        %v504 = vpop.f32.mrb[0].mxu0
        %v505 = vpop.f32.mrb[0].mxu0
        %v506 = vadd.f32 0.0, %v505
        %v507 = vpop.f32.mrb[0].mxu0
        %508 = vdwg.mxu0
        %v509 = vsel %vm394, %v331, 0
        %v511 = vsel %vm394, %v332, 0
        %v513 = vsel %vm394, %v333, 0
        %v515 = vsel %vm394, %v334, 0
        %v517 = vsel %vm394, %v335, 0
        %v519 = vsel %vm394, %v336, 0
        %v521 = vsel %vm394, %v337, 0
        %v524 = vsel %vm416, %v278, 0
        %526 = vmatprep.subr.bf16.mxu0 0
        %527 = vmatpush1.bf16.msra.mxu0 %v524
        %528 = vmatprep.subr.bf16.mxu0 0
        %529 = vmatpush1.bf16.msra.mxu0 0
        %530 = vmatprep.subr.bf16.mxu0 0
        %531 = vmatpush1.bf16.msra.mxu0 0
        %532 = vmatprep.subr.bf16.mxu0 0
        %533 = vmatpush1.bf16.msra.mxu0 0
        %534 = vmatprep.subr.bf16.mxu0 0
        %535 = vmatpush1.bf16.msra.mxu0 0
        %536 = vmatprep.subr.bf16.mxu0 0
        %537 = vmatpush1.bf16.msra.mxu0 0
        %538 = vmatprep.subr.bf16.mxu0 0
        %539 = vmatpush1.bf16.msra.mxu0 0
        %540 = vmatprep.subr.bf16.mxu0 0
        %541 = vmatpush1.bf16.msra.mxu0 0
        %542 = vmatprep.subr.bf16.mxu0 0
        %543 = vmatpush1.bf16.msra.mxu0 0
        %544 = vmatprep.subr.bf16.mxu0 0
        %545 = vmatpush1.bf16.msra.mxu0 0
        %546 = vmatprep.subr.bf16.mxu0 0
        %547 = vmatpush1.bf16.msra.mxu0 0
        %548 = vmatprep.subr.bf16.mxu0 0
        %549 = vmatpush1.bf16.msra.mxu0 0
        %550 = vmatprep.subr.bf16.mxu0 0
        %551 = vmatpush1.bf16.msra.mxu0 0
        %552 = vmatprep.subr.bf16.mxu0 0
        %553 = vmatpush1.bf16.msra.mxu0 0
        %554 = vmatprep.subr.bf16.mxu0 0
        %555 = vmatpush1.bf16.msra.mxu0 0
        %556 = vmatprep.subr.bf16.mxu0 0
        %557 = vmatpush1.bf16.msra.mxu0 0
        %558 = vmatprep.mubr.bf16.mxu0 0
        %559 = vmatmul.mubr.bf16.gmra.mrb[0].mxu0 %v509
        %v560 = vpop.f32.mrb[0].mxu0
        %v561 = vadd.f32 %v455, %v560
        %v562 = vpop.f32.mrb[0].mxu0
        %v563 = vpop.f32.mrb[0].mxu0
        %v564 = vadd.f32 %v458, %v563
        %v565 = vpop.f32.mrb[0].mxu0
        %566 = vmatprep.mubr.bf16.mxu0 0
        %567 = vmatmul.mubr.bf16.gmra.mrb[0].mxu0 %v511
        %v568 = vpop.f32.mrb[0].mxu0
        %v569 = vadd.f32 %v463, %v568
        %v570 = vpop.f32.mrb[0].mxu0
        %v571 = vpop.f32.mrb[0].mxu0
        %v572 = vadd.f32 %v466, %v571
        %v573 = vpop.f32.mrb[0].mxu0
        %574 = vmatprep.mubr.bf16.mxu0 0
        %575 = vmatmul.mubr.bf16.gmra.mrb[0].mxu0 %v513
        %v576 = vpop.f32.mrb[0].mxu0
        %v577 = vadd.f32 %v471, %v576
        %v578 = vpop.f32.mrb[0].mxu0
        %v579 = vpop.f32.mrb[0].mxu0
        %v580 = vadd.f32 %v474, %v579
        %v581 = vpop.f32.mrb[0].mxu0
        %582 = vmatprep.mubr.bf16.mxu0 0
        %583 = vmatmul.mubr.bf16.gmra.mrb[0].mxu0 %v515
        %v584 = vpop.f32.mrb[0].mxu0
        %v585 = vadd.f32 %v479, %v584
        %v586 = vpop.f32.mrb[0].mxu0
        %v587 = vpop.f32.mrb[0].mxu0
        %v588 = vadd.f32 %v482, %v587
        %v589 = vpop.f32.mrb[0].mxu0
        %590 = vmatprep.mubr.bf16.mxu0 0
        %591 = vmatmul.mubr.bf16.gmra.mrb[0].mxu0 %v517
        %v592 = vpop.f32.mrb[0].mxu0
        %v593 = vadd.f32 %v487, %v592
        %v594 = vpop.f32.mrb[0].mxu0
        %v595 = vpop.f32.mrb[0].mxu0
        %v596 = vadd.f32 %v490, %v595
        %v597 = vpop.f32.mrb[0].mxu0
        %598 = vmatprep.mubr.bf16.mxu0 0
        %599 = vmatmul.mubr.bf16.gmra.mrb[0].mxu0 %v519
        %v600 = vpop.f32.mrb[0].mxu0
        %v601 = vadd.f32 %v495, %v600
        %v602 = vpop.f32.mrb[0].mxu0
        %v603 = vpop.f32.mrb[0].mxu0
        %v604 = vadd.f32 %v498, %v603
        %v605 = vpop.f32.mrb[0].mxu0
        %606 = vmatprep.mubr.bf16.mxu0 0
        %607 = vmatmul.mubr.bf16.gmra.mrb[0].mxu0 %v521
        %v608 = vpop.f32.mrb[0].mxu0
        %v609 = vadd.f32 %v503, %v608
        %v610 = vpop.f32.mrb[0].mxu0
        %v611 = vpop.f32.mrb[0].mxu0
        %v612 = vadd.f32 %v506, %v611
        %v613 = vpop.f32.mrb[0].mxu0
        %614 = vdwg.mxu0
        %vm615 = vcmask 1046528
        %v616 = vrot.slane %v331, 1
        %v617 = vrot.slane %v332, 1
        %v618 = vsel %vm615, %v616, %v617
        %v619 = vrot.slane %v333, 1
        %v620 = vsel %vm615, %v617, %v619
        %v621 = vrot.slane %v334, 1
        %v622 = vsel %vm615, %v619, %v621
        %v623 = vrot.slane %v335, 1
        %v624 = vsel %vm615, %v621, %v623
        %v625 = vrot.slane %v336, 1
        %v626 = vsel %vm615, %v623, %v625
        %v627 = vrot.slane %v337, 1
        %v628 = vsel %vm615, %v625, %v627
        %v630 = vsel %vm394, %v618, 0
        %v633 = vsel %vm394, %v620, 0
        %v636 = vsel %vm394, %v622, 0
        %v639 = vsel %vm394, %v624, 0
        %v642 = vsel %vm394, %v626, 0
        %v645 = vsel %vm394, %v628, 0
        %v648 = vsel %vm394, %v627, 0
        %v651 = vsel %vm416, %v280, 0
        %653 = vmatprep.subr.bf16.mxu0 0
        %654 = vmatpush1.bf16.msra.mxu0 %v651
        %655 = vmatprep.subr.bf16.mxu0 0
        %656 = vmatpush1.bf16.msra.mxu0 0
        %657 = vmatprep.subr.bf16.mxu0 0
        %658 = vmatpush1.bf16.msra.mxu0 0
        %659 = vmatprep.subr.bf16.mxu0 0
        %660 = vmatpush1.bf16.msra.mxu0 0
        %661 = vmatprep.subr.bf16.mxu0 0
        %662 = vmatpush1.bf16.msra.mxu0 0
        %663 = vmatprep.subr.bf16.mxu0 0
        %664 = vmatpush1.bf16.msra.mxu0 0
        %665 = vmatprep.subr.bf16.mxu0 0
        %666 = vmatpush1.bf16.msra.mxu0 0
        %667 = vmatprep.subr.bf16.mxu0 0
        %668 = vmatpush1.bf16.msra.mxu0 0
        %669 = vmatprep.subr.bf16.mxu0 0
        %670 = vmatpush1.bf16.msra.mxu0 0
        %671 = vmatprep.subr.bf16.mxu0 0
        %672 = vmatpush1.bf16.msra.mxu0 0
        %673 = vmatprep.subr.bf16.mxu0 0
        %674 = vmatpush1.bf16.msra.mxu0 0
        %675 = vmatprep.subr.bf16.mxu0 0
        %676 = vmatpush1.bf16.msra.mxu0 0
        %677 = vmatprep.subr.bf16.mxu0 0
        %678 = vmatpush1.bf16.msra.mxu0 0
        %679 = vmatprep.subr.bf16.mxu0 0
        %680 = vmatpush1.bf16.msra.mxu0 0
        %681 = vmatprep.subr.bf16.mxu0 0
        %682 = vmatpush1.bf16.msra.mxu0 0
        %683 = vmatprep.subr.bf16.mxu0 0
        %684 = vmatpush1.bf16.msra.mxu0 0
        %685 = vmatprep.mubr.bf16.mxu0 0
        %686 = vmatmul.mubr.bf16.gmra.mrb[0].mxu0 %v630
        %v687 = vpop.f32.mrb[0].mxu0
        %v688 = vadd.f32 0.0, %v687
        %v689 = vpop.f32.mrb[0].mxu0
        %v690 = vpop.f32.mrb[0].mxu0
        %v691 = vadd.f32 0.0, %v690
        %v692 = vpop.f32.mrb[0].mxu0
        %693 = vmatprep.mubr.bf16.mxu0 0
        %694 = vmatmul.mubr.bf16.gmra.mrb[0].mxu0 %v633
        %v695 = vpop.f32.mrb[0].mxu0
        %v696 = vadd.f32 0.0, %v695
        %v697 = vpop.f32.mrb[0].mxu0
        %v698 = vpop.f32.mrb[0].mxu0
        %v699 = vadd.f32 0.0, %v698
        %v700 = vpop.f32.mrb[0].mxu0
        %701 = vmatprep.mubr.bf16.mxu0 0
        %702 = vmatmul.mubr.bf16.gmra.mrb[0].mxu0 %v636
        %v703 = vpop.f32.mrb[0].mxu0
        %v704 = vadd.f32 0.0, %v703
        %v705 = vpop.f32.mrb[0].mxu0
        %v706 = vpop.f32.mrb[0].mxu0
        %v707 = vadd.f32 0.0, %v706
        %v708 = vpop.f32.mrb[0].mxu0
        %709 = vmatprep.mubr.bf16.mxu0 0
        %710 = vmatmul.mubr.bf16.gmra.mrb[0].mxu0 %v639
        %v711 = vpop.f32.mrb[0].mxu0
        %v712 = vadd.f32 0.0, %v711
        %v713 = vpop.f32.mrb[0].mxu0
        %v714 = vpop.f32.mrb[0].mxu0
        %v715 = vadd.f32 0.0, %v714
        %v716 = vpop.f32.mrb[0].mxu0
        %717 = vmatprep.mubr.bf16.mxu0 0
        %718 = vmatmul.mubr.bf16.gmra.mrb[0].mxu0 %v642
        %v719 = vpop.f32.mrb[0].mxu0
        %v720 = vadd.f32 0.0, %v719
        %v721 = vpop.f32.mrb[0].mxu0
        %v722 = vpop.f32.mrb[0].mxu0
        %v723 = vadd.f32 0.0, %v722
        %v724 = vpop.f32.mrb[0].mxu0
        %725 = vmatprep.mubr.bf16.mxu0 0
        %726 = vmatmul.mubr.bf16.gmra.mrb[0].mxu0 %v645
        %v727 = vpop.f32.mrb[0].mxu0
        %v728 = vadd.f32 0.0, %v727
        %v729 = vpop.f32.mrb[0].mxu0
        %v730 = vpop.f32.mrb[0].mxu0
        %v731 = vadd.f32 0.0, %v730
        %v732 = vpop.f32.mrb[0].mxu0
        %733 = vmatprep.mubr.bf16.mxu0 0
        %734 = vmatmul.mubr.bf16.gmra.mrb[0].mxu0 %v648
        %v735 = vpop.f32.mrb[0].mxu0
        %v736 = vadd.f32 0.0, %v735
        %v737 = vpop.f32.mrb[0].mxu0
        %v738 = vpop.f32.mrb[0].mxu0
        %v739 = vadd.f32 0.0, %v738
        %v740 = vpop.f32.mrb[0].mxu0
        %741 = vdwg.mxu0
        %v742 = vadd.f32 %v561, %v688
        %v743 = vadd.f32 %v564, %v691
        %v744 = vadd.f32 %v569, %v696
        %v745 = vadd.f32 %v572, %v699
        %v746 = vadd.f32 %v577, %v704
        %v747 = vadd.f32 %v580, %v707
        %v748 = vadd.f32 %v585, %v712
        %v749 = vadd.f32 %v588, %v715
        %v750 = vadd.f32 %v593, %v720
        %v751 = vadd.f32 %v596, %v723
        %v752 = vadd.f32 %v601, %v728
        %v753 = vadd.f32 %v604, %v731
        %v754 = vadd.f32 %v609, %v736
        %v755 = vadd.f32 %v612, %v739
        %vm756 = vsmask.f32 6400
        %v757 = vrot.slane %v340, 1
        %v758 = vrot.slane %v342, 2
        %v759 = vor.u32 %v757, %v758
        %v760 = vrot.slane %v351, 1
        %v761 = vrot.slane %v347, 2
        %v762 = vor.u32 %v760, %v761
        %v763 = vsel %vm756, %v759, %v762
        %v764 = vrot.slane %v359, 1
        %v765 = vrot.slane %v355, 2
        %v766 = vor.u32 %v764, %v765
        %v767 = vsel %vm756, %v762, %v766
        %v768 = vrot.slane %v367, 1
        %v769 = vrot.slane %v363, 2
        %v770 = vor.u32 %v768, %v769
        %v771 = vsel %vm756, %v766, %v770
        %v772 = vrot.slane %v375, 1
        %v773 = vrot.slane %v371, 2
        %v774 = vor.u32 %v772, %v773
        %v775 = vsel %vm756, %v770, %v774
        %v776 = vrot.slane %v383, 1
        %v777 = vrot.slane %v379, 2
        %v778 = vor.u32 %v776, %v777
        %v779 = vsel %vm756, %v774, %v778
        %v780 = vrot.slane %v391, 1
        %v781 = vrot.slane %v387, 2
        %v782 = vor.u32 %v780, %v781
        %v783 = vsel %vm756, %v778, %v782
        %v785 = vsel %vm394, %v763, 0
        %v788 = vsel %vm394, %v767, 0
        %v791 = vsel %vm394, %v771, 0
        %v794 = vsel %vm394, %v775, 0
        %v797 = vsel %vm394, %v779, 0
        %v800 = vsel %vm394, %v783, 0
        %v803 = vsel %vm394, %v782, 0
        %v806 = vsel %vm416, %v281, 0
        %808 = vmatprep.subr.bf16.mxu0 0
        %809 = vmatpush1.bf16.msra.mxu0 %v806
        %810 = vmatprep.subr.bf16.mxu0 0
        %811 = vmatpush1.bf16.msra.mxu0 0
        %812 = vmatprep.subr.bf16.mxu0 0
        %813 = vmatpush1.bf16.msra.mxu0 0
        %814 = vmatprep.subr.bf16.mxu0 0
        %815 = vmatpush1.bf16.msra.mxu0 0
        %816 = vmatprep.subr.bf16.mxu0 0
        %817 = vmatpush1.bf16.msra.mxu0 0
        %818 = vmatprep.subr.bf16.mxu0 0
        %819 = vmatpush1.bf16.msra.mxu0 0
        %820 = vmatprep.subr.bf16.mxu0 0
        %821 = vmatpush1.bf16.msra.mxu0 0
        %822 = vmatprep.subr.bf16.mxu0 0
        %823 = vmatpush1.bf16.msra.mxu0 0
        %824 = vmatprep.subr.bf16.mxu0 0
        %825 = vmatpush1.bf16.msra.mxu0 0
        %826 = vmatprep.subr.bf16.mxu0 0
        %827 = vmatpush1.bf16.msra.mxu0 0
        %828 = vmatprep.subr.bf16.mxu0 0
        %829 = vmatpush1.bf16.msra.mxu0 0
        %830 = vmatprep.subr.bf16.mxu0 0
        %831 = vmatpush1.bf16.msra.mxu0 0
        %832 = vmatprep.subr.bf16.mxu0 0
        %833 = vmatpush1.bf16.msra.mxu0 0
        %834 = vmatprep.subr.bf16.mxu0 0
        %835 = vmatpush1.bf16.msra.mxu0 0
        %836 = vmatprep.subr.bf16.mxu0 0
        %837 = vmatpush1.bf16.msra.mxu0 0
        %838 = vmatprep.subr.bf16.mxu0 0
        %839 = vmatpush1.bf16.msra.mxu0 0
        %840 = vmatprep.mubr.bf16.mxu0 0
        %841 = vmatmul.mubr.bf16.gmra.mrb[0].mxu0 %v785
        %v842 = vpop.f32.mrb[0].mxu0
        %v843 = vadd.f32 0.0, %v842
        %v844 = vpop.f32.mrb[0].mxu0
        %v845 = vpop.f32.mrb[0].mxu0
        %v846 = vadd.f32 0.0, %v845
        %v847 = vpop.f32.mrb[0].mxu0
        %848 = vmatprep.mubr.bf16.mxu0 0
        %849 = vmatmul.mubr.bf16.gmra.mrb[0].mxu0 %v788
        %v850 = vpop.f32.mrb[0].mxu0
        %v851 = vadd.f32 0.0, %v850
        %v852 = vpop.f32.mrb[0].mxu0
        %v853 = vpop.f32.mrb[0].mxu0
        %v854 = vadd.f32 0.0, %v853
        %v855 = vpop.f32.mrb[0].mxu0
        %856 = vmatprep.mubr.bf16.mxu0 0
        %857 = vmatmul.mubr.bf16.gmra.mrb[0].mxu0 %v791
        %v858 = vpop.f32.mrb[0].mxu0
        %v859 = vadd.f32 0.0, %v858
        %v860 = vpop.f32.mrb[0].mxu0
        %v861 = vpop.f32.mrb[0].mxu0
        %v862 = vadd.f32 0.0, %v861
        %v863 = vpop.f32.mrb[0].mxu0
        %864 = vmatprep.mubr.bf16.mxu0 0
        %865 = vmatmul.mubr.bf16.gmra.mrb[0].mxu0 %v794
        %v866 = vpop.f32.mrb[0].mxu0
        %v867 = vadd.f32 0.0, %v866
        %v868 = vpop.f32.mrb[0].mxu0
        %v869 = vpop.f32.mrb[0].mxu0
        %v870 = vadd.f32 0.0, %v869
        %v871 = vpop.f32.mrb[0].mxu0
        %872 = vmatprep.mubr.bf16.mxu0 0
        %873 = vmatmul.mubr.bf16.gmra.mrb[0].mxu0 %v797
        %v874 = vpop.f32.mrb[0].mxu0
        %v875 = vadd.f32 0.0, %v874
        %v876 = vpop.f32.mrb[0].mxu0
        %v877 = vpop.f32.mrb[0].mxu0
        %v878 = vadd.f32 0.0, %v877
        %v879 = vpop.f32.mrb[0].mxu0
        %880 = vmatprep.mubr.bf16.mxu0 0
        %881 = vmatmul.mubr.bf16.gmra.mrb[0].mxu0 %v800
        %v882 = vpop.f32.mrb[0].mxu0
        %v883 = vadd.f32 0.0, %v882
        %v884 = vpop.f32.mrb[0].mxu0
        %v885 = vpop.f32.mrb[0].mxu0
        %v886 = vadd.f32 0.0, %v885
        %v887 = vpop.f32.mrb[0].mxu0
        %888 = vmatprep.mubr.bf16.mxu0 0
        %889 = vmatmul.mubr.bf16.gmra.mrb[0].mxu0 %v803
        %v890 = vpop.f32.mrb[0].mxu0
        %v891 = vadd.f32 0.0, %v890
        %v892 = vpop.f32.mrb[0].mxu0
        %v893 = vpop.f32.mrb[0].mxu0
        %v894 = vadd.f32 0.0, %v893
        %v895 = vpop.f32.mrb[0].mxu0
        %896 = vdwg.mxu0
        %v897 = vadd.f32 %v742, %v843
        %v898 = vadd.f32 %v743, %v846
        %v899 = vadd.f32 %v744, %v851
        %v900 = vadd.f32 %v745, %v854
        %v901 = vadd.f32 %v746, %v859
        %v902 = vadd.f32 %v747, %v862
        %v903 = vadd.f32 %v748, %v867
        %v904 = vadd.f32 %v749, %v870
        %v905 = vadd.f32 %v750, %v875
        %v906 = vadd.f32 %v751, %v878
        %v907 = vadd.f32 %v752, %v883
        %v908 = vadd.f32 %v753, %v886
        %v909 = vadd.f32 %v754, %v891
        %v910 = vadd.f32 %v755, %v894
        %vm911 = vcmask 1045504
        %v912 = vrot.slane %v331, 2
        %v913 = vrot.slane %v332, 2
        %v914 = vsel %vm911, %v912, %v913
        %v915 = vrot.slane %v333, 2
        %v916 = vsel %vm911, %v913, %v915
        %v917 = vrot.slane %v334, 2
        %v918 = vsel %vm911, %v915, %v917
        %v919 = vrot.slane %v335, 2
        %v920 = vsel %vm911, %v917, %v919
        %v921 = vrot.slane %v336, 2
        %v922 = vsel %vm911, %v919, %v921
        %v923 = vrot.slane %v337, 2
        %v924 = vsel %vm911, %v921, %v923
        %v926 = vsel %vm394, %v914, 0
        %v929 = vsel %vm394, %v916, 0
        %v932 = vsel %vm394, %v918, 0
        %v935 = vsel %vm394, %v920, 0
        %v938 = vsel %vm394, %v922, 0
        %v941 = vsel %vm394, %v924, 0
        %v944 = vsel %vm394, %v923, 0
        %v947 = vsel %vm416, %v282, 0
        %949 = vmatprep.subr.bf16.mxu0 0
        %950 = vmatpush1.bf16.msra.mxu0 %v947
        %951 = vmatprep.subr.bf16.mxu0 0
        %952 = vmatpush1.bf16.msra.mxu0 0
        %953 = vmatprep.subr.bf16.mxu0 0
        %954 = vmatpush1.bf16.msra.mxu0 0
        %955 = vmatprep.subr.bf16.mxu0 0
        %956 = vmatpush1.bf16.msra.mxu0 0
        %957 = vmatprep.subr.bf16.mxu0 0
        %958 = vmatpush1.bf16.msra.mxu0 0
        %959 = vmatprep.subr.bf16.mxu0 0
        %960 = vmatpush1.bf16.msra.mxu0 0
        %961 = vmatprep.subr.bf16.mxu0 0
        %962 = vmatpush1.bf16.msra.mxu0 0
        %963 = vmatprep.subr.bf16.mxu0 0
        %964 = vmatpush1.bf16.msra.mxu0 0
        %965 = vmatprep.subr.bf16.mxu0 0
        %966 = vmatpush1.bf16.msra.mxu0 0
        %967 = vmatprep.subr.bf16.mxu0 0
        %968 = vmatpush1.bf16.msra.mxu0 0
        %969 = vmatprep.subr.bf16.mxu0 0
        %970 = vmatpush1.bf16.msra.mxu0 0
        %971 = vmatprep.subr.bf16.mxu0 0
        %972 = vmatpush1.bf16.msra.mxu0 0
        %973 = vmatprep.subr.bf16.mxu0 0
        %974 = vmatpush1.bf16.msra.mxu0 0
        %975 = vmatprep.subr.bf16.mxu0 0
        %976 = vmatpush1.bf16.msra.mxu0 0
        %977 = vmatprep.subr.bf16.mxu0 0
        %978 = vmatpush1.bf16.msra.mxu0 0
        %979 = vmatprep.subr.bf16.mxu0 0
        %980 = vmatpush1.bf16.msra.mxu0 0
        %981 = vmatprep.mubr.bf16.mxu0 0
        %982 = vmatmul.mubr.bf16.gmra.mrb[0].mxu0 %v926
        %v983 = vpop.f32.mrb[0].mxu0
        %v984 = vadd.f32 0.0, %v983
        %v985 = vpop.f32.mrb[0].mxu0
        %v986 = vpop.f32.mrb[0].mxu0
        %v987 = vadd.f32 0.0, %v986
        %v988 = vpop.f32.mrb[0].mxu0
        %989 = vmatprep.mubr.bf16.mxu0 0
        %990 = vmatmul.mubr.bf16.gmra.mrb[0].mxu0 %v929
        %v991 = vpop.f32.mrb[0].mxu0
        %v992 = vadd.f32 0.0, %v991
        %v993 = vpop.f32.mrb[0].mxu0
        %v994 = vpop.f32.mrb[0].mxu0
        %v995 = vadd.f32 0.0, %v994
        %v996 = vpop.f32.mrb[0].mxu0
        %997 = vmatprep.mubr.bf16.mxu0 0
        %998 = vmatmul.mubr.bf16.gmra.mrb[0].mxu0 %v932
        %v999 = vpop.f32.mrb[0].mxu0
        %v1000 = vadd.f32 0.0, %v999
        %v1001 = vpop.f32.mrb[0].mxu0
        %v1002 = vpop.f32.mrb[0].mxu0
        %v1003 = vadd.f32 0.0, %v1002
        %v1004 = vpop.f32.mrb[0].mxu0
        %1005 = vmatprep.mubr.bf16.mxu0 0
        %1006 = vmatmul.mubr.bf16.gmra.mrb[0].mxu0 %v935
        %v1007 = vpop.f32.mrb[0].mxu0
        %v1008 = vadd.f32 0.0, %v1007
        %v1009 = vpop.f32.mrb[0].mxu0
        %v1010 = vpop.f32.mrb[0].mxu0
        %v1011 = vadd.f32 0.0, %v1010
        %v1012 = vpop.f32.mrb[0].mxu0
        %1013 = vmatprep.mubr.bf16.mxu0 0
        %1014 = vmatmul.mubr.bf16.gmra.mrb[0].mxu0 %v938
        %v1015 = vpop.f32.mrb[0].mxu0
        %v1016 = vadd.f32 0.0, %v1015
        %v1017 = vpop.f32.mrb[0].mxu0
        %v1018 = vpop.f32.mrb[0].mxu0
        %v1019 = vadd.f32 0.0, %v1018
        %v1020 = vpop.f32.mrb[0].mxu0
        %1021 = vmatprep.mubr.bf16.mxu0 0
        %1022 = vmatmul.mubr.bf16.gmra.mrb[0].mxu0 %v941
        %v1023 = vpop.f32.mrb[0].mxu0
        %v1024 = vadd.f32 0.0, %v1023
        %v1025 = vpop.f32.mrb[0].mxu0
        %v1026 = vpop.f32.mrb[0].mxu0
        %v1027 = vadd.f32 0.0, %v1026
        %v1028 = vpop.f32.mrb[0].mxu0
        %1029 = vmatprep.mubr.bf16.mxu0 0
        %1030 = vmatmul.mubr.bf16.gmra.mrb[0].mxu0 %v944
        %v1031 = vpop.f32.mrb[0].mxu0
        %v1032 = vadd.f32 0.0, %v1031
        %v1033 = vpop.f32.mrb[0].mxu0
        %v1034 = vpop.f32.mrb[0].mxu0
        %v1035 = vadd.f32 0.0, %v1034
        %v1036 = vpop.f32.mrb[0].mxu0
        %1037 = vdwg.mxu0
        %v1038 = vadd.f32 %v897, %v984
        %v1039 = vadd.f32 %v898, %v987
        %v1040 = vadd.f32 %v899, %v992
        %v1041 = vadd.f32 %v900, %v995
        %v1042 = vadd.f32 %v901, %v1000
        %v1043 = vadd.f32 %v902, %v1003
        %v1044 = vadd.f32 %v903, %v1008
        %v1045 = vadd.f32 %v904, %v1011
        %v1046 = vadd.f32 %v905, %v1016
        %v1047 = vadd.f32 %v906, %v1019
        %v1048 = vadd.f32 %v907, %v1024
        %v1049 = vadd.f32 %v908, %v1027
        %v1050 = vadd.f32 %v909, %v1032
        %v1051 = vadd.f32 %v910, %v1035
        %vm1052 = vsmask.f32 5376
        %v1053 = vrot.slane %v340, 2
        %v1054 = vrot.slane %v342, 3
        %v1055 = vor.u32 %v1053, %v1054
        %v1056 = vrot.slane %v351, 2
        %v1057 = vrot.slane %v347, 3
        %v1058 = vor.u32 %v1056, %v1057
        %v1059 = vsel %vm1052, %v1055, %v1058
        %v1060 = vrot.slane %v359, 2
        %v1061 = vrot.slane %v355, 3
        %v1062 = vor.u32 %v1060, %v1061
        %v1063 = vsel %vm1052, %v1058, %v1062
        %v1064 = vrot.slane %v367, 2
        %v1065 = vrot.slane %v363, 3
        %v1066 = vor.u32 %v1064, %v1065
        %v1067 = vsel %vm1052, %v1062, %v1066
        %v1068 = vrot.slane %v375, 2
        %v1069 = vrot.slane %v371, 3
        %v1070 = vor.u32 %v1068, %v1069
        %v1071 = vsel %vm1052, %v1066, %v1070
        %v1072 = vrot.slane %v383, 2
        %v1073 = vrot.slane %v379, 3
        %v1074 = vor.u32 %v1072, %v1073
        %v1075 = vsel %vm1052, %v1070, %v1074
        %v1076 = vrot.slane %v391, 2
        %v1077 = vrot.slane %v387, 3
        %v1078 = vor.u32 %v1076, %v1077
        %v1079 = vsel %vm1052, %v1074, %v1078
        %v1081 = vsel %vm394, %v1059, 0
        %v1084 = vsel %vm394, %v1063, 0
        %v1087 = vsel %vm394, %v1067, 0
        %v1090 = vsel %vm394, %v1071, 0
        %v1093 = vsel %vm394, %v1075, 0
        %v1096 = vsel %vm394, %v1079, 0
        %v1099 = vsel %vm394, %v1078, 0
        %v1102 = vsel %vm416, %v283, 0
        %1104 = vmatprep.subr.bf16.mxu0 0
        %1105 = vmatpush1.bf16.msra.mxu0 %v1102
        %1106 = vmatprep.subr.bf16.mxu0 0
        %1107 = vmatpush1.bf16.msra.mxu0 0
        %1108 = vmatprep.subr.bf16.mxu0 0
        %1109 = vmatpush1.bf16.msra.mxu0 0
        %1110 = vmatprep.subr.bf16.mxu0 0
        %1111 = vmatpush1.bf16.msra.mxu0 0
        %1112 = vmatprep.subr.bf16.mxu0 0
        %1113 = vmatpush1.bf16.msra.mxu0 0
        %1114 = vmatprep.subr.bf16.mxu0 0
        %1115 = vmatpush1.bf16.msra.mxu0 0
        %1116 = vmatprep.subr.bf16.mxu0 0
        %1117 = vmatpush1.bf16.msra.mxu0 0
        %1118 = vmatprep.subr.bf16.mxu0 0
        %1119 = vmatpush1.bf16.msra.mxu0 0
        %1120 = vmatprep.subr.bf16.mxu0 0
        %1121 = vmatpush1.bf16.msra.mxu0 0
        %1122 = vmatprep.subr.bf16.mxu0 0
        %1123 = vmatpush1.bf16.msra.mxu0 0
        %1124 = vmatprep.subr.bf16.mxu0 0
        %1125 = vmatpush1.bf16.msra.mxu0 0
        %1126 = vmatprep.subr.bf16.mxu0 0
        %1127 = vmatpush1.bf16.msra.mxu0 0
        %1128 = vmatprep.subr.bf16.mxu0 0
        %1129 = vmatpush1.bf16.msra.mxu0 0
        %1130 = vmatprep.subr.bf16.mxu0 0
        %1131 = vmatpush1.bf16.msra.mxu0 0
        %1132 = vmatprep.subr.bf16.mxu0 0
        %1133 = vmatpush1.bf16.msra.mxu0 0
        %1134 = vmatprep.subr.bf16.mxu0 0
        %1135 = vmatpush1.bf16.msra.mxu0 0
        %1136 = vmatprep.mubr.bf16.mxu0 0
        %1137 = vmatmul.mubr.bf16.gmra.mrb[0].mxu0 %v1081
        %v1138 = vpop.f32.mrb[0].mxu0
        %v1139 = vadd.f32 0.0, %v1138
        %v1140 = vpop.f32.mrb[0].mxu0
        %v1141 = vpop.f32.mrb[0].mxu0
        %v1142 = vadd.f32 0.0, %v1141
        %v1143 = vpop.f32.mrb[0].mxu0
        %1144 = vmatprep.mubr.bf16.mxu0 0
        %1145 = vmatmul.mubr.bf16.gmra.mrb[0].mxu0 %v1084
        %v1146 = vpop.f32.mrb[0].mxu0
        %v1147 = vadd.f32 0.0, %v1146
        %v1148 = vpop.f32.mrb[0].mxu0
        %v1149 = vpop.f32.mrb[0].mxu0
        %v1150 = vadd.f32 0.0, %v1149
        %v1151 = vpop.f32.mrb[0].mxu0
        %1152 = vmatprep.mubr.bf16.mxu0 0
        %1153 = vmatmul.mubr.bf16.gmra.mrb[0].mxu0 %v1087
        %v1154 = vpop.f32.mrb[0].mxu0
        %v1155 = vadd.f32 0.0, %v1154
        %v1156 = vpop.f32.mrb[0].mxu0
        %v1157 = vpop.f32.mrb[0].mxu0
        %v1158 = vadd.f32 0.0, %v1157
        %v1159 = vpop.f32.mrb[0].mxu0
        %1160 = vmatprep.mubr.bf16.mxu0 0
        %1161 = vmatmul.mubr.bf16.gmra.mrb[0].mxu0 %v1090
        %v1162 = vpop.f32.mrb[0].mxu0
        %v1163 = vadd.f32 0.0, %v1162
        %v1164 = vpop.f32.mrb[0].mxu0
        %v1165 = vpop.f32.mrb[0].mxu0
        %v1166 = vadd.f32 0.0, %v1165
        %v1167 = vpop.f32.mrb[0].mxu0
        %1168 = vmatprep.mubr.bf16.mxu0 0
        %1169 = vmatmul.mubr.bf16.gmra.mrb[0].mxu0 %v1093
        %v1170 = vpop.f32.mrb[0].mxu0
        %v1171 = vadd.f32 0.0, %v1170
        %v1172 = vpop.f32.mrb[0].mxu0
        %v1173 = vpop.f32.mrb[0].mxu0
        %v1174 = vadd.f32 0.0, %v1173
        %v1175 = vpop.f32.mrb[0].mxu0
        %1176 = vmatprep.mubr.bf16.mxu0 0
        %1177 = vmatmul.mubr.bf16.gmra.mrb[0].mxu0 %v1096
        %v1178 = vpop.f32.mrb[0].mxu0
        %v1179 = vadd.f32 0.0, %v1178
        %v1180 = vpop.f32.mrb[0].mxu0
        %v1181 = vpop.f32.mrb[0].mxu0
        %v1182 = vadd.f32 0.0, %v1181
        %v1183 = vpop.f32.mrb[0].mxu0
        %1184 = vmatprep.mubr.bf16.mxu0 0
        %1185 = vmatmul.mubr.bf16.gmra.mrb[0].mxu0 %v1099
        %v1186 = vpop.f32.mrb[0].mxu0
        %v1187 = vadd.f32 0.0, %v1186
        %v1188 = vpop.f32.mrb[0].mxu0
        %v1189 = vpop.f32.mrb[0].mxu0
        %v1190 = vadd.f32 0.0, %v1189
        %v1191 = vpop.f32.mrb[0].mxu0
        %1192 = vdwg.mxu0
        %v1193 = vadd.f32 %v1038, %v1139
        %v1194 = vadd.f32 %v1039, %v1142
        %v1195 = vadd.f32 %v1040, %v1147
        %v1196 = vadd.f32 %v1041, %v1150
        %v1197 = vadd.f32 %v1042, %v1155
        %v1198 = vadd.f32 %v1043, %v1158
        %v1199 = vadd.f32 %v1044, %v1163
        %v1200 = vadd.f32 %v1045, %v1166
        %v1201 = vadd.f32 %v1046, %v1171
        %v1202 = vadd.f32 %v1047, %v1174
        %v1203 = vadd.f32 %v1048, %v1179
        %v1204 = vadd.f32 %v1049, %v1182
        %v1205 = vadd.f32 %v1050, %v1187
        %v1206 = vadd.f32 %v1051, %v1190
        %vm1207 = vcmask 1044480
        %v1208 = vrot.slane %v331, 3
        %v1209 = vrot.slane %v332, 3
        %v1210 = vsel %vm1207, %v1208, %v1209
        %v1211 = vrot.slane %v333, 3
        %v1212 = vsel %vm1207, %v1209, %v1211
        %v1213 = vrot.slane %v334, 3
        %v1214 = vsel %vm1207, %v1211, %v1213
        %v1215 = vrot.slane %v335, 3
        %v1216 = vsel %vm1207, %v1213, %v1215
        %v1217 = vrot.slane %v336, 3
        %v1218 = vsel %vm1207, %v1215, %v1217
        %v1219 = vrot.slane %v337, 3
        %v1220 = vsel %vm1207, %v1217, %v1219
        %v1222 = vsel %vm394, %v1210, 0
        %v1225 = vsel %vm394, %v1212, 0
        %v1228 = vsel %vm394, %v1214, 0
        %v1231 = vsel %vm394, %v1216, 0
        %v1234 = vsel %vm394, %v1218, 0
        %v1237 = vsel %vm394, %v1220, 0
        %v1240 = vsel %vm394, %v1219, 0
        %v1243 = vsel %vm416, %v284, 0
        %1245 = vmatprep.subr.bf16.mxu0 0
        %1246 = vmatpush1.bf16.msra.mxu0 %v1243
        %1247 = vmatprep.subr.bf16.mxu0 0
        %1248 = vmatpush1.bf16.msra.mxu0 0
        %1249 = vmatprep.subr.bf16.mxu0 0
        %1250 = vmatpush1.bf16.msra.mxu0 0
        %1251 = vmatprep.subr.bf16.mxu0 0
        %1252 = vmatpush1.bf16.msra.mxu0 0
        %1253 = vmatprep.subr.bf16.mxu0 0
        %1254 = vmatpush1.bf16.msra.mxu0 0
        %1255 = vmatprep.subr.bf16.mxu0 0
        %1256 = vmatpush1.bf16.msra.mxu0 0
        %1257 = vmatprep.subr.bf16.mxu0 0
        %1258 = vmatpush1.bf16.msra.mxu0 0
        %1259 = vmatprep.subr.bf16.mxu0 0
        %1260 = vmatpush1.bf16.msra.mxu0 0
        %1261 = vmatprep.subr.bf16.mxu0 0
        %1262 = vmatpush1.bf16.msra.mxu0 0
        %1263 = vmatprep.subr.bf16.mxu0 0
        %1264 = vmatpush1.bf16.msra.mxu0 0
        %1265 = vmatprep.subr.bf16.mxu0 0
        %1266 = vmatpush1.bf16.msra.mxu0 0
        %1267 = vmatprep.subr.bf16.mxu0 0
        %1268 = vmatpush1.bf16.msra.mxu0 0
        %1269 = vmatprep.subr.bf16.mxu0 0
        %1270 = vmatpush1.bf16.msra.mxu0 0
        %1271 = vmatprep.subr.bf16.mxu0 0
        %1272 = vmatpush1.bf16.msra.mxu0 0
        %1273 = vmatprep.subr.bf16.mxu0 0
        %1274 = vmatpush1.bf16.msra.mxu0 0
        %1275 = vmatprep.subr.bf16.mxu0 0
        %1276 = vmatpush1.bf16.msra.mxu0 0
        %1277 = vmatprep.mubr.bf16.mxu0 0
        %1278 = vmatmul.mubr.bf16.gmra.mrb[0].mxu0 %v1222
        %v1279 = vpop.f32.mrb[0].mxu0
        %v1280 = vadd.f32 0.0, %v1279
        %v1281 = vpop.f32.mrb[0].mxu0
        %v1282 = vpop.f32.mrb[0].mxu0
        %v1283 = vadd.f32 0.0, %v1282
        %v1284 = vpop.f32.mrb[0].mxu0
        %1285 = vmatprep.mubr.bf16.mxu0 0
        %1286 = vmatmul.mubr.bf16.gmra.mrb[0].mxu0 %v1225
        %v1287 = vpop.f32.mrb[0].mxu0
        %v1288 = vadd.f32 0.0, %v1287
        %v1289 = vpop.f32.mrb[0].mxu0
        %v1290 = vpop.f32.mrb[0].mxu0
        %v1291 = vadd.f32 0.0, %v1290
        %v1292 = vpop.f32.mrb[0].mxu0
        %1293 = vmatprep.mubr.bf16.mxu0 0
        %1294 = vmatmul.mubr.bf16.gmra.mrb[0].mxu0 %v1228
        %v1295 = vpop.f32.mrb[0].mxu0
        %v1296 = vadd.f32 0.0, %v1295
        %v1297 = vpop.f32.mrb[0].mxu0
        %v1298 = vpop.f32.mrb[0].mxu0
        %v1299 = vadd.f32 0.0, %v1298
        %v1300 = vpop.f32.mrb[0].mxu0
        %1301 = vmatprep.mubr.bf16.mxu0 0
        %1302 = vmatmul.mubr.bf16.gmra.mrb[0].mxu0 %v1231
        %v1303 = vpop.f32.mrb[0].mxu0
        %v1304 = vadd.f32 0.0, %v1303
        %v1305 = vpop.f32.mrb[0].mxu0
        %v1306 = vpop.f32.mrb[0].mxu0
        %v1307 = vadd.f32 0.0, %v1306
        %v1308 = vpop.f32.mrb[0].mxu0
        %1309 = vmatprep.mubr.bf16.mxu0 0
        %1310 = vmatmul.mubr.bf16.gmra.mrb[0].mxu0 %v1234
        %v1311 = vpop.f32.mrb[0].mxu0
        %v1312 = vadd.f32 0.0, %v1311
        %v1313 = vpop.f32.mrb[0].mxu0
        %v1314 = vpop.f32.mrb[0].mxu0
        %v1315 = vadd.f32 0.0, %v1314
        %v1316 = vpop.f32.mrb[0].mxu0
        %1317 = vmatprep.mubr.bf16.mxu0 0
        %1318 = vmatmul.mubr.bf16.gmra.mrb[0].mxu0 %v1237
        %v1319 = vpop.f32.mrb[0].mxu0
        %v1320 = vadd.f32 0.0, %v1319
        %v1321 = vpop.f32.mrb[0].mxu0
        %v1322 = vpop.f32.mrb[0].mxu0
        %v1323 = vadd.f32 0.0, %v1322
        %v1324 = vpop.f32.mrb[0].mxu0
        %1325 = vmatprep.mubr.bf16.mxu0 0
        %1326 = vmatmul.mubr.bf16.gmra.mrb[0].mxu0 %v1240
        %v1327 = vpop.f32.mrb[0].mxu0
        %v1328 = vadd.f32 0.0, %v1327
        %v1329 = vpop.f32.mrb[0].mxu0
        %v1330 = vpop.f32.mrb[0].mxu0
        %v1331 = vadd.f32 0.0, %v1330
        %v1332 = vpop.f32.mrb[0].mxu0
        %1333 = vdwg.mxu0
        %v1334 = vadd.f32 %v1193, %v1280
        %v1335 = vadd.f32 %v1194, %v1283
        %v1336 = vadd.f32 %v1195, %v1288
        %v1337 = vadd.f32 %v1196, %v1291
        %v1338 = vadd.f32 %v1197, %v1296
        %v1339 = vadd.f32 %v1198, %v1299
        %v1340 = vadd.f32 %v1199, %v1304
        %v1341 = vadd.f32 %v1200, %v1307
        %v1342 = vadd.f32 %v1201, %v1312
        %v1343 = vadd.f32 %v1202, %v1315
        %v1344 = vadd.f32 %v1203, %v1320
        %v1345 = vadd.f32 %v1204, %v1323
        %v1346 = vadd.f32 %v1205, %v1328
        %v1347 = vadd.f32 %v1206, %v1331
        %vm1348 = vsmask.f32 4352
        %v1349 = vrot.slane %v340, 3
        %v1350 = vrot.slane %v342, 4
        %v1351 = vor.u32 %v1349, %v1350
        %v1352 = vrot.slane %v351, 3
        %v1353 = vrot.slane %v347, 4
        %v1354 = vor.u32 %v1352, %v1353
        %v1355 = vsel %vm1348, %v1351, %v1354
        %v1356 = vrot.slane %v359, 3
        %v1357 = vrot.slane %v355, 4
        %v1358 = vor.u32 %v1356, %v1357
        %v1359 = vsel %vm1348, %v1354, %v1358
        %v1360 = vrot.slane %v367, 3
        %v1361 = vrot.slane %v363, 4
        %v1362 = vor.u32 %v1360, %v1361
        %v1363 = vsel %vm1348, %v1358, %v1362
        %v1364 = vrot.slane %v375, 3
        %v1365 = vrot.slane %v371, 4
        %v1366 = vor.u32 %v1364, %v1365
        %v1367 = vsel %vm1348, %v1362, %v1366
        %v1368 = vrot.slane %v383, 3
        %v1369 = vrot.slane %v379, 4
        %v1370 = vor.u32 %v1368, %v1369
        %v1371 = vsel %vm1348, %v1366, %v1370
        %v1372 = vrot.slane %v391, 3
        %v1373 = vrot.slane %v387, 4
        %v1374 = vor.u32 %v1372, %v1373
        %v1375 = vsel %vm1348, %v1370, %v1374
        %v1377 = vsel %vm394, %v1355, 0
        %v1380 = vsel %vm394, %v1359, 0
        %v1383 = vsel %vm394, %v1363, 0
        %v1386 = vsel %vm394, %v1367, 0
        %v1389 = vsel %vm394, %v1371, 0
        %v1392 = vsel %vm394, %v1375, 0
        %v1395 = vsel %vm394, %v1374, 0
        %v1398 = vsel %vm416, %v285, 0
        %1400 = vmatprep.subr.bf16.mxu0 0
        %1401 = vmatpush1.bf16.msra.mxu0 %v1398
        %1402 = vmatprep.subr.bf16.mxu0 0
        %1403 = vmatpush1.bf16.msra.mxu0 0
        %1404 = vmatprep.subr.bf16.mxu0 0
        %1405 = vmatpush1.bf16.msra.mxu0 0
        %1406 = vmatprep.subr.bf16.mxu0 0
        %1407 = vmatpush1.bf16.msra.mxu0 0
        %1408 = vmatprep.subr.bf16.mxu0 0
        %1409 = vmatpush1.bf16.msra.mxu0 0
        %1410 = vmatprep.subr.bf16.mxu0 0
        %1411 = vmatpush1.bf16.msra.mxu0 0
        %1412 = vmatprep.subr.bf16.mxu0 0
        %1413 = vmatpush1.bf16.msra.mxu0 0
        %1414 = vmatprep.subr.bf16.mxu0 0
        %1415 = vmatpush1.bf16.msra.mxu0 0
        %1416 = vmatprep.subr.bf16.mxu0 0
        %1417 = vmatpush1.bf16.msra.mxu0 0
        %1418 = vmatprep.subr.bf16.mxu0 0
        %1419 = vmatpush1.bf16.msra.mxu0 0
        %1420 = vmatprep.subr.bf16.mxu0 0
        %1421 = vmatpush1.bf16.msra.mxu0 0
        %1422 = vmatprep.subr.bf16.mxu0 0
        %1423 = vmatpush1.bf16.msra.mxu0 0
        %1424 = vmatprep.subr.bf16.mxu0 0
        %1425 = vmatpush1.bf16.msra.mxu0 0
        %1426 = vmatprep.subr.bf16.mxu0 0
        %1427 = vmatpush1.bf16.msra.mxu0 0
        %1428 = vmatprep.subr.bf16.mxu0 0
        %1429 = vmatpush1.bf16.msra.mxu0 0
        %1430 = vmatprep.subr.bf16.mxu0 0
        %1431 = vmatpush1.bf16.msra.mxu0 0
        %1432 = vmatprep.mubr.bf16.mxu0 0
        %1433 = vmatmul.mubr.bf16.gmra.mrb[0].mxu0 %v1377
        %v1434 = vpop.f32.mrb[0].mxu0
        %v1435 = vadd.f32 0.0, %v1434
        %v1436 = vpop.f32.mrb[0].mxu0
        %v1437 = vpop.f32.mrb[0].mxu0
        %v1438 = vadd.f32 0.0, %v1437
        %v1439 = vpop.f32.mrb[0].mxu0
        %1440 = vmatprep.mubr.bf16.mxu0 0
        %1441 = vmatmul.mubr.bf16.gmra.mrb[0].mxu0 %v1380
        %v1442 = vpop.f32.mrb[0].mxu0
        %v1443 = vadd.f32 0.0, %v1442
        %v1444 = vpop.f32.mrb[0].mxu0
        %v1445 = vpop.f32.mrb[0].mxu0
        %v1446 = vadd.f32 0.0, %v1445
        %v1447 = vpop.f32.mrb[0].mxu0
        %1448 = vmatprep.mubr.bf16.mxu0 0
        %1449 = vmatmul.mubr.bf16.gmra.mrb[0].mxu0 %v1383
        %v1450 = vpop.f32.mrb[0].mxu0
        %v1451 = vadd.f32 0.0, %v1450
        %v1452 = vpop.f32.mrb[0].mxu0
        %v1453 = vpop.f32.mrb[0].mxu0
        %v1454 = vadd.f32 0.0, %v1453
        %v1455 = vpop.f32.mrb[0].mxu0
        %1456 = vmatprep.mubr.bf16.mxu0 0
        %1457 = vmatmul.mubr.bf16.gmra.mrb[0].mxu0 %v1386
        %v1458 = vpop.f32.mrb[0].mxu0
        %v1459 = vadd.f32 0.0, %v1458
        %v1460 = vpop.f32.mrb[0].mxu0
        %v1461 = vpop.f32.mrb[0].mxu0
        %v1462 = vadd.f32 0.0, %v1461
        %v1463 = vpop.f32.mrb[0].mxu0
        %1464 = vmatprep.mubr.bf16.mxu0 0
        %1465 = vmatmul.mubr.bf16.gmra.mrb[0].mxu0 %v1389
        %v1466 = vpop.f32.mrb[0].mxu0
        %v1467 = vadd.f32 0.0, %v1466
        %v1468 = vpop.f32.mrb[0].mxu0
        %v1469 = vpop.f32.mrb[0].mxu0
        %v1470 = vadd.f32 0.0, %v1469
        %v1471 = vpop.f32.mrb[0].mxu0
        %1472 = vmatprep.mubr.bf16.mxu0 0
        %1473 = vmatmul.mubr.bf16.gmra.mrb[0].mxu0 %v1392
        %v1474 = vpop.f32.mrb[0].mxu0
        %v1475 = vadd.f32 0.0, %v1474
        %v1476 = vpop.f32.mrb[0].mxu0
        %v1477 = vpop.f32.mrb[0].mxu0
        %v1478 = vadd.f32 0.0, %v1477
        %v1479 = vpop.f32.mrb[0].mxu0
        %1480 = vmatprep.mubr.bf16.mxu0 0
        %1481 = vmatmul.mubr.bf16.gmra.mrb[0].mxu0 %v1395
        %v1482 = vpop.f32.mrb[0].mxu0
        %v1483 = vadd.f32 0.0, %v1482
        %v1484 = vpop.f32.mrb[0].mxu0
        %v1485 = vpop.f32.mrb[0].mxu0
        %v1486 = vadd.f32 0.0, %v1485
        %v1487 = vpop.f32.mrb[0].mxu0
        %1488 = vdwg.mxu0
        %v1489 = vadd.f32 %v1334, %v1435
        %v1490 = vadd.f32 %v1335, %v1438
        %v1491 = vadd.f32 %v1336, %v1443
        %v1492 = vadd.f32 %v1337, %v1446
        %v1493 = vadd.f32 %v1338, %v1451
        %v1494 = vadd.f32 %v1339, %v1454
        %v1495 = vadd.f32 %v1340, %v1459
        %v1496 = vadd.f32 %v1341, %v1462
        %v1497 = vadd.f32 %v1342, %v1467
        %v1498 = vadd.f32 %v1343, %v1470
        %v1499 = vadd.f32 %v1344, %v1475
        %v1500 = vadd.f32 %v1345, %v1478
        %v1501 = vadd.f32 %v1346, %v1483
        %v1502 = vadd.f32 %v1347, %v1486
        %v1504 = vunpack.c.l.b16 %v275
        %v1505 = vpack.c.b16 %v319, %v318
        %v1506 = vpack.c.b16 %v321, %v320
        %v1507 = vpack.c.b16 %v323, %v322
        %v1508 = vpack.c.b16 %v325, %v324
        %v1509 = vpack.c.b16 %v327, %v326
        %v1510 = vpack.c.b16 %v329, %v328
        %v1511 = vpack.c.b16 %v1504, %v330
        %v1513 = vsel %vm394, %v1505, 0
        %v1516 = vsel %vm394, %v1506, 0
        %v1519 = vsel %vm394, %v1507, 0
        %v1522 = vsel %vm394, %v1508, 0
        %v1525 = vsel %vm394, %v1509, 0
        %v1528 = vsel %vm394, %v1510, 0
        %v1531 = vsel %vm394, %v1511, 0
        %v1534 = vsel %vm416, %v286, 0
        %1536 = vmatprep.subr.bf16.mxu0 0
        %1537 = vmatpush1.bf16.msra.mxu0 %v1534
        %1538 = vmatprep.subr.bf16.mxu0 0
        %1539 = vmatpush1.bf16.msra.mxu0 0
        %1540 = vmatprep.subr.bf16.mxu0 0
        %1541 = vmatpush1.bf16.msra.mxu0 0
        %1542 = vmatprep.subr.bf16.mxu0 0
        %1543 = vmatpush1.bf16.msra.mxu0 0
        %1544 = vmatprep.subr.bf16.mxu0 0
        %1545 = vmatpush1.bf16.msra.mxu0 0
        %1546 = vmatprep.subr.bf16.mxu0 0
        %1547 = vmatpush1.bf16.msra.mxu0 0
        %1548 = vmatprep.subr.bf16.mxu0 0
        %1549 = vmatpush1.bf16.msra.mxu0 0
        %1550 = vmatprep.subr.bf16.mxu0 0
        %1551 = vmatpush1.bf16.msra.mxu0 0
        %1552 = vmatprep.subr.bf16.mxu0 0
        %1553 = vmatpush1.bf16.msra.mxu0 0
        %1554 = vmatprep.subr.bf16.mxu0 0
        %1555 = vmatpush1.bf16.msra.mxu0 0
        %1556 = vmatprep.subr.bf16.mxu0 0
        %1557 = vmatpush1.bf16.msra.mxu0 0
        %1558 = vmatprep.subr.bf16.mxu0 0
        %1559 = vmatpush1.bf16.msra.mxu0 0
        %1560 = vmatprep.subr.bf16.mxu0 0
        %1561 = vmatpush1.bf16.msra.mxu0 0
        %1562 = vmatprep.subr.bf16.mxu0 0
        %1563 = vmatpush1.bf16.msra.mxu0 0
        %1564 = vmatprep.subr.bf16.mxu0 0
        %1565 = vmatpush1.bf16.msra.mxu0 0
        %1566 = vmatprep.subr.bf16.mxu0 0
        %1567 = vmatpush1.bf16.msra.mxu0 0
        %1568 = vmatprep.mubr.bf16.mxu0 0
        %1569 = vmatmul.mubr.bf16.gmra.mrb[0].mxu0 %v1513
        %v1570 = vpop.f32.mrb[0].mxu0
        %v1571 = vadd.f32 0.0, %v1570
        %v1572 = vpop.f32.mrb[0].mxu0
        %v1573 = vpop.f32.mrb[0].mxu0
        %v1574 = vadd.f32 0.0, %v1573
        %v1575 = vpop.f32.mrb[0].mxu0
        %1576 = vmatprep.mubr.bf16.mxu0 0
        %1577 = vmatmul.mubr.bf16.gmra.mrb[0].mxu0 %v1516
        %v1578 = vpop.f32.mrb[0].mxu0
        %v1579 = vadd.f32 0.0, %v1578
        %v1580 = vpop.f32.mrb[0].mxu0
        %v1581 = vpop.f32.mrb[0].mxu0
        %v1582 = vadd.f32 0.0, %v1581
        %v1583 = vpop.f32.mrb[0].mxu0
        %1584 = vmatprep.mubr.bf16.mxu0 0
        %1585 = vmatmul.mubr.bf16.gmra.mrb[0].mxu0 %v1519
        %v1586 = vpop.f32.mrb[0].mxu0
        %v1587 = vadd.f32 0.0, %v1586
        %v1588 = vpop.f32.mrb[0].mxu0
        %v1589 = vpop.f32.mrb[0].mxu0
        %v1590 = vadd.f32 0.0, %v1589
        %v1591 = vpop.f32.mrb[0].mxu0
        %1592 = vmatprep.mubr.bf16.mxu0 0
        %1593 = vmatmul.mubr.bf16.gmra.mrb[0].mxu0 %v1522
        %v1594 = vpop.f32.mrb[0].mxu0
        %v1595 = vadd.f32 0.0, %v1594
        %v1596 = vpop.f32.mrb[0].mxu0
        %v1597 = vpop.f32.mrb[0].mxu0
        %v1598 = vadd.f32 0.0, %v1597
        %v1599 = vpop.f32.mrb[0].mxu0
        %1600 = vmatprep.mubr.bf16.mxu0 0
        %1601 = vmatmul.mubr.bf16.gmra.mrb[0].mxu0 %v1525
        %v1602 = vpop.f32.mrb[0].mxu0
        %v1603 = vadd.f32 0.0, %v1602
        %v1604 = vpop.f32.mrb[0].mxu0
        %v1605 = vpop.f32.mrb[0].mxu0
        %v1606 = vadd.f32 0.0, %v1605
        %v1607 = vpop.f32.mrb[0].mxu0
        %1608 = vmatprep.mubr.bf16.mxu0 0
        %1609 = vmatmul.mubr.bf16.gmra.mrb[0].mxu0 %v1528
        %v1610 = vpop.f32.mrb[0].mxu0
        %v1611 = vadd.f32 0.0, %v1610
        %v1612 = vpop.f32.mrb[0].mxu0
        %v1613 = vpop.f32.mrb[0].mxu0
        %v1614 = vadd.f32 0.0, %v1613
        %v1615 = vpop.f32.mrb[0].mxu0
        %1616 = vmatprep.mubr.bf16.mxu0 0
        %1617 = vmatmul.mubr.bf16.gmra.mrb[0].mxu0 %v1531
        %v1618 = vpop.f32.mrb[0].mxu0
        %v1619 = vadd.f32 0.0, %v1618
        %v1620 = vpop.f32.mrb[0].mxu0
        %v1621 = vpop.f32.mrb[0].mxu0
        %v1622 = vadd.f32 0.0, %v1621
        %v1623 = vpop.f32.mrb[0].mxu0
        %1624 = vdwg.mxu0
        %v1625 = vadd.f32 %v1489, %v1571
        %v1626 = vadd.f32 %v1490, %v1574
        %v1627 = vadd.f32 %v1491, %v1579
        %v1628 = vadd.f32 %v1492, %v1582
        %v1629 = vadd.f32 %v1493, %v1587
        %v1630 = vadd.f32 %v1494, %v1590
        %v1631 = vadd.f32 %v1495, %v1595
        %v1632 = vadd.f32 %v1496, %v1598
        %v1633 = vadd.f32 %v1497, %v1603
        %v1634 = vadd.f32 %v1498, %v1606
        %v1635 = vadd.f32 %v1499, %v1611
        %v1636 = vadd.f32 %v1500, %v1614
        %v1637 = vadd.f32 %v1501, %v1619
        %v1638 = vadd.f32 %v1502, %v1622
        %v1639 = vshrl.u32 %v1505, 16
        %v1641 = vshll.u32 %v1505, 16
        %v1643 = vrot.slane %v1641, 1
        %v1644 = vor.u32 %v1639, %v1643
        %v1645 = vshll.u32 %v1506, 16
        %v1647 = vrot.slane %v1645, 1
        %v1648 = vsel %vm338, %v1644, %v1647
        %v1649 = vshrl.u32 %v1506, 16
        %v1651 = vor.u32 %v1649, %v1647
        %v1652 = vshll.u32 %v1507, 16
        %v1654 = vrot.slane %v1652, 1
        %v1655 = vsel %vm338, %v1651, %v1654
        %v1656 = vshrl.u32 %v1507, 16
        %v1658 = vor.u32 %v1656, %v1654
        %v1659 = vshll.u32 %v1508, 16
        %v1661 = vrot.slane %v1659, 1
        %v1662 = vsel %vm338, %v1658, %v1661
        %v1663 = vshrl.u32 %v1508, 16
        %v1665 = vor.u32 %v1663, %v1661
        %v1666 = vshll.u32 %v1509, 16
        %v1668 = vrot.slane %v1666, 1
        %v1669 = vsel %vm338, %v1665, %v1668
        %v1670 = vshrl.u32 %v1509, 16
        %v1672 = vor.u32 %v1670, %v1668
        %v1673 = vshll.u32 %v1510, 16
        %v1675 = vrot.slane %v1673, 1
        %v1676 = vsel %vm338, %v1672, %v1675
        %v1677 = vshrl.u32 %v1510, 16
        %v1679 = vor.u32 %v1677, %v1675
        %v1680 = vshll.u32 %v1511, 16
        %v1682 = vrot.slane %v1680, 1
        %v1683 = vsel %vm338, %v1679, %v1682
        %v1684 = vshrl.u32 %v1511, 16
        %v1686 = vor.u32 %v1684, %v1682
        %v1688 = vsel %vm394, %v1648, 0
        %v1691 = vsel %vm394, %v1655, 0
        %v1694 = vsel %vm394, %v1662, 0
        %v1697 = vsel %vm394, %v1669, 0
        %v1700 = vsel %vm394, %v1676, 0
        %v1703 = vsel %vm394, %v1683, 0
        %v1706 = vsel %vm394, %v1686, 0
        %v1709 = vsel %vm416, %v287, 0
        %1711 = vmatprep.subr.bf16.mxu0 0
        %1712 = vmatpush1.bf16.msra.mxu0 %v1709
        %1713 = vmatprep.subr.bf16.mxu0 0
        %1714 = vmatpush1.bf16.msra.mxu0 0
        %1715 = vmatprep.subr.bf16.mxu0 0
        %1716 = vmatpush1.bf16.msra.mxu0 0
        %1717 = vmatprep.subr.bf16.mxu0 0
        %1718 = vmatpush1.bf16.msra.mxu0 0
        %1719 = vmatprep.subr.bf16.mxu0 0
        %1720 = vmatpush1.bf16.msra.mxu0 0
        %1721 = vmatprep.subr.bf16.mxu0 0
        %1722 = vmatpush1.bf16.msra.mxu0 0
        %1723 = vmatprep.subr.bf16.mxu0 0
        %1724 = vmatpush1.bf16.msra.mxu0 0
        %1725 = vmatprep.subr.bf16.mxu0 0
        %1726 = vmatpush1.bf16.msra.mxu0 0
        %1727 = vmatprep.subr.bf16.mxu0 0
        %1728 = vmatpush1.bf16.msra.mxu0 0
        %1729 = vmatprep.subr.bf16.mxu0 0
        %1730 = vmatpush1.bf16.msra.mxu0 0
        %1731 = vmatprep.subr.bf16.mxu0 0
        %1732 = vmatpush1.bf16.msra.mxu0 0
        %1733 = vmatprep.subr.bf16.mxu0 0
        %1734 = vmatpush1.bf16.msra.mxu0 0
        %1735 = vmatprep.subr.bf16.mxu0 0
        %1736 = vmatpush1.bf16.msra.mxu0 0
        %1737 = vmatprep.subr.bf16.mxu0 0
        %1738 = vmatpush1.bf16.msra.mxu0 0
        %1739 = vmatprep.subr.bf16.mxu0 0
        %1740 = vmatpush1.bf16.msra.mxu0 0
        %1741 = vmatprep.subr.bf16.mxu0 0
        %1742 = vmatpush1.bf16.msra.mxu0 0
        %1743 = vmatprep.mubr.bf16.mxu0 0
        %1744 = vmatmul.mubr.bf16.gmra.mrb[0].mxu0 %v1688
        %v1745 = vpop.f32.mrb[0].mxu0
        %v1746 = vadd.f32 0.0, %v1745
        %v1747 = vpop.f32.mrb[0].mxu0
        %v1748 = vpop.f32.mrb[0].mxu0
        %v1749 = vadd.f32 0.0, %v1748
        %v1750 = vpop.f32.mrb[0].mxu0
        %1751 = vmatprep.mubr.bf16.mxu0 0
        %1752 = vmatmul.mubr.bf16.gmra.mrb[0].mxu0 %v1691
        %v1753 = vpop.f32.mrb[0].mxu0
        %v1754 = vadd.f32 0.0, %v1753
        %v1755 = vpop.f32.mrb[0].mxu0
        %v1756 = vpop.f32.mrb[0].mxu0
        %v1757 = vadd.f32 0.0, %v1756
        %v1758 = vpop.f32.mrb[0].mxu0
        %1759 = vmatprep.mubr.bf16.mxu0 0
        %1760 = vmatmul.mubr.bf16.gmra.mrb[0].mxu0 %v1694
        %v1761 = vpop.f32.mrb[0].mxu0
        %v1762 = vadd.f32 0.0, %v1761
        %v1763 = vpop.f32.mrb[0].mxu0
        %v1764 = vpop.f32.mrb[0].mxu0
        %v1765 = vadd.f32 0.0, %v1764
        %v1766 = vpop.f32.mrb[0].mxu0
        %1767 = vmatprep.mubr.bf16.mxu0 0
        %1768 = vmatmul.mubr.bf16.gmra.mrb[0].mxu0 %v1697
        %v1769 = vpop.f32.mrb[0].mxu0
        %v1770 = vadd.f32 0.0, %v1769
        %v1771 = vpop.f32.mrb[0].mxu0
        %v1772 = vpop.f32.mrb[0].mxu0
        %v1773 = vadd.f32 0.0, %v1772
        %v1774 = vpop.f32.mrb[0].mxu0
        %1775 = vmatprep.mubr.bf16.mxu0 0
        %1776 = vmatmul.mubr.bf16.gmra.mrb[0].mxu0 %v1700
        %v1777 = vpop.f32.mrb[0].mxu0
        %v1778 = vadd.f32 0.0, %v1777
        %v1779 = vpop.f32.mrb[0].mxu0
        %v1780 = vpop.f32.mrb[0].mxu0
        %v1781 = vadd.f32 0.0, %v1780
        %v1782 = vpop.f32.mrb[0].mxu0
        %1783 = vmatprep.mubr.bf16.mxu0 0
        %1784 = vmatmul.mubr.bf16.gmra.mrb[0].mxu0 %v1703
        %v1785 = vpop.f32.mrb[0].mxu0
        %v1786 = vadd.f32 0.0, %v1785
        %v1787 = vpop.f32.mrb[0].mxu0
        %v1788 = vpop.f32.mrb[0].mxu0
        %v1789 = vadd.f32 0.0, %v1788
        %v1790 = vpop.f32.mrb[0].mxu0
        %1791 = vmatprep.mubr.bf16.mxu0 0
        %1792 = vmatmul.mubr.bf16.gmra.mrb[0].mxu0 %v1706
        %v1793 = vpop.f32.mrb[0].mxu0
        %v1794 = vadd.f32 0.0, %v1793
        %v1795 = vpop.f32.mrb[0].mxu0
        %v1796 = vpop.f32.mrb[0].mxu0
        %v1797 = vadd.f32 0.0, %v1796
        %v1798 = vpop.f32.mrb[0].mxu0
        %1799 = vdwg.mxu0
        %v1800 = vadd.f32 %v1625, %v1746
        %v1801 = vadd.f32 %v1626, %v1749
        %v1802 = vadd.f32 %v1627, %v1754
        %v1803 = vadd.f32 %v1628, %v1757
        %v1804 = vadd.f32 %v1629, %v1762
        %v1805 = vadd.f32 %v1630, %v1765
        %v1806 = vadd.f32 %v1631, %v1770
        %v1807 = vadd.f32 %v1632, %v1773
        %v1808 = vadd.f32 %v1633, %v1778
        %v1809 = vadd.f32 %v1634, %v1781
        %v1810 = vadd.f32 %v1635, %v1786
        %v1811 = vadd.f32 %v1636, %v1789
        %v1812 = vadd.f32 %v1637, %v1794
        %v1813 = vadd.f32 %v1638, %v1797
        %v1814 = vrot.slane %v1505, 1
        %v1815 = vrot.slane %v1506, 1
        %v1816 = vsel %vm615, %v1814, %v1815
        %v1817 = vrot.slane %v1507, 1
        %v1818 = vsel %vm615, %v1815, %v1817
        %v1819 = vrot.slane %v1508, 1
        %v1820 = vsel %vm615, %v1817, %v1819
        %v1821 = vrot.slane %v1509, 1
        %v1822 = vsel %vm615, %v1819, %v1821
        %v1823 = vrot.slane %v1510, 1
        %v1824 = vsel %vm615, %v1821, %v1823
        %v1825 = vrot.slane %v1511, 1
        %v1826 = vsel %vm615, %v1823, %v1825
        %v1828 = vsel %vm394, %v1816, 0
        %v1831 = vsel %vm394, %v1818, 0
        %v1834 = vsel %vm394, %v1820, 0
        %v1837 = vsel %vm394, %v1822, 0
        %v1840 = vsel %vm394, %v1824, 0
        %v1843 = vsel %vm394, %v1826, 0
        %v1846 = vsel %vm394, %v1825, 0
        %v1849 = vsel %vm416, %v288, 0
        %1851 = vmatprep.subr.bf16.mxu0 0
        %1852 = vmatpush1.bf16.msra.mxu0 %v1849
        %1853 = vmatprep.subr.bf16.mxu0 0
        %1854 = vmatpush1.bf16.msra.mxu0 0
        %1855 = vmatprep.subr.bf16.mxu0 0
        %1856 = vmatpush1.bf16.msra.mxu0 0
        %1857 = vmatprep.subr.bf16.mxu0 0
        %1858 = vmatpush1.bf16.msra.mxu0 0
        %1859 = vmatprep.subr.bf16.mxu0 0
        %1860 = vmatpush1.bf16.msra.mxu0 0
        %1861 = vmatprep.subr.bf16.mxu0 0
        %1862 = vmatpush1.bf16.msra.mxu0 0
        %1863 = vmatprep.subr.bf16.mxu0 0
        %1864 = vmatpush1.bf16.msra.mxu0 0
        %1865 = vmatprep.subr.bf16.mxu0 0
        %1866 = vmatpush1.bf16.msra.mxu0 0
        %1867 = vmatprep.subr.bf16.mxu0 0
        %1868 = vmatpush1.bf16.msra.mxu0 0
        %1869 = vmatprep.subr.bf16.mxu0 0
        %1870 = vmatpush1.bf16.msra.mxu0 0
        %1871 = vmatprep.subr.bf16.mxu0 0
        %1872 = vmatpush1.bf16.msra.mxu0 0
        %1873 = vmatprep.subr.bf16.mxu0 0
        %1874 = vmatpush1.bf16.msra.mxu0 0
        %1875 = vmatprep.subr.bf16.mxu0 0
        %1876 = vmatpush1.bf16.msra.mxu0 0
        %1877 = vmatprep.subr.bf16.mxu0 0
        %1878 = vmatpush1.bf16.msra.mxu0 0
        %1879 = vmatprep.subr.bf16.mxu0 0
        %1880 = vmatpush1.bf16.msra.mxu0 0
        %1881 = vmatprep.subr.bf16.mxu0 0
        %1882 = vmatpush1.bf16.msra.mxu0 0
        %1883 = vmatprep.mubr.bf16.mxu0 0
        %1884 = vmatmul.mubr.bf16.gmra.mrb[0].mxu0 %v1828
        %v1885 = vpop.f32.mrb[0].mxu0
        %v1886 = vadd.f32 0.0, %v1885
        %v1887 = vpop.f32.mrb[0].mxu0
        %v1888 = vpop.f32.mrb[0].mxu0
        %v1889 = vadd.f32 0.0, %v1888
        %v1890 = vpop.f32.mrb[0].mxu0
        %1891 = vmatprep.mubr.bf16.mxu0 0
        %1892 = vmatmul.mubr.bf16.gmra.mrb[0].mxu0 %v1831
        %v1893 = vpop.f32.mrb[0].mxu0
        %v1894 = vadd.f32 0.0, %v1893
        %v1895 = vpop.f32.mrb[0].mxu0
        %v1896 = vpop.f32.mrb[0].mxu0
        %v1897 = vadd.f32 0.0, %v1896
        %v1898 = vpop.f32.mrb[0].mxu0
        %1899 = vmatprep.mubr.bf16.mxu0 0
        %1900 = vmatmul.mubr.bf16.gmra.mrb[0].mxu0 %v1834
        %v1901 = vpop.f32.mrb[0].mxu0
        %v1902 = vadd.f32 0.0, %v1901
        %v1903 = vpop.f32.mrb[0].mxu0
        %v1904 = vpop.f32.mrb[0].mxu0
        %v1905 = vadd.f32 0.0, %v1904
        %v1906 = vpop.f32.mrb[0].mxu0
        %1907 = vmatprep.mubr.bf16.mxu0 0
        %1908 = vmatmul.mubr.bf16.gmra.mrb[0].mxu0 %v1837
        %v1909 = vpop.f32.mrb[0].mxu0
        %v1910 = vadd.f32 0.0, %v1909
        %v1911 = vpop.f32.mrb[0].mxu0
        %v1912 = vpop.f32.mrb[0].mxu0
        %v1913 = vadd.f32 0.0, %v1912
        %v1914 = vpop.f32.mrb[0].mxu0
        %1915 = vmatprep.mubr.bf16.mxu0 0
        %1916 = vmatmul.mubr.bf16.gmra.mrb[0].mxu0 %v1840
        %v1917 = vpop.f32.mrb[0].mxu0
        %v1918 = vadd.f32 0.0, %v1917
        %v1919 = vpop.f32.mrb[0].mxu0
        %v1920 = vpop.f32.mrb[0].mxu0
        %v1921 = vadd.f32 0.0, %v1920
        %v1922 = vpop.f32.mrb[0].mxu0
        %1923 = vmatprep.mubr.bf16.mxu0 0
        %1924 = vmatmul.mubr.bf16.gmra.mrb[0].mxu0 %v1843
        %v1925 = vpop.f32.mrb[0].mxu0
        %v1926 = vadd.f32 0.0, %v1925
        %v1927 = vpop.f32.mrb[0].mxu0
        %v1928 = vpop.f32.mrb[0].mxu0
        %v1929 = vadd.f32 0.0, %v1928
        %v1930 = vpop.f32.mrb[0].mxu0
        %1931 = vmatprep.mubr.bf16.mxu0 0
        %1932 = vmatmul.mubr.bf16.gmra.mrb[0].mxu0 %v1846
        %v1933 = vpop.f32.mrb[0].mxu0
        %v1934 = vadd.f32 0.0, %v1933
        %v1935 = vpop.f32.mrb[0].mxu0
        %v1936 = vpop.f32.mrb[0].mxu0
        %v1937 = vadd.f32 0.0, %v1936
        %v1938 = vpop.f32.mrb[0].mxu0
        %1939 = vdwg.mxu0
        %v1940 = vadd.f32 %v1800, %v1886
        %v1941 = vadd.f32 %v1801, %v1889
        %v1942 = vadd.f32 %v1802, %v1894
        %v1943 = vadd.f32 %v1803, %v1897
        %v1944 = vadd.f32 %v1804, %v1902
        %v1945 = vadd.f32 %v1805, %v1905
        %v1946 = vadd.f32 %v1806, %v1910
        %v1947 = vadd.f32 %v1807, %v1913
        %v1948 = vadd.f32 %v1808, %v1918
        %v1949 = vadd.f32 %v1809, %v1921
        %v1950 = vadd.f32 %v1810, %v1926
        %v1951 = vadd.f32 %v1811, %v1929
        %v1952 = vadd.f32 %v1812, %v1934
        %v1953 = vadd.f32 %v1813, %v1937
        %v1954 = vrot.slane %v1639, 1
        %v1955 = vrot.slane %v1641, 2
        %v1956 = vor.u32 %v1954, %v1955
        %v1957 = vrot.slane %v1649, 1
        %v1958 = vrot.slane %v1645, 2
        %v1959 = vor.u32 %v1957, %v1958
        %v1960 = vsel %vm756, %v1956, %v1959
        %v1961 = vrot.slane %v1656, 1
        %v1962 = vrot.slane %v1652, 2
        %v1963 = vor.u32 %v1961, %v1962
        %v1964 = vsel %vm756, %v1959, %v1963
        %v1965 = vrot.slane %v1663, 1
        %v1966 = vrot.slane %v1659, 2
        %v1967 = vor.u32 %v1965, %v1966
        %v1968 = vsel %vm756, %v1963, %v1967
        %v1969 = vrot.slane %v1670, 1
        %v1970 = vrot.slane %v1666, 2
        %v1971 = vor.u32 %v1969, %v1970
        %v1972 = vsel %vm756, %v1967, %v1971
        %v1973 = vrot.slane %v1677, 1
        %v1974 = vrot.slane %v1673, 2
        %v1975 = vor.u32 %v1973, %v1974
        %v1976 = vsel %vm756, %v1971, %v1975
        %v1977 = vrot.slane %v1684, 1
        %v1978 = vrot.slane %v1680, 2
        %v1979 = vor.u32 %v1977, %v1978
        %v1980 = vsel %vm756, %v1975, %v1979
        %v1982 = vsel %vm394, %v1960, 0
        %v1985 = vsel %vm394, %v1964, 0
        %v1988 = vsel %vm394, %v1968, 0
        %v1991 = vsel %vm394, %v1972, 0
        %v1994 = vsel %vm394, %v1976, 0
        %v1997 = vsel %vm394, %v1980, 0
        %v2000 = vsel %vm394, %v1979, 0
        %v2003 = vsel %vm416, %v289, 0
        %2005 = vmatprep.subr.bf16.mxu0 0
        %2006 = vmatpush1.bf16.msra.mxu0 %v2003
        %2007 = vmatprep.subr.bf16.mxu0 0
        %2008 = vmatpush1.bf16.msra.mxu0 0
        %2009 = vmatprep.subr.bf16.mxu0 0
        %2010 = vmatpush1.bf16.msra.mxu0 0
        %2011 = vmatprep.subr.bf16.mxu0 0
        %2012 = vmatpush1.bf16.msra.mxu0 0
        %2013 = vmatprep.subr.bf16.mxu0 0
        %2014 = vmatpush1.bf16.msra.mxu0 0
        %2015 = vmatprep.subr.bf16.mxu0 0
        %2016 = vmatpush1.bf16.msra.mxu0 0
        %2017 = vmatprep.subr.bf16.mxu0 0
        %2018 = vmatpush1.bf16.msra.mxu0 0
        %2019 = vmatprep.subr.bf16.mxu0 0
        %2020 = vmatpush1.bf16.msra.mxu0 0
        %2021 = vmatprep.subr.bf16.mxu0 0
        %2022 = vmatpush1.bf16.msra.mxu0 0
        %2023 = vmatprep.subr.bf16.mxu0 0
        %2024 = vmatpush1.bf16.msra.mxu0 0
        %2025 = vmatprep.subr.bf16.mxu0 0
        %2026 = vmatpush1.bf16.msra.mxu0 0
        %2027 = vmatprep.subr.bf16.mxu0 0
        %2028 = vmatpush1.bf16.msra.mxu0 0
        %2029 = vmatprep.subr.bf16.mxu0 0
        %2030 = vmatpush1.bf16.msra.mxu0 0
        %2031 = vmatprep.subr.bf16.mxu0 0
        %2032 = vmatpush1.bf16.msra.mxu0 0
        %2033 = vmatprep.subr.bf16.mxu0 0
        %2034 = vmatpush1.bf16.msra.mxu0 0
        %2035 = vmatprep.subr.bf16.mxu0 0
        %2036 = vmatpush1.bf16.msra.mxu0 0
        %2037 = vmatprep.mubr.bf16.mxu0 0
        %2038 = vmatmul.mubr.bf16.gmra.mrb[0].mxu0 %v1982
        %v2039 = vpop.f32.mrb[0].mxu0
        %v2040 = vadd.f32 0.0, %v2039
        %v2041 = vpop.f32.mrb[0].mxu0
        %v2042 = vpop.f32.mrb[0].mxu0
        %v2043 = vadd.f32 0.0, %v2042
        %v2044 = vpop.f32.mrb[0].mxu0
        %2045 = vmatprep.mubr.bf16.mxu0 0
        %2046 = vmatmul.mubr.bf16.gmra.mrb[0].mxu0 %v1985
        %v2047 = vpop.f32.mrb[0].mxu0
        %v2048 = vadd.f32 0.0, %v2047
        %v2049 = vpop.f32.mrb[0].mxu0
        %v2050 = vpop.f32.mrb[0].mxu0
        %v2051 = vadd.f32 0.0, %v2050
        %v2052 = vpop.f32.mrb[0].mxu0
        %2053 = vmatprep.mubr.bf16.mxu0 0
        %2054 = vmatmul.mubr.bf16.gmra.mrb[0].mxu0 %v1988
        %v2055 = vpop.f32.mrb[0].mxu0
        %v2056 = vadd.f32 0.0, %v2055
        %v2057 = vpop.f32.mrb[0].mxu0
        %v2058 = vpop.f32.mrb[0].mxu0
        %v2059 = vadd.f32 0.0, %v2058
        %v2060 = vpop.f32.mrb[0].mxu0
        %2061 = vmatprep.mubr.bf16.mxu0 0
        %2062 = vmatmul.mubr.bf16.gmra.mrb[0].mxu0 %v1991
        %v2063 = vpop.f32.mrb[0].mxu0
        %v2064 = vadd.f32 0.0, %v2063
        %v2065 = vpop.f32.mrb[0].mxu0
        %v2066 = vpop.f32.mrb[0].mxu0
        %v2067 = vadd.f32 0.0, %v2066
        %v2068 = vpop.f32.mrb[0].mxu0
        %2069 = vmatprep.mubr.bf16.mxu0 0
        %2070 = vmatmul.mubr.bf16.gmra.mrb[0].mxu0 %v1994
        %v2071 = vpop.f32.mrb[0].mxu0
        %v2072 = vadd.f32 0.0, %v2071
        %v2073 = vpop.f32.mrb[0].mxu0
        %v2074 = vpop.f32.mrb[0].mxu0
        %v2075 = vadd.f32 0.0, %v2074
        %v2076 = vpop.f32.mrb[0].mxu0
        %2077 = vmatprep.mubr.bf16.mxu0 0
        %2078 = vmatmul.mubr.bf16.gmra.mrb[0].mxu0 %v1997
        %v2079 = vpop.f32.mrb[0].mxu0
        %v2080 = vadd.f32 0.0, %v2079
        %v2081 = vpop.f32.mrb[0].mxu0
        %v2082 = vpop.f32.mrb[0].mxu0
        %v2083 = vadd.f32 0.0, %v2082
        %v2084 = vpop.f32.mrb[0].mxu0
        %2085 = vmatprep.mubr.bf16.mxu0 0
        %2086 = vmatmul.mubr.bf16.gmra.mrb[0].mxu0 %v2000
        %v2087 = vpop.f32.mrb[0].mxu0
        %v2088 = vadd.f32 0.0, %v2087
        %v2089 = vpop.f32.mrb[0].mxu0
        %v2090 = vpop.f32.mrb[0].mxu0
        %v2091 = vadd.f32 0.0, %v2090
        %v2092 = vpop.f32.mrb[0].mxu0
        %2093 = vdwg.mxu0
        %v2094 = vadd.f32 %v1940, %v2040
        %v2095 = vadd.f32 %v1941, %v2043
        %v2096 = vadd.f32 %v1942, %v2048
        %v2097 = vadd.f32 %v1943, %v2051
        %v2098 = vadd.f32 %v1944, %v2056
        %v2099 = vadd.f32 %v1945, %v2059
        %v2100 = vadd.f32 %v1946, %v2064
        %v2101 = vadd.f32 %v1947, %v2067
        %v2102 = vadd.f32 %v1948, %v2072
        %v2103 = vadd.f32 %v1949, %v2075
        %v2104 = vadd.f32 %v1950, %v2080
        %v2105 = vadd.f32 %v1951, %v2083
        %v2106 = vadd.f32 %v1952, %v2088
        %v2107 = vadd.f32 %v1953, %v2091
        %v2108 = vrot.slane %v1505, 2
        %v2109 = vrot.slane %v1506, 2
        %v2110 = vsel %vm911, %v2108, %v2109
        %v2111 = vrot.slane %v1507, 2
        %v2112 = vsel %vm911, %v2109, %v2111
        %v2113 = vrot.slane %v1508, 2
        %v2114 = vsel %vm911, %v2111, %v2113
        %v2115 = vrot.slane %v1509, 2
        %v2116 = vsel %vm911, %v2113, %v2115
        %v2117 = vrot.slane %v1510, 2
        %v2118 = vsel %vm911, %v2115, %v2117
        %v2119 = vrot.slane %v1511, 2
        %v2120 = vsel %vm911, %v2117, %v2119
        %v2122 = vsel %vm394, %v2110, 0
        %v2125 = vsel %vm394, %v2112, 0
        %v2128 = vsel %vm394, %v2114, 0
        %v2131 = vsel %vm394, %v2116, 0
        %v2134 = vsel %vm394, %v2118, 0
        %v2137 = vsel %vm394, %v2120, 0
        %v2140 = vsel %vm394, %v2119, 0
        %v2143 = vsel %vm416, %v290, 0
        %2145 = vmatprep.subr.bf16.mxu0 0
        %2146 = vmatpush1.bf16.msra.mxu0 %v2143
        %2147 = vmatprep.subr.bf16.mxu0 0
        %2148 = vmatpush1.bf16.msra.mxu0 0
        %2149 = vmatprep.subr.bf16.mxu0 0
        %2150 = vmatpush1.bf16.msra.mxu0 0
        %2151 = vmatprep.subr.bf16.mxu0 0
        %2152 = vmatpush1.bf16.msra.mxu0 0
        %2153 = vmatprep.subr.bf16.mxu0 0
        %2154 = vmatpush1.bf16.msra.mxu0 0
        %2155 = vmatprep.subr.bf16.mxu0 0
        %2156 = vmatpush1.bf16.msra.mxu0 0
        %2157 = vmatprep.subr.bf16.mxu0 0
        %2158 = vmatpush1.bf16.msra.mxu0 0
        %2159 = vmatprep.subr.bf16.mxu0 0
        %2160 = vmatpush1.bf16.msra.mxu0 0
        %2161 = vmatprep.subr.bf16.mxu0 0
        %2162 = vmatpush1.bf16.msra.mxu0 0
        %2163 = vmatprep.subr.bf16.mxu0 0
        %2164 = vmatpush1.bf16.msra.mxu0 0
        %2165 = vmatprep.subr.bf16.mxu0 0
        %2166 = vmatpush1.bf16.msra.mxu0 0
        %2167 = vmatprep.subr.bf16.mxu0 0
        %2168 = vmatpush1.bf16.msra.mxu0 0
        %2169 = vmatprep.subr.bf16.mxu0 0
        %2170 = vmatpush1.bf16.msra.mxu0 0
        %2171 = vmatprep.subr.bf16.mxu0 0
        %2172 = vmatpush1.bf16.msra.mxu0 0
        %2173 = vmatprep.subr.bf16.mxu0 0
        %2174 = vmatpush1.bf16.msra.mxu0 0
        %2175 = vmatprep.subr.bf16.mxu0 0
        %2176 = vmatpush1.bf16.msra.mxu0 0
        %2177 = vmatprep.mubr.bf16.mxu0 0
        %2178 = vmatmul.mubr.bf16.gmra.mrb[0].mxu0 %v2122
        %v2179 = vpop.f32.mrb[0].mxu0
        %v2180 = vadd.f32 0.0, %v2179
        %v2181 = vpop.f32.mrb[0].mxu0
        %v2182 = vpop.f32.mrb[0].mxu0
        %v2183 = vadd.f32 0.0, %v2182
        %v2184 = vpop.f32.mrb[0].mxu0
        %2185 = vmatprep.mubr.bf16.mxu0 0
        %2186 = vmatmul.mubr.bf16.gmra.mrb[0].mxu0 %v2125
        %v2187 = vpop.f32.mrb[0].mxu0
        %v2188 = vadd.f32 0.0, %v2187
        %v2189 = vpop.f32.mrb[0].mxu0
        %v2190 = vpop.f32.mrb[0].mxu0
        %v2191 = vadd.f32 0.0, %v2190
        %v2192 = vpop.f32.mrb[0].mxu0
        %2193 = vmatprep.mubr.bf16.mxu0 0
        %2194 = vmatmul.mubr.bf16.gmra.mrb[0].mxu0 %v2128
        %v2195 = vpop.f32.mrb[0].mxu0
        %v2196 = vadd.f32 0.0, %v2195
        %v2197 = vpop.f32.mrb[0].mxu0
        %v2198 = vpop.f32.mrb[0].mxu0
        %v2199 = vadd.f32 0.0, %v2198
        %v2200 = vpop.f32.mrb[0].mxu0
        %2201 = vmatprep.mubr.bf16.mxu0 0
        %2202 = vmatmul.mubr.bf16.gmra.mrb[0].mxu0 %v2131
        %v2203 = vpop.f32.mrb[0].mxu0
        %v2204 = vadd.f32 0.0, %v2203
        %v2205 = vpop.f32.mrb[0].mxu0
        %v2206 = vpop.f32.mrb[0].mxu0
        %v2207 = vadd.f32 0.0, %v2206
        %v2208 = vpop.f32.mrb[0].mxu0
        %2209 = vmatprep.mubr.bf16.mxu0 0
        %2210 = vmatmul.mubr.bf16.gmra.mrb[0].mxu0 %v2134
        %v2211 = vpop.f32.mrb[0].mxu0
        %v2212 = vadd.f32 0.0, %v2211
        %v2213 = vpop.f32.mrb[0].mxu0
        %v2214 = vpop.f32.mrb[0].mxu0
        %v2215 = vadd.f32 0.0, %v2214
        %v2216 = vpop.f32.mrb[0].mxu0
        %2217 = vmatprep.mubr.bf16.mxu0 0
        %2218 = vmatmul.mubr.bf16.gmra.mrb[0].mxu0 %v2137
        %v2219 = vpop.f32.mrb[0].mxu0
        %v2220 = vadd.f32 0.0, %v2219
        %v2221 = vpop.f32.mrb[0].mxu0
        %v2222 = vpop.f32.mrb[0].mxu0
        %v2223 = vadd.f32 0.0, %v2222
        %v2224 = vpop.f32.mrb[0].mxu0
        %2225 = vmatprep.mubr.bf16.mxu0 0
        %2226 = vmatmul.mubr.bf16.gmra.mrb[0].mxu0 %v2140
        %v2227 = vpop.f32.mrb[0].mxu0
        %v2228 = vadd.f32 0.0, %v2227
        %v2229 = vpop.f32.mrb[0].mxu0
        %v2230 = vpop.f32.mrb[0].mxu0
        %v2231 = vadd.f32 0.0, %v2230
        %v2232 = vpop.f32.mrb[0].mxu0
        %2233 = vdwg.mxu0
        %v2234 = vadd.f32 %v2094, %v2180
        %v2235 = vadd.f32 %v2095, %v2183
        %v2236 = vadd.f32 %v2096, %v2188
        %v2237 = vadd.f32 %v2097, %v2191
        %v2238 = vadd.f32 %v2098, %v2196
        %v2239 = vadd.f32 %v2099, %v2199
        %v2240 = vadd.f32 %v2100, %v2204
        %v2241 = vadd.f32 %v2101, %v2207
        %v2242 = vadd.f32 %v2102, %v2212
        %v2243 = vadd.f32 %v2103, %v2215
        %v2244 = vadd.f32 %v2104, %v2220
        %v2245 = vadd.f32 %v2105, %v2223
        %v2246 = vadd.f32 %v2106, %v2228
        %v2247 = vadd.f32 %v2107, %v2231
        %v2248 = vrot.slane %v1639, 2
        %v2249 = vrot.slane %v1641, 3
        %v2250 = vor.u32 %v2248, %v2249
        %v2251 = vrot.slane %v1649, 2
        %v2252 = vrot.slane %v1645, 3
        %v2253 = vor.u32 %v2251, %v2252
        %v2254 = vsel %vm1052, %v2250, %v2253
        %v2255 = vrot.slane %v1656, 2
        %v2256 = vrot.slane %v1652, 3
        %v2257 = vor.u32 %v2255, %v2256
        %v2258 = vsel %vm1052, %v2253, %v2257
        %v2259 = vrot.slane %v1663, 2
        %v2260 = vrot.slane %v1659, 3
        %v2261 = vor.u32 %v2259, %v2260
        %v2262 = vsel %vm1052, %v2257, %v2261
        %v2263 = vrot.slane %v1670, 2
        %v2264 = vrot.slane %v1666, 3
        %v2265 = vor.u32 %v2263, %v2264
        %v2266 = vsel %vm1052, %v2261, %v2265
        %v2267 = vrot.slane %v1677, 2
        %v2268 = vrot.slane %v1673, 3
        %v2269 = vor.u32 %v2267, %v2268
        %v2270 = vsel %vm1052, %v2265, %v2269
        %v2271 = vrot.slane %v1684, 2
        %v2272 = vrot.slane %v1680, 3
        %v2273 = vor.u32 %v2271, %v2272
        %v2274 = vsel %vm1052, %v2269, %v2273
        %v2276 = vsel %vm394, %v2254, 0
        %v2279 = vsel %vm394, %v2258, 0
        %v2282 = vsel %vm394, %v2262, 0
        %v2285 = vsel %vm394, %v2266, 0
        %v2288 = vsel %vm394, %v2270, 0
        %v2291 = vsel %vm394, %v2274, 0
        %v2294 = vsel %vm394, %v2273, 0
        %v2297 = vsel %vm416, %v291, 0
        %2299 = vmatprep.subr.bf16.mxu0 0
        %2300 = vmatpush1.bf16.msra.mxu0 %v2297
        %2301 = vmatprep.subr.bf16.mxu0 0
        %2302 = vmatpush1.bf16.msra.mxu0 0
        %2303 = vmatprep.subr.bf16.mxu0 0
        %2304 = vmatpush1.bf16.msra.mxu0 0
        %2305 = vmatprep.subr.bf16.mxu0 0
        %2306 = vmatpush1.bf16.msra.mxu0 0
        %2307 = vmatprep.subr.bf16.mxu0 0
        %2308 = vmatpush1.bf16.msra.mxu0 0
        %2309 = vmatprep.subr.bf16.mxu0 0
        %2310 = vmatpush1.bf16.msra.mxu0 0
        %2311 = vmatprep.subr.bf16.mxu0 0
        %2312 = vmatpush1.bf16.msra.mxu0 0
        %2313 = vmatprep.subr.bf16.mxu0 0
        %2314 = vmatpush1.bf16.msra.mxu0 0
        %2315 = vmatprep.subr.bf16.mxu0 0
        %2316 = vmatpush1.bf16.msra.mxu0 0
        %2317 = vmatprep.subr.bf16.mxu0 0
        %2318 = vmatpush1.bf16.msra.mxu0 0
        %2319 = vmatprep.subr.bf16.mxu0 0
        %2320 = vmatpush1.bf16.msra.mxu0 0
        %2321 = vmatprep.subr.bf16.mxu0 0
        %2322 = vmatpush1.bf16.msra.mxu0 0
        %2323 = vmatprep.subr.bf16.mxu0 0
        %2324 = vmatpush1.bf16.msra.mxu0 0
        %2325 = vmatprep.subr.bf16.mxu0 0
        %2326 = vmatpush1.bf16.msra.mxu0 0
        %2327 = vmatprep.subr.bf16.mxu0 0
        %2328 = vmatpush1.bf16.msra.mxu0 0
        %2329 = vmatprep.subr.bf16.mxu0 0
        %2330 = vmatpush1.bf16.msra.mxu0 0
        %2331 = vmatprep.mubr.bf16.mxu0 0
        %2332 = vmatmul.mubr.bf16.gmra.mrb[0].mxu0 %v2276
        %v2333 = vpop.f32.mrb[0].mxu0
        %v2334 = vadd.f32 0.0, %v2333
        %v2335 = vpop.f32.mrb[0].mxu0
        %v2336 = vpop.f32.mrb[0].mxu0
        %v2337 = vadd.f32 0.0, %v2336
        %v2338 = vpop.f32.mrb[0].mxu0
        %2339 = vmatprep.mubr.bf16.mxu0 0
        %2340 = vmatmul.mubr.bf16.gmra.mrb[0].mxu0 %v2279
        %v2341 = vpop.f32.mrb[0].mxu0
        %v2342 = vadd.f32 0.0, %v2341
        %v2343 = vpop.f32.mrb[0].mxu0
        %v2344 = vpop.f32.mrb[0].mxu0
        %v2345 = vadd.f32 0.0, %v2344
        %v2346 = vpop.f32.mrb[0].mxu0
        %2347 = vmatprep.mubr.bf16.mxu0 0
        %2348 = vmatmul.mubr.bf16.gmra.mrb[0].mxu0 %v2282
        %v2349 = vpop.f32.mrb[0].mxu0
        %v2350 = vadd.f32 0.0, %v2349
        %v2351 = vpop.f32.mrb[0].mxu0
        %v2352 = vpop.f32.mrb[0].mxu0
        %v2353 = vadd.f32 0.0, %v2352
        %v2354 = vpop.f32.mrb[0].mxu0
        %2355 = vmatprep.mubr.bf16.mxu0 0
        %2356 = vmatmul.mubr.bf16.gmra.mrb[0].mxu0 %v2285
        %v2357 = vpop.f32.mrb[0].mxu0
        %v2358 = vadd.f32 0.0, %v2357
        %v2359 = vpop.f32.mrb[0].mxu0
        %v2360 = vpop.f32.mrb[0].mxu0
        %v2361 = vadd.f32 0.0, %v2360
        %v2362 = vpop.f32.mrb[0].mxu0
        %2363 = vmatprep.mubr.bf16.mxu0 0
        %2364 = vmatmul.mubr.bf16.gmra.mrb[0].mxu0 %v2288
        %v2365 = vpop.f32.mrb[0].mxu0
        %v2366 = vadd.f32 0.0, %v2365
        %v2367 = vpop.f32.mrb[0].mxu0
        %v2368 = vpop.f32.mrb[0].mxu0
        %v2369 = vadd.f32 0.0, %v2368
        %v2370 = vpop.f32.mrb[0].mxu0
        %2371 = vmatprep.mubr.bf16.mxu0 0
        %2372 = vmatmul.mubr.bf16.gmra.mrb[0].mxu0 %v2291
        %v2373 = vpop.f32.mrb[0].mxu0
        %v2374 = vadd.f32 0.0, %v2373
        %v2375 = vpop.f32.mrb[0].mxu0
        %v2376 = vpop.f32.mrb[0].mxu0
        %v2377 = vadd.f32 0.0, %v2376
        %v2378 = vpop.f32.mrb[0].mxu0
        %2379 = vmatprep.mubr.bf16.mxu0 0
        %2380 = vmatmul.mubr.bf16.gmra.mrb[0].mxu0 %v2294
        %v2381 = vpop.f32.mrb[0].mxu0
        %v2382 = vadd.f32 0.0, %v2381
        %v2383 = vpop.f32.mrb[0].mxu0
        %v2384 = vpop.f32.mrb[0].mxu0
        %v2385 = vadd.f32 0.0, %v2384
        %v2386 = vpop.f32.mrb[0].mxu0
        %2387 = vdwg.mxu0
        %v2388 = vadd.f32 %v2234, %v2334
        %v2389 = vadd.f32 %v2235, %v2337
        %v2390 = vadd.f32 %v2236, %v2342
        %v2391 = vadd.f32 %v2237, %v2345
        %v2392 = vadd.f32 %v2238, %v2350
        %v2393 = vadd.f32 %v2239, %v2353
        %v2394 = vadd.f32 %v2240, %v2358
        %v2395 = vadd.f32 %v2241, %v2361
        %v2396 = vadd.f32 %v2242, %v2366
        %v2397 = vadd.f32 %v2243, %v2369
        %v2398 = vadd.f32 %v2244, %v2374
        %v2399 = vadd.f32 %v2245, %v2377
        %v2400 = vadd.f32 %v2246, %v2382
        %v2401 = vadd.f32 %v2247, %v2385
        %v2402 = vrot.slane %v1505, 3
        %v2403 = vrot.slane %v1506, 3
        %v2404 = vsel %vm1207, %v2402, %v2403
        %v2405 = vrot.slane %v1507, 3
        %v2406 = vsel %vm1207, %v2403, %v2405
        %v2407 = vrot.slane %v1508, 3
        %v2408 = vsel %vm1207, %v2405, %v2407
        %v2409 = vrot.slane %v1509, 3
        %v2410 = vsel %vm1207, %v2407, %v2409
        %v2411 = vrot.slane %v1510, 3
        %v2412 = vsel %vm1207, %v2409, %v2411
        %v2413 = vrot.slane %v1511, 3
        %v2414 = vsel %vm1207, %v2411, %v2413
        %v2416 = vsel %vm394, %v2404, 0
        %v2419 = vsel %vm394, %v2406, 0
        %v2422 = vsel %vm394, %v2408, 0
        %v2425 = vsel %vm394, %v2410, 0
        %v2428 = vsel %vm394, %v2412, 0
        %v2431 = vsel %vm394, %v2414, 0
        %v2434 = vsel %vm394, %v2413, 0
        %v2437 = vsel %vm416, %v292, 0
        %2439 = vmatprep.subr.bf16.mxu0 0
        %2440 = vmatpush1.bf16.msra.mxu0 %v2437
        %2441 = vmatprep.subr.bf16.mxu0 0
        %2442 = vmatpush1.bf16.msra.mxu0 0
        %2443 = vmatprep.subr.bf16.mxu0 0
        %2444 = vmatpush1.bf16.msra.mxu0 0
        %2445 = vmatprep.subr.bf16.mxu0 0
        %2446 = vmatpush1.bf16.msra.mxu0 0
        %2447 = vmatprep.subr.bf16.mxu0 0
        %2448 = vmatpush1.bf16.msra.mxu0 0
        %2449 = vmatprep.subr.bf16.mxu0 0
        %2450 = vmatpush1.bf16.msra.mxu0 0
        %2451 = vmatprep.subr.bf16.mxu0 0
        %2452 = vmatpush1.bf16.msra.mxu0 0
        %2453 = vmatprep.subr.bf16.mxu0 0
        %2454 = vmatpush1.bf16.msra.mxu0 0
        %2455 = vmatprep.subr.bf16.mxu0 0
        %2456 = vmatpush1.bf16.msra.mxu0 0
        %2457 = vmatprep.subr.bf16.mxu0 0
        %2458 = vmatpush1.bf16.msra.mxu0 0
        %2459 = vmatprep.subr.bf16.mxu0 0
        %2460 = vmatpush1.bf16.msra.mxu0 0
        %2461 = vmatprep.subr.bf16.mxu0 0
        %2462 = vmatpush1.bf16.msra.mxu0 0
        %2463 = vmatprep.subr.bf16.mxu0 0
        %2464 = vmatpush1.bf16.msra.mxu0 0
        %2465 = vmatprep.subr.bf16.mxu0 0
        %2466 = vmatpush1.bf16.msra.mxu0 0
        %2467 = vmatprep.subr.bf16.mxu0 0
        %2468 = vmatpush1.bf16.msra.mxu0 0
        %2469 = vmatprep.subr.bf16.mxu0 0
        %2470 = vmatpush1.bf16.msra.mxu0 0
        %2471 = vmatprep.mubr.bf16.mxu0 0
        %2472 = vmatmul.mubr.bf16.gmra.mrb[0].mxu0 %v2416
        %v2473 = vpop.f32.mrb[0].mxu0
        %v2474 = vadd.f32 0.0, %v2473
        %v2475 = vpop.f32.mrb[0].mxu0
        %v2476 = vpop.f32.mrb[0].mxu0
        %v2477 = vadd.f32 0.0, %v2476
        %v2478 = vpop.f32.mrb[0].mxu0
        %2479 = vmatprep.mubr.bf16.mxu0 0
        %2480 = vmatmul.mubr.bf16.gmra.mrb[0].mxu0 %v2419
        %v2481 = vpop.f32.mrb[0].mxu0
        %v2482 = vadd.f32 0.0, %v2481
        %v2483 = vpop.f32.mrb[0].mxu0
        %v2484 = vpop.f32.mrb[0].mxu0
        %v2485 = vadd.f32 0.0, %v2484
        %v2486 = vpop.f32.mrb[0].mxu0
        %2487 = vmatprep.mubr.bf16.mxu0 0
        %2488 = vmatmul.mubr.bf16.gmra.mrb[0].mxu0 %v2422
        %v2489 = vpop.f32.mrb[0].mxu0
        %v2490 = vadd.f32 0.0, %v2489
        %v2491 = vpop.f32.mrb[0].mxu0
        %v2492 = vpop.f32.mrb[0].mxu0
        %v2493 = vadd.f32 0.0, %v2492
        %v2494 = vpop.f32.mrb[0].mxu0
        %2495 = vmatprep.mubr.bf16.mxu0 0
        %2496 = vmatmul.mubr.bf16.gmra.mrb[0].mxu0 %v2425
        %v2497 = vpop.f32.mrb[0].mxu0
        %v2498 = vadd.f32 0.0, %v2497
        %v2499 = vpop.f32.mrb[0].mxu0
        %v2500 = vpop.f32.mrb[0].mxu0
        %v2501 = vadd.f32 0.0, %v2500
        %v2502 = vpop.f32.mrb[0].mxu0
        %2503 = vmatprep.mubr.bf16.mxu0 0
        %2504 = vmatmul.mubr.bf16.gmra.mrb[0].mxu0 %v2428
        %v2505 = vpop.f32.mrb[0].mxu0
        %v2506 = vadd.f32 0.0, %v2505
        %v2507 = vpop.f32.mrb[0].mxu0
        %v2508 = vpop.f32.mrb[0].mxu0
        %v2509 = vadd.f32 0.0, %v2508
        %v2510 = vpop.f32.mrb[0].mxu0
        %2511 = vmatprep.mubr.bf16.mxu0 0
        %2512 = vmatmul.mubr.bf16.gmra.mrb[0].mxu0 %v2431
        %v2513 = vpop.f32.mrb[0].mxu0
        %v2514 = vadd.f32 0.0, %v2513
        %v2515 = vpop.f32.mrb[0].mxu0
        %v2516 = vpop.f32.mrb[0].mxu0
        %v2517 = vadd.f32 0.0, %v2516
        %v2518 = vpop.f32.mrb[0].mxu0
        %2519 = vmatprep.mubr.bf16.mxu0 0
        %2520 = vmatmul.mubr.bf16.gmra.mrb[0].mxu0 %v2434
        %v2521 = vpop.f32.mrb[0].mxu0
        %v2522 = vadd.f32 0.0, %v2521
        %v2523 = vpop.f32.mrb[0].mxu0
        %v2524 = vpop.f32.mrb[0].mxu0
        %v2525 = vadd.f32 0.0, %v2524
        %v2526 = vpop.f32.mrb[0].mxu0
        %2527 = vdwg.mxu0
        %v2528 = vadd.f32 %v2388, %v2474
        %v2529 = vadd.f32 %v2389, %v2477
        %v2530 = vadd.f32 %v2390, %v2482
        %v2531 = vadd.f32 %v2391, %v2485
        %v2532 = vadd.f32 %v2392, %v2490
        %v2533 = vadd.f32 %v2393, %v2493
        %v2534 = vadd.f32 %v2394, %v2498
        %v2535 = vadd.f32 %v2395, %v2501
        %v2536 = vadd.f32 %v2396, %v2506
        %v2537 = vadd.f32 %v2397, %v2509
        %v2538 = vadd.f32 %v2398, %v2514
        %v2539 = vadd.f32 %v2399, %v2517
        %v2540 = vadd.f32 %v2400, %v2522
        %v2541 = vadd.f32 %v2401, %v2525
        %v2542 = vrot.slane %v1639, 3
        %v2543 = vrot.slane %v1641, 4
        %v2544 = vor.u32 %v2542, %v2543
        %v2545 = vrot.slane %v1649, 3
        %v2546 = vrot.slane %v1645, 4
        %v2547 = vor.u32 %v2545, %v2546
        %v2548 = vsel %vm1348, %v2544, %v2547
        %v2549 = vrot.slane %v1656, 3
        %v2550 = vrot.slane %v1652, 4
        %v2551 = vor.u32 %v2549, %v2550
        %v2552 = vsel %vm1348, %v2547, %v2551
        %v2553 = vrot.slane %v1663, 3
        %v2554 = vrot.slane %v1659, 4
        %v2555 = vor.u32 %v2553, %v2554
        %v2556 = vsel %vm1348, %v2551, %v2555
        %v2557 = vrot.slane %v1670, 3
        %v2558 = vrot.slane %v1666, 4
        %v2559 = vor.u32 %v2557, %v2558
        %v2560 = vsel %vm1348, %v2555, %v2559
        %v2561 = vrot.slane %v1677, 3
        %v2562 = vrot.slane %v1673, 4
        %v2563 = vor.u32 %v2561, %v2562
        %v2564 = vsel %vm1348, %v2559, %v2563
        %v2565 = vrot.slane %v1684, 3
        %v2566 = vrot.slane %v1680, 4
        %v2567 = vor.u32 %v2565, %v2566
        %v2568 = vsel %vm1348, %v2563, %v2567
        %v2570 = vsel %vm394, %v2548, 0
        %v2573 = vsel %vm394, %v2552, 0
        %v2576 = vsel %vm394, %v2556, 0
        %v2579 = vsel %vm394, %v2560, 0
        %v2582 = vsel %vm394, %v2564, 0
        %v2585 = vsel %vm394, %v2568, 0
        %v2588 = vsel %vm394, %v2567, 0
        %v2591 = vsel %vm416, %v293, 0
        %2593 = vmatprep.subr.bf16.mxu0 0
        %2594 = vmatpush1.bf16.msra.mxu0 %v2591
        %2595 = vmatprep.subr.bf16.mxu0 0
        %2596 = vmatpush1.bf16.msra.mxu0 0
        %2597 = vmatprep.subr.bf16.mxu0 0
        %2598 = vmatpush1.bf16.msra.mxu0 0
        %2599 = vmatprep.subr.bf16.mxu0 0
        %2600 = vmatpush1.bf16.msra.mxu0 0
        %2601 = vmatprep.subr.bf16.mxu0 0
        %2602 = vmatpush1.bf16.msra.mxu0 0
        %2603 = vmatprep.subr.bf16.mxu0 0
        %2604 = vmatpush1.bf16.msra.mxu0 0
        %2605 = vmatprep.subr.bf16.mxu0 0
        %2606 = vmatpush1.bf16.msra.mxu0 0
        %2607 = vmatprep.subr.bf16.mxu0 0
        %2608 = vmatpush1.bf16.msra.mxu0 0
        %2609 = vmatprep.subr.bf16.mxu0 0
        %2610 = vmatpush1.bf16.msra.mxu0 0
        %2611 = vmatprep.subr.bf16.mxu0 0
        %2612 = vmatpush1.bf16.msra.mxu0 0
        %2613 = vmatprep.subr.bf16.mxu0 0
        %2614 = vmatpush1.bf16.msra.mxu0 0
        %2615 = vmatprep.subr.bf16.mxu0 0
        %2616 = vmatpush1.bf16.msra.mxu0 0
        %2617 = vmatprep.subr.bf16.mxu0 0
        %2618 = vmatpush1.bf16.msra.mxu0 0
        %2619 = vmatprep.subr.bf16.mxu0 0
        %2620 = vmatpush1.bf16.msra.mxu0 0
        %2621 = vmatprep.subr.bf16.mxu0 0
        %2622 = vmatpush1.bf16.msra.mxu0 0
        %2623 = vmatprep.subr.bf16.mxu0 0
        %2624 = vmatpush1.bf16.msra.mxu0 0
        %2625 = vmatprep.mubr.bf16.mxu0 0
        %2626 = vmatmul.mubr.bf16.gmra.mrb[0].mxu0 %v2570
        %v2627 = vpop.f32.mrb[0].mxu0
        %v2628 = vadd.f32 0.0, %v2627
        %v2629 = vpop.f32.mrb[0].mxu0
        %v2630 = vpop.f32.mrb[0].mxu0
        %v2631 = vadd.f32 0.0, %v2630
        %v2632 = vpop.f32.mrb[0].mxu0
        %2633 = vmatprep.mubr.bf16.mxu0 0
        %2634 = vmatmul.mubr.bf16.gmra.mrb[0].mxu0 %v2573
        %v2635 = vpop.f32.mrb[0].mxu0
        %v2636 = vadd.f32 0.0, %v2635
        %v2637 = vpop.f32.mrb[0].mxu0
        %v2638 = vpop.f32.mrb[0].mxu0
        %v2639 = vadd.f32 0.0, %v2638
        %v2640 = vpop.f32.mrb[0].mxu0
        %2641 = vmatprep.mubr.bf16.mxu0 0
        %2642 = vmatmul.mubr.bf16.gmra.mrb[0].mxu0 %v2576
        %v2643 = vpop.f32.mrb[0].mxu0
        %v2644 = vadd.f32 0.0, %v2643
        %v2645 = vpop.f32.mrb[0].mxu0
        %v2646 = vpop.f32.mrb[0].mxu0
        %v2647 = vadd.f32 0.0, %v2646
        %v2648 = vpop.f32.mrb[0].mxu0
        %2649 = vmatprep.mubr.bf16.mxu0 0
        %2650 = vmatmul.mubr.bf16.gmra.mrb[0].mxu0 %v2579
        %v2651 = vpop.f32.mrb[0].mxu0
        %v2652 = vadd.f32 0.0, %v2651
        %v2653 = vpop.f32.mrb[0].mxu0
        %v2654 = vpop.f32.mrb[0].mxu0
        %v2655 = vadd.f32 0.0, %v2654
        %v2656 = vpop.f32.mrb[0].mxu0
        %2657 = vmatprep.mubr.bf16.mxu0 0
        %2658 = vmatmul.mubr.bf16.gmra.mrb[0].mxu0 %v2582
        %v2659 = vpop.f32.mrb[0].mxu0
        %v2660 = vadd.f32 0.0, %v2659
        %v2661 = vpop.f32.mrb[0].mxu0
        %v2662 = vpop.f32.mrb[0].mxu0
        %v2663 = vadd.f32 0.0, %v2662
        %v2664 = vpop.f32.mrb[0].mxu0
        %2665 = vmatprep.mubr.bf16.mxu0 0
        %2666 = vmatmul.mubr.bf16.gmra.mrb[0].mxu0 %v2585
        %v2667 = vpop.f32.mrb[0].mxu0
        %v2668 = vadd.f32 0.0, %v2667
        %v2669 = vpop.f32.mrb[0].mxu0
        %v2670 = vpop.f32.mrb[0].mxu0
        %v2671 = vadd.f32 0.0, %v2670
        %v2672 = vpop.f32.mrb[0].mxu0
        %2673 = vmatprep.mubr.bf16.mxu0 0
        %2674 = vmatmul.mubr.bf16.gmra.mrb[0].mxu0 %v2588
        %v2675 = vpop.f32.mrb[0].mxu0
        %v2676 = vadd.f32 0.0, %v2675
        %v2677 = vpop.f32.mrb[0].mxu0
        %v2678 = vpop.f32.mrb[0].mxu0
        %v2679 = vadd.f32 0.0, %v2678
        %v2680 = vpop.f32.mrb[0].mxu0
        %2681 = vdwg.mxu0
        %v2682 = vadd.f32 %v2528, %v2628
        %v2683 = vadd.f32 %v2529, %v2631
        %v2684 = vadd.f32 %v2530, %v2636
        %v2685 = vadd.f32 %v2531, %v2639
        %v2686 = vadd.f32 %v2532, %v2644
        %v2687 = vadd.f32 %v2533, %v2647
        %v2688 = vadd.f32 %v2534, %v2652
        %v2689 = vadd.f32 %v2535, %v2655
        %v2690 = vadd.f32 %v2536, %v2660
        %v2691 = vadd.f32 %v2537, %v2663
        %v2692 = vadd.f32 %v2538, %v2668
        %v2693 = vadd.f32 %v2539, %v2671
        %v2694 = vadd.f32 %v2540, %v2676
        %v2695 = vadd.f32 %v2541, %v2679
        %v2697 = vunpack.c.l.b16 %v276
        %v2698 = vpack.c.b16 %v2697, %v1504
        %v2700 = vsel %vm394, %v2698, 0
        %v2703 = vsel %vm416, %v294, 0
        %2705 = vmatprep.subr.bf16.mxu0 0
        %2706 = vmatpush1.bf16.msra.mxu0 %v2703
        %2707 = vmatprep.subr.bf16.mxu0 0
        %2708 = vmatpush1.bf16.msra.mxu0 0
        %2709 = vmatprep.subr.bf16.mxu0 0
        %2710 = vmatpush1.bf16.msra.mxu0 0
        %2711 = vmatprep.subr.bf16.mxu0 0
        %2712 = vmatpush1.bf16.msra.mxu0 0
        %2713 = vmatprep.subr.bf16.mxu0 0
        %2714 = vmatpush1.bf16.msra.mxu0 0
        %2715 = vmatprep.subr.bf16.mxu0 0
        %2716 = vmatpush1.bf16.msra.mxu0 0
        %2717 = vmatprep.subr.bf16.mxu0 0
        %2718 = vmatpush1.bf16.msra.mxu0 0
        %2719 = vmatprep.subr.bf16.mxu0 0
        %2720 = vmatpush1.bf16.msra.mxu0 0
        %2721 = vmatprep.subr.bf16.mxu0 0
        %2722 = vmatpush1.bf16.msra.mxu0 0
        %2723 = vmatprep.subr.bf16.mxu0 0
        %2724 = vmatpush1.bf16.msra.mxu0 0
        %2725 = vmatprep.subr.bf16.mxu0 0
        %2726 = vmatpush1.bf16.msra.mxu0 0
        %2727 = vmatprep.subr.bf16.mxu0 0
        %2728 = vmatpush1.bf16.msra.mxu0 0
        %2729 = vmatprep.subr.bf16.mxu0 0
        %2730 = vmatpush1.bf16.msra.mxu0 0
        %2731 = vmatprep.subr.bf16.mxu0 0
        %2732 = vmatpush1.bf16.msra.mxu0 0
        %2733 = vmatprep.subr.bf16.mxu0 0
        %2734 = vmatpush1.bf16.msra.mxu0 0
        %2735 = vmatprep.subr.bf16.mxu0 0
        %2736 = vmatpush1.bf16.msra.mxu0 0
        %2737 = vmatprep.mubr.bf16.mxu0 0
        %2738 = vmatmul.mubr.bf16.gmra.mrb[0].mxu0 %v511
        %v2739 = vpop.f32.mrb[0].mxu0
        %v2740 = vadd.f32 0.0, %v2739
        %v2741 = vpop.f32.mrb[0].mxu0
        %v2742 = vpop.f32.mrb[0].mxu0
        %v2743 = vadd.f32 0.0, %v2742
        %v2744 = vpop.f32.mrb[0].mxu0
        %2745 = vmatprep.mubr.bf16.mxu0 0
        %2746 = vmatmul.mubr.bf16.gmra.mrb[0].mxu0 %v513
        %v2747 = vpop.f32.mrb[0].mxu0
        %v2748 = vadd.f32 0.0, %v2747
        %v2749 = vpop.f32.mrb[0].mxu0
        %v2750 = vpop.f32.mrb[0].mxu0
        %v2751 = vadd.f32 0.0, %v2750
        %v2752 = vpop.f32.mrb[0].mxu0
        %2753 = vmatprep.mubr.bf16.mxu0 0
        %2754 = vmatmul.mubr.bf16.gmra.mrb[0].mxu0 %v515
        %v2755 = vpop.f32.mrb[0].mxu0
        %v2756 = vadd.f32 0.0, %v2755
        %v2757 = vpop.f32.mrb[0].mxu0
        %v2758 = vpop.f32.mrb[0].mxu0
        %v2759 = vadd.f32 0.0, %v2758
        %v2760 = vpop.f32.mrb[0].mxu0
        %2761 = vmatprep.mubr.bf16.mxu0 0
        %2762 = vmatmul.mubr.bf16.gmra.mrb[0].mxu0 %v517
        %v2763 = vpop.f32.mrb[0].mxu0
        %v2764 = vadd.f32 0.0, %v2763
        %v2765 = vpop.f32.mrb[0].mxu0
        %v2766 = vpop.f32.mrb[0].mxu0
        %v2767 = vadd.f32 0.0, %v2766
        %v2768 = vpop.f32.mrb[0].mxu0
        %2769 = vmatprep.mubr.bf16.mxu0 0
        %2770 = vmatmul.mubr.bf16.gmra.mrb[0].mxu0 %v519
        %v2771 = vpop.f32.mrb[0].mxu0
        %v2772 = vadd.f32 0.0, %v2771
        %v2773 = vpop.f32.mrb[0].mxu0
        %v2774 = vpop.f32.mrb[0].mxu0
        %v2775 = vadd.f32 0.0, %v2774
        %v2776 = vpop.f32.mrb[0].mxu0
        %2777 = vmatprep.mubr.bf16.mxu0 0
        %2778 = vmatmul.mubr.bf16.gmra.mrb[0].mxu0 %v521
        %v2779 = vpop.f32.mrb[0].mxu0
        %v2780 = vadd.f32 0.0, %v2779
        %v2781 = vpop.f32.mrb[0].mxu0
        %v2782 = vpop.f32.mrb[0].mxu0
        %v2783 = vadd.f32 0.0, %v2782
        %v2784 = vpop.f32.mrb[0].mxu0
        %2785 = vmatprep.mubr.bf16.mxu0 0
        %2786 = vmatmul.mubr.bf16.gmra.mrb[0].mxu0 %v2700
        %v2787 = vpop.f32.mrb[0].mxu0
        %v2788 = vadd.f32 0.0, %v2787
        %v2789 = vpop.f32.mrb[0].mxu0
        %v2790 = vpop.f32.mrb[0].mxu0
        %v2791 = vadd.f32 0.0, %v2790
        %v2792 = vpop.f32.mrb[0].mxu0
        %2793 = vdwg.mxu0
        %v2794 = vadd.f32 %v2682, %v2740
        %v2795 = vadd.f32 %v2683, %v2743
        %v2796 = vadd.f32 %v2684, %v2748
        %v2797 = vadd.f32 %v2685, %v2751
        %v2798 = vadd.f32 %v2686, %v2756
        %v2799 = vadd.f32 %v2687, %v2759
        %v2800 = vadd.f32 %v2688, %v2764
        %v2801 = vadd.f32 %v2689, %v2767
        %v2802 = vadd.f32 %v2690, %v2772
        %v2803 = vadd.f32 %v2691, %v2775
        %v2804 = vadd.f32 %v2692, %v2780
        %v2805 = vadd.f32 %v2693, %v2783
        %v2806 = vadd.f32 %v2694, %v2788
        %v2807 = vadd.f32 %v2695, %v2791
        %v2808 = vshll.u32 %v2698, 16
        %v2810 = vrot.slane %v2808, 1
        %v2811 = vsel %vm338, %v393, %v2810
        %v2812 = vshrl.u32 %v2698, 16
        %v2814 = vor.u32 %v2812, %v2810
        %v2816 = vsel %vm394, %v2811, 0
        %v2819 = vsel %vm394, %v2814, 0
        %v2822 = vsel %vm416, %v295, 0
        %2824 = vmatprep.subr.bf16.mxu0 0
        %2825 = vmatpush1.bf16.msra.mxu0 %v2822
        %2826 = vmatprep.subr.bf16.mxu0 0
        %2827 = vmatpush1.bf16.msra.mxu0 0
        %2828 = vmatprep.subr.bf16.mxu0 0
        %2829 = vmatpush1.bf16.msra.mxu0 0
        %2830 = vmatprep.subr.bf16.mxu0 0
        %2831 = vmatpush1.bf16.msra.mxu0 0
        %2832 = vmatprep.subr.bf16.mxu0 0
        %2833 = vmatpush1.bf16.msra.mxu0 0
        %2834 = vmatprep.subr.bf16.mxu0 0
        %2835 = vmatpush1.bf16.msra.mxu0 0
        %2836 = vmatprep.subr.bf16.mxu0 0
        %2837 = vmatpush1.bf16.msra.mxu0 0
        %2838 = vmatprep.subr.bf16.mxu0 0
        %2839 = vmatpush1.bf16.msra.mxu0 0
        %2840 = vmatprep.subr.bf16.mxu0 0
        %2841 = vmatpush1.bf16.msra.mxu0 0
        %2842 = vmatprep.subr.bf16.mxu0 0
        %2843 = vmatpush1.bf16.msra.mxu0 0
        %2844 = vmatprep.subr.bf16.mxu0 0
        %2845 = vmatpush1.bf16.msra.mxu0 0
        %2846 = vmatprep.subr.bf16.mxu0 0
        %2847 = vmatpush1.bf16.msra.mxu0 0
        %2848 = vmatprep.subr.bf16.mxu0 0
        %2849 = vmatpush1.bf16.msra.mxu0 0
        %2850 = vmatprep.subr.bf16.mxu0 0
        %2851 = vmatpush1.bf16.msra.mxu0 0
        %2852 = vmatprep.subr.bf16.mxu0 0
        %2853 = vmatpush1.bf16.msra.mxu0 0
        %2854 = vmatprep.subr.bf16.mxu0 0
        %2855 = vmatpush1.bf16.msra.mxu0 0
        %2856 = vmatprep.mubr.bf16.mxu0 0
        %2857 = vmatmul.mubr.bf16.gmra.mrb[0].mxu0 %v399
        %v2858 = vpop.f32.mrb[0].mxu0
        %v2859 = vadd.f32 0.0, %v2858
        %v2860 = vpop.f32.mrb[0].mxu0
        %v2861 = vpop.f32.mrb[0].mxu0
        %v2862 = vadd.f32 0.0, %v2861
        %v2863 = vpop.f32.mrb[0].mxu0
        %2864 = vmatprep.mubr.bf16.mxu0 0
        %2865 = vmatmul.mubr.bf16.gmra.mrb[0].mxu0 %v402
        %v2866 = vpop.f32.mrb[0].mxu0
        %v2867 = vadd.f32 0.0, %v2866
        %v2868 = vpop.f32.mrb[0].mxu0
        %v2869 = vpop.f32.mrb[0].mxu0
        %v2870 = vadd.f32 0.0, %v2869
        %v2871 = vpop.f32.mrb[0].mxu0
        %2872 = vmatprep.mubr.bf16.mxu0 0
        %2873 = vmatmul.mubr.bf16.gmra.mrb[0].mxu0 %v405
        %v2874 = vpop.f32.mrb[0].mxu0
        %v2875 = vadd.f32 0.0, %v2874
        %v2876 = vpop.f32.mrb[0].mxu0
        %v2877 = vpop.f32.mrb[0].mxu0
        %v2878 = vadd.f32 0.0, %v2877
        %v2879 = vpop.f32.mrb[0].mxu0
        %2880 = vmatprep.mubr.bf16.mxu0 0
        %2881 = vmatmul.mubr.bf16.gmra.mrb[0].mxu0 %v408
        %v2882 = vpop.f32.mrb[0].mxu0
        %v2883 = vadd.f32 0.0, %v2882
        %v2884 = vpop.f32.mrb[0].mxu0
        %v2885 = vpop.f32.mrb[0].mxu0
        %v2886 = vadd.f32 0.0, %v2885
        %v2887 = vpop.f32.mrb[0].mxu0
        %2888 = vmatprep.mubr.bf16.mxu0 0
        %2889 = vmatmul.mubr.bf16.gmra.mrb[0].mxu0 %v411
        %v2890 = vpop.f32.mrb[0].mxu0
        %v2891 = vadd.f32 0.0, %v2890
        %v2892 = vpop.f32.mrb[0].mxu0
        %v2893 = vpop.f32.mrb[0].mxu0
        %v2894 = vadd.f32 0.0, %v2893
        %v2895 = vpop.f32.mrb[0].mxu0
        %2896 = vmatprep.mubr.bf16.mxu0 0
        %2897 = vmatmul.mubr.bf16.gmra.mrb[0].mxu0 %v2816
        %v2898 = vpop.f32.mrb[0].mxu0
        %v2899 = vadd.f32 0.0, %v2898
        %v2900 = vpop.f32.mrb[0].mxu0
        %v2901 = vpop.f32.mrb[0].mxu0
        %v2902 = vadd.f32 0.0, %v2901
        %v2903 = vpop.f32.mrb[0].mxu0
        %2904 = vmatprep.mubr.bf16.mxu0 0
        %2905 = vmatmul.mubr.bf16.gmra.mrb[0].mxu0 %v2819
        %v2906 = vpop.f32.mrb[0].mxu0
        %v2907 = vadd.f32 0.0, %v2906
        %v2908 = vpop.f32.mrb[0].mxu0
        %v2909 = vpop.f32.mrb[0].mxu0
        %v2910 = vadd.f32 0.0, %v2909
        %v2911 = vpop.f32.mrb[0].mxu0
        %2912 = vdwg.mxu0
        %v2913 = vadd.f32 %v2794, %v2859
        %v2914 = vadd.f32 %v2795, %v2862
        %v2915 = vadd.f32 %v2796, %v2867
        %v2916 = vadd.f32 %v2797, %v2870
        %v2917 = vadd.f32 %v2798, %v2875
        %v2918 = vadd.f32 %v2799, %v2878
        %v2919 = vadd.f32 %v2800, %v2883
        %v2920 = vadd.f32 %v2801, %v2886
        %v2921 = vadd.f32 %v2802, %v2891
        %v2922 = vadd.f32 %v2803, %v2894
        %v2923 = vadd.f32 %v2804, %v2899
        %v2924 = vadd.f32 %v2805, %v2902
        %v2925 = vadd.f32 %v2806, %v2907
        %v2926 = vadd.f32 %v2807, %v2910
        %v2927 = vrot.slane %v2698, 1
        %v2928 = vsel %vm615, %v627, %v2927
        %v2930 = vsel %vm394, %v2928, 0
        %v2933 = vsel %vm394, %v2927, 0
        %v2936 = vsel %vm416, %v296, 0
        %2938 = vmatprep.subr.bf16.mxu0 0
        %2939 = vmatpush1.bf16.msra.mxu0 %v2936
        %2940 = vmatprep.subr.bf16.mxu0 0
        %2941 = vmatpush1.bf16.msra.mxu0 0
        %2942 = vmatprep.subr.bf16.mxu0 0
        %2943 = vmatpush1.bf16.msra.mxu0 0
        %2944 = vmatprep.subr.bf16.mxu0 0
        %2945 = vmatpush1.bf16.msra.mxu0 0
        %2946 = vmatprep.subr.bf16.mxu0 0
        %2947 = vmatpush1.bf16.msra.mxu0 0
        %2948 = vmatprep.subr.bf16.mxu0 0
        %2949 = vmatpush1.bf16.msra.mxu0 0
        %2950 = vmatprep.subr.bf16.mxu0 0
        %2951 = vmatpush1.bf16.msra.mxu0 0
        %2952 = vmatprep.subr.bf16.mxu0 0
        %2953 = vmatpush1.bf16.msra.mxu0 0
        %2954 = vmatprep.subr.bf16.mxu0 0
        %2955 = vmatpush1.bf16.msra.mxu0 0
        %2956 = vmatprep.subr.bf16.mxu0 0
        %2957 = vmatpush1.bf16.msra.mxu0 0
        %2958 = vmatprep.subr.bf16.mxu0 0
        %2959 = vmatpush1.bf16.msra.mxu0 0
        %2960 = vmatprep.subr.bf16.mxu0 0
        %2961 = vmatpush1.bf16.msra.mxu0 0
        %2962 = vmatprep.subr.bf16.mxu0 0
        %2963 = vmatpush1.bf16.msra.mxu0 0
        %2964 = vmatprep.subr.bf16.mxu0 0
        %2965 = vmatpush1.bf16.msra.mxu0 0
        %2966 = vmatprep.subr.bf16.mxu0 0
        %2967 = vmatpush1.bf16.msra.mxu0 0
        %2968 = vmatprep.subr.bf16.mxu0 0
        %2969 = vmatpush1.bf16.msra.mxu0 0
        %2970 = vmatprep.mubr.bf16.mxu0 0
        %2971 = vmatmul.mubr.bf16.gmra.mrb[0].mxu0 %v633
        %v2972 = vpop.f32.mrb[0].mxu0
        %v2973 = vadd.f32 0.0, %v2972
        %v2974 = vpop.f32.mrb[0].mxu0
        %v2975 = vpop.f32.mrb[0].mxu0
        %v2976 = vadd.f32 0.0, %v2975
        %v2977 = vpop.f32.mrb[0].mxu0
        %2978 = vmatprep.mubr.bf16.mxu0 0
        %2979 = vmatmul.mubr.bf16.gmra.mrb[0].mxu0 %v636
        %v2980 = vpop.f32.mrb[0].mxu0
        %v2981 = vadd.f32 0.0, %v2980
        %v2982 = vpop.f32.mrb[0].mxu0
        %v2983 = vpop.f32.mrb[0].mxu0
        %v2984 = vadd.f32 0.0, %v2983
        %v2985 = vpop.f32.mrb[0].mxu0
        %2986 = vmatprep.mubr.bf16.mxu0 0
        %2987 = vmatmul.mubr.bf16.gmra.mrb[0].mxu0 %v639
        %v2988 = vpop.f32.mrb[0].mxu0
        %v2989 = vadd.f32 0.0, %v2988
        %v2990 = vpop.f32.mrb[0].mxu0
        %v2991 = vpop.f32.mrb[0].mxu0
        %v2992 = vadd.f32 0.0, %v2991
        %v2993 = vpop.f32.mrb[0].mxu0
        %2994 = vmatprep.mubr.bf16.mxu0 0
        %2995 = vmatmul.mubr.bf16.gmra.mrb[0].mxu0 %v642
        %v2996 = vpop.f32.mrb[0].mxu0
        %v2997 = vadd.f32 0.0, %v2996
        %v2998 = vpop.f32.mrb[0].mxu0
        %v2999 = vpop.f32.mrb[0].mxu0
        %v3000 = vadd.f32 0.0, %v2999
        %v3001 = vpop.f32.mrb[0].mxu0
        %3002 = vmatprep.mubr.bf16.mxu0 0
        %3003 = vmatmul.mubr.bf16.gmra.mrb[0].mxu0 %v645
        %v3004 = vpop.f32.mrb[0].mxu0
        %v3005 = vadd.f32 0.0, %v3004
        %v3006 = vpop.f32.mrb[0].mxu0
        %v3007 = vpop.f32.mrb[0].mxu0
        %v3008 = vadd.f32 0.0, %v3007
        %v3009 = vpop.f32.mrb[0].mxu0
        %3010 = vmatprep.mubr.bf16.mxu0 0
        %3011 = vmatmul.mubr.bf16.gmra.mrb[0].mxu0 %v2930
        %v3012 = vpop.f32.mrb[0].mxu0
        %v3013 = vadd.f32 0.0, %v3012
        %v3014 = vpop.f32.mrb[0].mxu0
        %v3015 = vpop.f32.mrb[0].mxu0
        %v3016 = vadd.f32 0.0, %v3015
        %v3017 = vpop.f32.mrb[0].mxu0
        %3018 = vmatprep.mubr.bf16.mxu0 0
        %3019 = vmatmul.mubr.bf16.gmra.mrb[0].mxu0 %v2933
        %v3020 = vpop.f32.mrb[0].mxu0
        %v3021 = vadd.f32 0.0, %v3020
        %v3022 = vpop.f32.mrb[0].mxu0
        %v3023 = vpop.f32.mrb[0].mxu0
        %v3024 = vadd.f32 0.0, %v3023
        %v3025 = vpop.f32.mrb[0].mxu0
        %3026 = vdwg.mxu0
        %v3027 = vadd.f32 %v2913, %v2973
        %v3028 = vadd.f32 %v2914, %v2976
        %v3029 = vadd.f32 %v2915, %v2981
        %v3030 = vadd.f32 %v2916, %v2984
        %v3031 = vadd.f32 %v2917, %v2989
        %v3032 = vadd.f32 %v2918, %v2992
        %v3033 = vadd.f32 %v2919, %v2997
        %v3034 = vadd.f32 %v2920, %v3000
        %v3035 = vadd.f32 %v2921, %v3005
        %v3036 = vadd.f32 %v2922, %v3008
        %v3037 = vadd.f32 %v2923, %v3013
        %v3038 = vadd.f32 %v2924, %v3016
        %v3039 = vadd.f32 %v2925, %v3021
        %v3040 = vadd.f32 %v2926, %v3024
        %v3041 = vrot.slane %v2812, 1
        %v3042 = vrot.slane %v2808, 2
        %v3043 = vor.u32 %v3041, %v3042
        %v3044 = vsel %vm756, %v782, %v3043
        %v3046 = vsel %vm394, %v3044, 0
        %v3049 = vsel %vm394, %v3043, 0
        %v3052 = vsel %vm416, %v297, 0
        %3054 = vmatprep.subr.bf16.mxu0 0
        %3055 = vmatpush1.bf16.msra.mxu0 %v3052
        %3056 = vmatprep.subr.bf16.mxu0 0
        %3057 = vmatpush1.bf16.msra.mxu0 0
        %3058 = vmatprep.subr.bf16.mxu0 0
        %3059 = vmatpush1.bf16.msra.mxu0 0
        %3060 = vmatprep.subr.bf16.mxu0 0
        %3061 = vmatpush1.bf16.msra.mxu0 0
        %3062 = vmatprep.subr.bf16.mxu0 0
        %3063 = vmatpush1.bf16.msra.mxu0 0
        %3064 = vmatprep.subr.bf16.mxu0 0
        %3065 = vmatpush1.bf16.msra.mxu0 0
        %3066 = vmatprep.subr.bf16.mxu0 0
        %3067 = vmatpush1.bf16.msra.mxu0 0
        %3068 = vmatprep.subr.bf16.mxu0 0
        %3069 = vmatpush1.bf16.msra.mxu0 0
        %3070 = vmatprep.subr.bf16.mxu0 0
        %3071 = vmatpush1.bf16.msra.mxu0 0
        %3072 = vmatprep.subr.bf16.mxu0 0
        %3073 = vmatpush1.bf16.msra.mxu0 0
        %3074 = vmatprep.subr.bf16.mxu0 0
        %3075 = vmatpush1.bf16.msra.mxu0 0
        %3076 = vmatprep.subr.bf16.mxu0 0
        %3077 = vmatpush1.bf16.msra.mxu0 0
        %3078 = vmatprep.subr.bf16.mxu0 0
        %3079 = vmatpush1.bf16.msra.mxu0 0
        %3080 = vmatprep.subr.bf16.mxu0 0
        %3081 = vmatpush1.bf16.msra.mxu0 0
        %3082 = vmatprep.subr.bf16.mxu0 0
        %3083 = vmatpush1.bf16.msra.mxu0 0
        %3084 = vmatprep.subr.bf16.mxu0 0
        %3085 = vmatpush1.bf16.msra.mxu0 0
        %3086 = vmatprep.mubr.bf16.mxu0 0
        %3087 = vmatmul.mubr.bf16.gmra.mrb[0].mxu0 %v788
        %v3088 = vpop.f32.mrb[0].mxu0
        %v3089 = vadd.f32 0.0, %v3088
        %v3090 = vpop.f32.mrb[0].mxu0
        %v3091 = vpop.f32.mrb[0].mxu0
        %v3092 = vadd.f32 0.0, %v3091
        %v3093 = vpop.f32.mrb[0].mxu0
        %3094 = vmatprep.mubr.bf16.mxu0 0
        %3095 = vmatmul.mubr.bf16.gmra.mrb[0].mxu0 %v791
        %v3096 = vpop.f32.mrb[0].mxu0
        %v3097 = vadd.f32 0.0, %v3096
        %v3098 = vpop.f32.mrb[0].mxu0
        %v3099 = vpop.f32.mrb[0].mxu0
        %v3100 = vadd.f32 0.0, %v3099
        %v3101 = vpop.f32.mrb[0].mxu0
        %3102 = vmatprep.mubr.bf16.mxu0 0
        %3103 = vmatmul.mubr.bf16.gmra.mrb[0].mxu0 %v794
        %v3104 = vpop.f32.mrb[0].mxu0
        %v3105 = vadd.f32 0.0, %v3104
        %v3106 = vpop.f32.mrb[0].mxu0
        %v3107 = vpop.f32.mrb[0].mxu0
        %v3108 = vadd.f32 0.0, %v3107
        %v3109 = vpop.f32.mrb[0].mxu0
        %3110 = vmatprep.mubr.bf16.mxu0 0
        %3111 = vmatmul.mubr.bf16.gmra.mrb[0].mxu0 %v797
        %v3112 = vpop.f32.mrb[0].mxu0
        %v3113 = vadd.f32 0.0, %v3112
        %v3114 = vpop.f32.mrb[0].mxu0
        %v3115 = vpop.f32.mrb[0].mxu0
        %v3116 = vadd.f32 0.0, %v3115
        %v3117 = vpop.f32.mrb[0].mxu0
        %3118 = vmatprep.mubr.bf16.mxu0 0
        %3119 = vmatmul.mubr.bf16.gmra.mrb[0].mxu0 %v800
        %v3120 = vpop.f32.mrb[0].mxu0
        %v3121 = vadd.f32 0.0, %v3120
        %v3122 = vpop.f32.mrb[0].mxu0
        %v3123 = vpop.f32.mrb[0].mxu0
        %v3124 = vadd.f32 0.0, %v3123
        %v3125 = vpop.f32.mrb[0].mxu0
        %3126 = vmatprep.mubr.bf16.mxu0 0
        %3127 = vmatmul.mubr.bf16.gmra.mrb[0].mxu0 %v3046
        %v3128 = vpop.f32.mrb[0].mxu0
        %v3129 = vadd.f32 0.0, %v3128
        %v3130 = vpop.f32.mrb[0].mxu0
        %v3131 = vpop.f32.mrb[0].mxu0
        %v3132 = vadd.f32 0.0, %v3131
        %v3133 = vpop.f32.mrb[0].mxu0
        %3134 = vmatprep.mubr.bf16.mxu0 0
        %3135 = vmatmul.mubr.bf16.gmra.mrb[0].mxu0 %v3049
        %v3136 = vpop.f32.mrb[0].mxu0
        %v3137 = vadd.f32 0.0, %v3136
        %v3138 = vpop.f32.mrb[0].mxu0
        %v3139 = vpop.f32.mrb[0].mxu0
        %v3140 = vadd.f32 0.0, %v3139
        %v3141 = vpop.f32.mrb[0].mxu0
        %3142 = vdwg.mxu0
        %v3143 = vadd.f32 %v3027, %v3089
        %v3144 = vadd.f32 %v3028, %v3092
        %v3145 = vadd.f32 %v3029, %v3097
        %v3146 = vadd.f32 %v3030, %v3100
        %v3147 = vadd.f32 %v3031, %v3105
        %v3148 = vadd.f32 %v3032, %v3108
        %v3149 = vadd.f32 %v3033, %v3113
        %v3150 = vadd.f32 %v3034, %v3116
        %v3151 = vadd.f32 %v3035, %v3121
        %v3152 = vadd.f32 %v3036, %v3124
        %v3153 = vadd.f32 %v3037, %v3129
        %v3154 = vadd.f32 %v3038, %v3132
        %v3155 = vadd.f32 %v3039, %v3137
        %v3156 = vadd.f32 %v3040, %v3140
        %v3157 = vrot.slane %v2698, 2
        %v3158 = vsel %vm911, %v923, %v3157
        %v3160 = vsel %vm394, %v3158, 0
        %v3163 = vsel %vm394, %v3157, 0
        %v3166 = vsel %vm416, %v298, 0
        %3168 = vmatprep.subr.bf16.mxu0 0
        %3169 = vmatpush1.bf16.msra.mxu0 %v3166
        %3170 = vmatprep.subr.bf16.mxu0 0
        %3171 = vmatpush1.bf16.msra.mxu0 0
        %3172 = vmatprep.subr.bf16.mxu0 0
        %3173 = vmatpush1.bf16.msra.mxu0 0
        %3174 = vmatprep.subr.bf16.mxu0 0
        %3175 = vmatpush1.bf16.msra.mxu0 0
        %3176 = vmatprep.subr.bf16.mxu0 0
        %3177 = vmatpush1.bf16.msra.mxu0 0
        %3178 = vmatprep.subr.bf16.mxu0 0
        %3179 = vmatpush1.bf16.msra.mxu0 0
        %3180 = vmatprep.subr.bf16.mxu0 0
        %3181 = vmatpush1.bf16.msra.mxu0 0
        %3182 = vmatprep.subr.bf16.mxu0 0
        %3183 = vmatpush1.bf16.msra.mxu0 0
        %3184 = vmatprep.subr.bf16.mxu0 0
        %3185 = vmatpush1.bf16.msra.mxu0 0
        %3186 = vmatprep.subr.bf16.mxu0 0
        %3187 = vmatpush1.bf16.msra.mxu0 0
        %3188 = vmatprep.subr.bf16.mxu0 0
        %3189 = vmatpush1.bf16.msra.mxu0 0
        %3190 = vmatprep.subr.bf16.mxu0 0
        %3191 = vmatpush1.bf16.msra.mxu0 0
        %3192 = vmatprep.subr.bf16.mxu0 0
        %3193 = vmatpush1.bf16.msra.mxu0 0
        %3194 = vmatprep.subr.bf16.mxu0 0
        %3195 = vmatpush1.bf16.msra.mxu0 0
        %3196 = vmatprep.subr.bf16.mxu0 0
        %3197 = vmatpush1.bf16.msra.mxu0 0
        %3198 = vmatprep.subr.bf16.mxu0 0
        %3199 = vmatpush1.bf16.msra.mxu0 0
        %3200 = vmatprep.mubr.bf16.mxu0 0
        %3201 = vmatmul.mubr.bf16.gmra.mrb[0].mxu0 %v929
        %v3202 = vpop.f32.mrb[0].mxu0
        %v3203 = vadd.f32 0.0, %v3202
        %v3204 = vpop.f32.mrb[0].mxu0
        %v3205 = vpop.f32.mrb[0].mxu0
        %v3206 = vadd.f32 0.0, %v3205
        %v3207 = vpop.f32.mrb[0].mxu0
        %3208 = vmatprep.mubr.bf16.mxu0 0
        %3209 = vmatmul.mubr.bf16.gmra.mrb[0].mxu0 %v932
        %v3210 = vpop.f32.mrb[0].mxu0
        %v3211 = vadd.f32 0.0, %v3210
        %v3212 = vpop.f32.mrb[0].mxu0
        %v3213 = vpop.f32.mrb[0].mxu0
        %v3214 = vadd.f32 0.0, %v3213
        %v3215 = vpop.f32.mrb[0].mxu0
        %3216 = vmatprep.mubr.bf16.mxu0 0
        %3217 = vmatmul.mubr.bf16.gmra.mrb[0].mxu0 %v935
        %v3218 = vpop.f32.mrb[0].mxu0
        %v3219 = vadd.f32 0.0, %v3218
        %v3220 = vpop.f32.mrb[0].mxu0
        %v3221 = vpop.f32.mrb[0].mxu0
        %v3222 = vadd.f32 0.0, %v3221
        %v3223 = vpop.f32.mrb[0].mxu0
        %3224 = vmatprep.mubr.bf16.mxu0 0
        %3225 = vmatmul.mubr.bf16.gmra.mrb[0].mxu0 %v938
        %v3226 = vpop.f32.mrb[0].mxu0
        %v3227 = vadd.f32 0.0, %v3226
        %v3228 = vpop.f32.mrb[0].mxu0
        %v3229 = vpop.f32.mrb[0].mxu0
        %v3230 = vadd.f32 0.0, %v3229
        %v3231 = vpop.f32.mrb[0].mxu0
        %3232 = vmatprep.mubr.bf16.mxu0 0
        %3233 = vmatmul.mubr.bf16.gmra.mrb[0].mxu0 %v941
        %v3234 = vpop.f32.mrb[0].mxu0
        %v3235 = vadd.f32 0.0, %v3234
        %v3236 = vpop.f32.mrb[0].mxu0
        %v3237 = vpop.f32.mrb[0].mxu0
        %v3238 = vadd.f32 0.0, %v3237
        %v3239 = vpop.f32.mrb[0].mxu0
        %3240 = vmatprep.mubr.bf16.mxu0 0
        %3241 = vmatmul.mubr.bf16.gmra.mrb[0].mxu0 %v3160
        %v3242 = vpop.f32.mrb[0].mxu0
        %v3243 = vadd.f32 0.0, %v3242
        %v3244 = vpop.f32.mrb[0].mxu0
        %v3245 = vpop.f32.mrb[0].mxu0
        %v3246 = vadd.f32 0.0, %v3245
        %v3247 = vpop.f32.mrb[0].mxu0
        %3248 = vmatprep.mubr.bf16.mxu0 0
        %3249 = vmatmul.mubr.bf16.gmra.mrb[0].mxu0 %v3163
        %v3250 = vpop.f32.mrb[0].mxu0
        %v3251 = vadd.f32 0.0, %v3250
        %v3252 = vpop.f32.mrb[0].mxu0
        %v3253 = vpop.f32.mrb[0].mxu0
        %v3254 = vadd.f32 0.0, %v3253
        %v3255 = vpop.f32.mrb[0].mxu0
        %3256 = vdwg.mxu0
        %v3257 = vadd.f32 %v3143, %v3203
        %v3258 = vadd.f32 %v3144, %v3206
        %v3259 = vadd.f32 %v3145, %v3211
        %v3260 = vadd.f32 %v3146, %v3214
        %v3261 = vadd.f32 %v3147, %v3219
        %v3262 = vadd.f32 %v3148, %v3222
        %v3263 = vadd.f32 %v3149, %v3227
        %v3264 = vadd.f32 %v3150, %v3230
        %v3265 = vadd.f32 %v3151, %v3235
        %v3266 = vadd.f32 %v3152, %v3238
        %v3267 = vadd.f32 %v3153, %v3243
        %v3268 = vadd.f32 %v3154, %v3246
        %v3269 = vadd.f32 %v3155, %v3251
        %v3270 = vadd.f32 %v3156, %v3254
        %v3271 = vrot.slane %v2812, 2
        %v3272 = vrot.slane %v2808, 3
        %v3273 = vor.u32 %v3271, %v3272
        %v3274 = vsel %vm1052, %v1078, %v3273
        %v3276 = vsel %vm394, %v3274, 0
        %v3279 = vsel %vm394, %v3273, 0
        %v3282 = vsel %vm416, %v299, 0
        %3284 = vmatprep.subr.bf16.mxu0 0
        %3285 = vmatpush1.bf16.msra.mxu0 %v3282
        %3286 = vmatprep.subr.bf16.mxu0 0
        %3287 = vmatpush1.bf16.msra.mxu0 0
        %3288 = vmatprep.subr.bf16.mxu0 0
        %3289 = vmatpush1.bf16.msra.mxu0 0
        %3290 = vmatprep.subr.bf16.mxu0 0
        %3291 = vmatpush1.bf16.msra.mxu0 0
        %3292 = vmatprep.subr.bf16.mxu0 0
        %3293 = vmatpush1.bf16.msra.mxu0 0
        %3294 = vmatprep.subr.bf16.mxu0 0
        %3295 = vmatpush1.bf16.msra.mxu0 0
        %3296 = vmatprep.subr.bf16.mxu0 0
        %3297 = vmatpush1.bf16.msra.mxu0 0
        %3298 = vmatprep.subr.bf16.mxu0 0
        %3299 = vmatpush1.bf16.msra.mxu0 0
        %3300 = vmatprep.subr.bf16.mxu0 0
        %3301 = vmatpush1.bf16.msra.mxu0 0
        %3302 = vmatprep.subr.bf16.mxu0 0
        %3303 = vmatpush1.bf16.msra.mxu0 0
        %3304 = vmatprep.subr.bf16.mxu0 0
        %3305 = vmatpush1.bf16.msra.mxu0 0
        %3306 = vmatprep.subr.bf16.mxu0 0
        %3307 = vmatpush1.bf16.msra.mxu0 0
        %3308 = vmatprep.subr.bf16.mxu0 0
        %3309 = vmatpush1.bf16.msra.mxu0 0
        %3310 = vmatprep.subr.bf16.mxu0 0
        %3311 = vmatpush1.bf16.msra.mxu0 0
        %3312 = vmatprep.subr.bf16.mxu0 0
        %3313 = vmatpush1.bf16.msra.mxu0 0
        %3314 = vmatprep.subr.bf16.mxu0 0
        %3315 = vmatpush1.bf16.msra.mxu0 0
        %3316 = vmatprep.mubr.bf16.mxu0 0
        %3317 = vmatmul.mubr.bf16.gmra.mrb[0].mxu0 %v1084
        %v3318 = vpop.f32.mrb[0].mxu0
        %v3319 = vadd.f32 0.0, %v3318
        %v3320 = vpop.f32.mrb[0].mxu0
        %v3321 = vpop.f32.mrb[0].mxu0
        %v3322 = vadd.f32 0.0, %v3321
        %v3323 = vpop.f32.mrb[0].mxu0
        %3324 = vmatprep.mubr.bf16.mxu0 0
        %3325 = vmatmul.mubr.bf16.gmra.mrb[0].mxu0 %v1087
        %v3326 = vpop.f32.mrb[0].mxu0
        %v3327 = vadd.f32 0.0, %v3326
        %v3328 = vpop.f32.mrb[0].mxu0
        %v3329 = vpop.f32.mrb[0].mxu0
        %v3330 = vadd.f32 0.0, %v3329
        %v3331 = vpop.f32.mrb[0].mxu0
        %3332 = vmatprep.mubr.bf16.mxu0 0
        %3333 = vmatmul.mubr.bf16.gmra.mrb[0].mxu0 %v1090
        %v3334 = vpop.f32.mrb[0].mxu0
        %v3335 = vadd.f32 0.0, %v3334
        %v3336 = vpop.f32.mrb[0].mxu0
        %v3337 = vpop.f32.mrb[0].mxu0
        %v3338 = vadd.f32 0.0, %v3337
        %v3339 = vpop.f32.mrb[0].mxu0
        %3340 = vmatprep.mubr.bf16.mxu0 0
        %3341 = vmatmul.mubr.bf16.gmra.mrb[0].mxu0 %v1093
        %v3342 = vpop.f32.mrb[0].mxu0
        %v3343 = vadd.f32 0.0, %v3342
        %v3344 = vpop.f32.mrb[0].mxu0
        %v3345 = vpop.f32.mrb[0].mxu0
        %v3346 = vadd.f32 0.0, %v3345
        %v3347 = vpop.f32.mrb[0].mxu0
        %3348 = vmatprep.mubr.bf16.mxu0 0
        %3349 = vmatmul.mubr.bf16.gmra.mrb[0].mxu0 %v1096
        %v3350 = vpop.f32.mrb[0].mxu0
        %v3351 = vadd.f32 0.0, %v3350
        %v3352 = vpop.f32.mrb[0].mxu0
        %v3353 = vpop.f32.mrb[0].mxu0
        %v3354 = vadd.f32 0.0, %v3353
        %v3355 = vpop.f32.mrb[0].mxu0
        %3356 = vmatprep.mubr.bf16.mxu0 0
        %3357 = vmatmul.mubr.bf16.gmra.mrb[0].mxu0 %v3276
        %v3358 = vpop.f32.mrb[0].mxu0
        %v3359 = vadd.f32 0.0, %v3358
        %v3360 = vpop.f32.mrb[0].mxu0
        %v3361 = vpop.f32.mrb[0].mxu0
        %v3362 = vadd.f32 0.0, %v3361
        %v3363 = vpop.f32.mrb[0].mxu0
        %3364 = vmatprep.mubr.bf16.mxu0 0
        %3365 = vmatmul.mubr.bf16.gmra.mrb[0].mxu0 %v3279
        %v3366 = vpop.f32.mrb[0].mxu0
        %v3367 = vadd.f32 0.0, %v3366
        %v3368 = vpop.f32.mrb[0].mxu0
        %v3369 = vpop.f32.mrb[0].mxu0
        %v3370 = vadd.f32 0.0, %v3369
        %v3371 = vpop.f32.mrb[0].mxu0
        %3372 = vdwg.mxu0
        %v3373 = vadd.f32 %v3257, %v3319
        %v3374 = vadd.f32 %v3258, %v3322
        %v3375 = vadd.f32 %v3259, %v3327
        %v3376 = vadd.f32 %v3260, %v3330
        %v3377 = vadd.f32 %v3261, %v3335
        %v3378 = vadd.f32 %v3262, %v3338
        %v3379 = vadd.f32 %v3263, %v3343
        %v3380 = vadd.f32 %v3264, %v3346
        %v3381 = vadd.f32 %v3265, %v3351
        %v3382 = vadd.f32 %v3266, %v3354
        %v3383 = vadd.f32 %v3267, %v3359
        %v3384 = vadd.f32 %v3268, %v3362
        %v3385 = vadd.f32 %v3269, %v3367
        %v3386 = vadd.f32 %v3270, %v3370
        %v3387 = vrot.slane %v2698, 3
        %v3388 = vsel %vm1207, %v1219, %v3387
        %v3390 = vsel %vm394, %v3388, 0
        %v3393 = vsel %vm394, %v3387, 0
        %v3396 = vsel %vm416, %v300, 0
        %3398 = vmatprep.subr.bf16.mxu0 0
        %3399 = vmatpush1.bf16.msra.mxu0 %v3396
        %3400 = vmatprep.subr.bf16.mxu0 0
        %3401 = vmatpush1.bf16.msra.mxu0 0
        %3402 = vmatprep.subr.bf16.mxu0 0
        %3403 = vmatpush1.bf16.msra.mxu0 0
        %3404 = vmatprep.subr.bf16.mxu0 0
        %3405 = vmatpush1.bf16.msra.mxu0 0
        %3406 = vmatprep.subr.bf16.mxu0 0
        %3407 = vmatpush1.bf16.msra.mxu0 0
        %3408 = vmatprep.subr.bf16.mxu0 0
        %3409 = vmatpush1.bf16.msra.mxu0 0
        %3410 = vmatprep.subr.bf16.mxu0 0
        %3411 = vmatpush1.bf16.msra.mxu0 0
        %3412 = vmatprep.subr.bf16.mxu0 0
        %3413 = vmatpush1.bf16.msra.mxu0 0
        %3414 = vmatprep.subr.bf16.mxu0 0
        %3415 = vmatpush1.bf16.msra.mxu0 0
        %3416 = vmatprep.subr.bf16.mxu0 0
        %3417 = vmatpush1.bf16.msra.mxu0 0
        %3418 = vmatprep.subr.bf16.mxu0 0
        %3419 = vmatpush1.bf16.msra.mxu0 0
        %3420 = vmatprep.subr.bf16.mxu0 0
        %3421 = vmatpush1.bf16.msra.mxu0 0
        %3422 = vmatprep.subr.bf16.mxu0 0
        %3423 = vmatpush1.bf16.msra.mxu0 0
        %3424 = vmatprep.subr.bf16.mxu0 0
        %3425 = vmatpush1.bf16.msra.mxu0 0
        %3426 = vmatprep.subr.bf16.mxu0 0
        %3427 = vmatpush1.bf16.msra.mxu0 0
        %3428 = vmatprep.subr.bf16.mxu0 0
        %3429 = vmatpush1.bf16.msra.mxu0 0
        %3430 = vmatprep.mubr.bf16.mxu0 0
        %3431 = vmatmul.mubr.bf16.gmra.mrb[0].mxu0 %v1225
        %v3432 = vpop.f32.mrb[0].mxu0
        %v3433 = vadd.f32 0.0, %v3432
        %v3434 = vpop.f32.mrb[0].mxu0
        %v3435 = vpop.f32.mrb[0].mxu0
        %v3436 = vadd.f32 0.0, %v3435
        %v3437 = vpop.f32.mrb[0].mxu0
        %3438 = vmatprep.mubr.bf16.mxu0 0
        %3439 = vmatmul.mubr.bf16.gmra.mrb[0].mxu0 %v1228
        %v3440 = vpop.f32.mrb[0].mxu0
        %v3441 = vadd.f32 0.0, %v3440
        %v3442 = vpop.f32.mrb[0].mxu0
        %v3443 = vpop.f32.mrb[0].mxu0
        %v3444 = vadd.f32 0.0, %v3443
        %v3445 = vpop.f32.mrb[0].mxu0
        %3446 = vmatprep.mubr.bf16.mxu0 0
        %3447 = vmatmul.mubr.bf16.gmra.mrb[0].mxu0 %v1231
        %v3448 = vpop.f32.mrb[0].mxu0
        %v3449 = vadd.f32 0.0, %v3448
        %v3450 = vpop.f32.mrb[0].mxu0
        %v3451 = vpop.f32.mrb[0].mxu0
        %v3452 = vadd.f32 0.0, %v3451
        %v3453 = vpop.f32.mrb[0].mxu0
        %3454 = vmatprep.mubr.bf16.mxu0 0
        %3455 = vmatmul.mubr.bf16.gmra.mrb[0].mxu0 %v1234
        %v3456 = vpop.f32.mrb[0].mxu0
        %v3457 = vadd.f32 0.0, %v3456
        %v3458 = vpop.f32.mrb[0].mxu0
        %v3459 = vpop.f32.mrb[0].mxu0
        %v3460 = vadd.f32 0.0, %v3459
        %v3461 = vpop.f32.mrb[0].mxu0
        %3462 = vmatprep.mubr.bf16.mxu0 0
        %3463 = vmatmul.mubr.bf16.gmra.mrb[0].mxu0 %v1237
        %v3464 = vpop.f32.mrb[0].mxu0
        %v3465 = vadd.f32 0.0, %v3464
        %v3466 = vpop.f32.mrb[0].mxu0
        %v3467 = vpop.f32.mrb[0].mxu0
        %v3468 = vadd.f32 0.0, %v3467
        %v3469 = vpop.f32.mrb[0].mxu0
        %3470 = vmatprep.mubr.bf16.mxu0 0
        %3471 = vmatmul.mubr.bf16.gmra.mrb[0].mxu0 %v3390
        %v3472 = vpop.f32.mrb[0].mxu0
        %v3473 = vadd.f32 0.0, %v3472
        %v3474 = vpop.f32.mrb[0].mxu0
        %v3475 = vpop.f32.mrb[0].mxu0
        %v3476 = vadd.f32 0.0, %v3475
        %v3477 = vpop.f32.mrb[0].mxu0
        %3478 = vmatprep.mubr.bf16.mxu0 0
        %3479 = vmatmul.mubr.bf16.gmra.mrb[0].mxu0 %v3393
        %v3480 = vpop.f32.mrb[0].mxu0
        %v3481 = vadd.f32 0.0, %v3480
        %v3482 = vpop.f32.mrb[0].mxu0
        %v3483 = vpop.f32.mrb[0].mxu0
        %v3484 = vadd.f32 0.0, %v3483
        %v3485 = vpop.f32.mrb[0].mxu0
        %3486 = vdwg.mxu0
        %v3487 = vadd.f32 %v3373, %v3433
        %v3488 = vadd.f32 %v3374, %v3436
        %v3489 = vadd.f32 %v3375, %v3441
        %v3490 = vadd.f32 %v3376, %v3444
        %v3491 = vadd.f32 %v3377, %v3449
        %v3492 = vadd.f32 %v3378, %v3452
        %v3493 = vadd.f32 %v3379, %v3457
        %v3494 = vadd.f32 %v3380, %v3460
        %v3495 = vadd.f32 %v3381, %v3465
        %v3496 = vadd.f32 %v3382, %v3468
        %v3497 = vadd.f32 %v3383, %v3473
        %v3498 = vadd.f32 %v3384, %v3476
        %v3499 = vadd.f32 %v3385, %v3481
        %v3500 = vadd.f32 %v3386, %v3484
        %v3501 = vrot.slane %v2812, 3
        %v3502 = vrot.slane %v2808, 4
        %v3503 = vor.u32 %v3501, %v3502
        %v3504 = vsel %vm1348, %v1374, %v3503
        %v3506 = vsel %vm394, %v3504, 0
        %v3509 = vsel %vm394, %v3503, 0
        %v3512 = vsel %vm416, %v301, 0
        %3514 = vmatprep.subr.bf16.mxu0 0
        %3515 = vmatpush1.bf16.msra.mxu0 %v3512
        %3516 = vmatprep.subr.bf16.mxu0 0
        %3517 = vmatpush1.bf16.msra.mxu0 0
        %3518 = vmatprep.subr.bf16.mxu0 0
        %3519 = vmatpush1.bf16.msra.mxu0 0
        %3520 = vmatprep.subr.bf16.mxu0 0
        %3521 = vmatpush1.bf16.msra.mxu0 0
        %3522 = vmatprep.subr.bf16.mxu0 0
        %3523 = vmatpush1.bf16.msra.mxu0 0
        %3524 = vmatprep.subr.bf16.mxu0 0
        %3525 = vmatpush1.bf16.msra.mxu0 0
        %3526 = vmatprep.subr.bf16.mxu0 0
        %3527 = vmatpush1.bf16.msra.mxu0 0
        %3528 = vmatprep.subr.bf16.mxu0 0
        %3529 = vmatpush1.bf16.msra.mxu0 0
        %3530 = vmatprep.subr.bf16.mxu0 0
        %3531 = vmatpush1.bf16.msra.mxu0 0
        %3532 = vmatprep.subr.bf16.mxu0 0
        %3533 = vmatpush1.bf16.msra.mxu0 0
        %3534 = vmatprep.subr.bf16.mxu0 0
        %3535 = vmatpush1.bf16.msra.mxu0 0
        %3536 = vmatprep.subr.bf16.mxu0 0
        %3537 = vmatpush1.bf16.msra.mxu0 0
        %3538 = vmatprep.subr.bf16.mxu0 0
        %3539 = vmatpush1.bf16.msra.mxu0 0
        %3540 = vmatprep.subr.bf16.mxu0 0
        %3541 = vmatpush1.bf16.msra.mxu0 0
        %3542 = vmatprep.subr.bf16.mxu0 0
        %3543 = vmatpush1.bf16.msra.mxu0 0
        %3544 = vmatprep.subr.bf16.mxu0 0
        %3545 = vmatpush1.bf16.msra.mxu0 0
        %3546 = vmatprep.mubr.bf16.mxu0 0
        %3547 = vmatmul.mubr.bf16.gmra.mrb[0].mxu0 %v1380
        %v3548 = vpop.f32.mrb[0].mxu0
        %v3549 = vadd.f32 0.0, %v3548
        %v3550 = vpop.f32.mrb[0].mxu0
        %v3551 = vpop.f32.mrb[0].mxu0
        %v3552 = vadd.f32 0.0, %v3551
        %v3553 = vpop.f32.mrb[0].mxu0
        %3554 = vmatprep.mubr.bf16.mxu0 0
        %3555 = vmatmul.mubr.bf16.gmra.mrb[0].mxu0 %v1383
        %v3556 = vpop.f32.mrb[0].mxu0
        %v3557 = vadd.f32 0.0, %v3556
        %v3558 = vpop.f32.mrb[0].mxu0
        %v3559 = vpop.f32.mrb[0].mxu0
        %v3560 = vadd.f32 0.0, %v3559
        %v3561 = vpop.f32.mrb[0].mxu0
        %3562 = vmatprep.mubr.bf16.mxu0 0
        %3563 = vmatmul.mubr.bf16.gmra.mrb[0].mxu0 %v1386
        %v3564 = vpop.f32.mrb[0].mxu0
        %v3565 = vadd.f32 0.0, %v3564
        %v3566 = vpop.f32.mrb[0].mxu0
        %v3567 = vpop.f32.mrb[0].mxu0
        %v3568 = vadd.f32 0.0, %v3567
        %v3569 = vpop.f32.mrb[0].mxu0
        %3570 = vmatprep.mubr.bf16.mxu0 0
        %3571 = vmatmul.mubr.bf16.gmra.mrb[0].mxu0 %v1389
        %v3572 = vpop.f32.mrb[0].mxu0
        %v3573 = vadd.f32 0.0, %v3572
        %v3574 = vpop.f32.mrb[0].mxu0
        %v3575 = vpop.f32.mrb[0].mxu0
        %v3576 = vadd.f32 0.0, %v3575
        %v3577 = vpop.f32.mrb[0].mxu0
        %3578 = vmatprep.mubr.bf16.mxu0 0
        %3579 = vmatmul.mubr.bf16.gmra.mrb[0].mxu0 %v1392
        %v3580 = vpop.f32.mrb[0].mxu0
        %v3581 = vadd.f32 0.0, %v3580
        %v3582 = vpop.f32.mrb[0].mxu0
        %v3583 = vpop.f32.mrb[0].mxu0
        %v3584 = vadd.f32 0.0, %v3583
        %v3585 = vpop.f32.mrb[0].mxu0
        %3586 = vmatprep.mubr.bf16.mxu0 0
        %3587 = vmatmul.mubr.bf16.gmra.mrb[0].mxu0 %v3506
        %v3588 = vpop.f32.mrb[0].mxu0
        %v3589 = vadd.f32 0.0, %v3588
        %v3590 = vpop.f32.mrb[0].mxu0
        %v3591 = vpop.f32.mrb[0].mxu0
        %v3592 = vadd.f32 0.0, %v3591
        %v3593 = vpop.f32.mrb[0].mxu0
        %3594 = vmatprep.mubr.bf16.mxu0 0
        %3595 = vmatmul.mubr.bf16.gmra.mrb[0].mxu0 %v3509
        %v3596 = vpop.f32.mrb[0].mxu0
        %v3597 = vadd.f32 0.0, %v3596
        %v3598 = vpop.f32.mrb[0].mxu0
        %v3599 = vpop.f32.mrb[0].mxu0
        %v3600 = vadd.f32 0.0, %v3599
        %v3601 = vpop.f32.mrb[0].mxu0
        %3602 = vdwg.mxu0
        %v3603 = vadd.f32 %v3487, %v3549
        %v3604 = vadd.f32 %v3488, %v3552
        %v3605 = vadd.f32 %v3489, %v3557
        %v3606 = vadd.f32 %v3490, %v3560
        %v3607 = vadd.f32 %v3491, %v3565
        %v3608 = vadd.f32 %v3492, %v3568
        %v3609 = vadd.f32 %v3493, %v3573
        %v3610 = vadd.f32 %v3494, %v3576
        %v3611 = vadd.f32 %v3495, %v3581
        %v3612 = vadd.f32 %v3496, %v3584
        %v3613 = vadd.f32 %v3497, %v3589
        %v3614 = vadd.f32 %v3498, %v3592
        %v3615 = vadd.f32 %v3499, %v3597
        %v3616 = vadd.f32 %v3500, %v3600
        %v3618 = vunpack.c.l.b16 %v277
        %v3619 = vpack.c.b16 %v3618, %v2697
        %v3621 = vsel %vm394, %v3619, 0
        %v3624 = vsel %vm416, %v302, 0
        %3626 = vmatprep.subr.bf16.mxu0 0
        %3627 = vmatpush1.bf16.msra.mxu0 %v3624
        %3628 = vmatprep.subr.bf16.mxu0 0
        %3629 = vmatpush1.bf16.msra.mxu0 0
        %3630 = vmatprep.subr.bf16.mxu0 0
        %3631 = vmatpush1.bf16.msra.mxu0 0
        %3632 = vmatprep.subr.bf16.mxu0 0
        %3633 = vmatpush1.bf16.msra.mxu0 0
        %3634 = vmatprep.subr.bf16.mxu0 0
        %3635 = vmatpush1.bf16.msra.mxu0 0
        %3636 = vmatprep.subr.bf16.mxu0 0
        %3637 = vmatpush1.bf16.msra.mxu0 0
        %3638 = vmatprep.subr.bf16.mxu0 0
        %3639 = vmatpush1.bf16.msra.mxu0 0
        %3640 = vmatprep.subr.bf16.mxu0 0
        %3641 = vmatpush1.bf16.msra.mxu0 0
        %3642 = vmatprep.subr.bf16.mxu0 0
        %3643 = vmatpush1.bf16.msra.mxu0 0
        %3644 = vmatprep.subr.bf16.mxu0 0
        %3645 = vmatpush1.bf16.msra.mxu0 0
        %3646 = vmatprep.subr.bf16.mxu0 0
        %3647 = vmatpush1.bf16.msra.mxu0 0
        %3648 = vmatprep.subr.bf16.mxu0 0
        %3649 = vmatpush1.bf16.msra.mxu0 0
        %3650 = vmatprep.subr.bf16.mxu0 0
        %3651 = vmatpush1.bf16.msra.mxu0 0
        %3652 = vmatprep.subr.bf16.mxu0 0
        %3653 = vmatpush1.bf16.msra.mxu0 0
        %3654 = vmatprep.subr.bf16.mxu0 0
        %3655 = vmatpush1.bf16.msra.mxu0 0
        %3656 = vmatprep.subr.bf16.mxu0 0
        %3657 = vmatpush1.bf16.msra.mxu0 0
        %3658 = vmatprep.mubr.bf16.mxu0 0
        %3659 = vmatmul.mubr.bf16.gmra.mrb[0].mxu0 %v1516
        %v3660 = vpop.f32.mrb[0].mxu0
        %v3661 = vadd.f32 0.0, %v3660
        %v3662 = vpop.f32.mrb[0].mxu0
        %v3663 = vpop.f32.mrb[0].mxu0
        %v3664 = vadd.f32 0.0, %v3663
        %v3665 = vpop.f32.mrb[0].mxu0
        %3666 = vmatprep.mubr.bf16.mxu0 0
        %3667 = vmatmul.mubr.bf16.gmra.mrb[0].mxu0 %v1519
        %v3668 = vpop.f32.mrb[0].mxu0
        %v3669 = vadd.f32 0.0, %v3668
        %v3670 = vpop.f32.mrb[0].mxu0
        %v3671 = vpop.f32.mrb[0].mxu0
        %v3672 = vadd.f32 0.0, %v3671
        %v3673 = vpop.f32.mrb[0].mxu0
        %3674 = vmatprep.mubr.bf16.mxu0 0
        %3675 = vmatmul.mubr.bf16.gmra.mrb[0].mxu0 %v1522
        %v3676 = vpop.f32.mrb[0].mxu0
        %v3677 = vadd.f32 0.0, %v3676
        %v3678 = vpop.f32.mrb[0].mxu0
        %v3679 = vpop.f32.mrb[0].mxu0
        %v3680 = vadd.f32 0.0, %v3679
        %v3681 = vpop.f32.mrb[0].mxu0
        %3682 = vmatprep.mubr.bf16.mxu0 0
        %3683 = vmatmul.mubr.bf16.gmra.mrb[0].mxu0 %v1525
        %v3684 = vpop.f32.mrb[0].mxu0
        %v3685 = vadd.f32 0.0, %v3684
        %v3686 = vpop.f32.mrb[0].mxu0
        %v3687 = vpop.f32.mrb[0].mxu0
        %v3688 = vadd.f32 0.0, %v3687
        %v3689 = vpop.f32.mrb[0].mxu0
        %3690 = vmatprep.mubr.bf16.mxu0 0
        %3691 = vmatmul.mubr.bf16.gmra.mrb[0].mxu0 %v1528
        %v3692 = vpop.f32.mrb[0].mxu0
        %v3693 = vadd.f32 0.0, %v3692
        %v3694 = vpop.f32.mrb[0].mxu0
        %v3695 = vpop.f32.mrb[0].mxu0
        %v3696 = vadd.f32 0.0, %v3695
        %v3697 = vpop.f32.mrb[0].mxu0
        %3698 = vmatprep.mubr.bf16.mxu0 0
        %3699 = vmatmul.mubr.bf16.gmra.mrb[0].mxu0 %v1531
        %v3700 = vpop.f32.mrb[0].mxu0
        %v3701 = vadd.f32 0.0, %v3700
        %v3702 = vpop.f32.mrb[0].mxu0
        %v3703 = vpop.f32.mrb[0].mxu0
        %v3704 = vadd.f32 0.0, %v3703
        %v3705 = vpop.f32.mrb[0].mxu0
        %3706 = vmatprep.mubr.bf16.mxu0 0
        %3707 = vmatmul.mubr.bf16.gmra.mrb[0].mxu0 %v3621
        %v3708 = vpop.f32.mrb[0].mxu0
        %v3709 = vadd.f32 0.0, %v3708
        %v3710 = vpop.f32.mrb[0].mxu0
        %v3711 = vpop.f32.mrb[0].mxu0
        %v3712 = vadd.f32 0.0, %v3711
        %v3713 = vpop.f32.mrb[0].mxu0
        %3714 = vdwg.mxu0
        %v3715 = vadd.f32 %v3603, %v3661
        %v3716 = vadd.f32 %v3604, %v3664
        %v3717 = vadd.f32 %v3605, %v3669
        %v3718 = vadd.f32 %v3606, %v3672
        %v3719 = vadd.f32 %v3607, %v3677
        %v3720 = vadd.f32 %v3608, %v3680
        %v3721 = vadd.f32 %v3609, %v3685
        %v3722 = vadd.f32 %v3610, %v3688
        %v3723 = vadd.f32 %v3611, %v3693
        %v3724 = vadd.f32 %v3612, %v3696
        %v3725 = vadd.f32 %v3613, %v3701
        %v3726 = vadd.f32 %v3614, %v3704
        %v3727 = vadd.f32 %v3615, %v3709
        %v3728 = vadd.f32 %v3616, %v3712
        %v3729 = vld [vmem:[%s2] sm:$0x1]
        %v3731 = vlaneseq
        %v3732 = vshrl.u32 %v3731, 7
        %v3733 = vsub.s32 0, %v3732
        %v3734 = vrot.slane %v3729, %v3733
        %v3736 = vadd.f32 %v3715, %v3734
        %v3737 = vadd.f32 %v3716, %v3734
        %v3738 = vadd.f32 %v3717, %v3734
        %v3739 = vadd.f32 %v3718, %v3734
        %v3740 = vadd.f32 %v3719, %v3734
        %v3741 = vadd.f32 %v3720, %v3734
        %v3742 = vadd.f32 %v3721, %v3734
        %v3743 = vadd.f32 %v3722, %v3734
        %v3744 = vadd.f32 %v3723, %v3734
        %v3745 = vadd.f32 %v3724, %v3734
        %v3746 = vadd.f32 %v3725, %v3734
        %v3747 = vadd.f32 %v3726, %v3734
        %v3748 = vadd.f32 %v3727, %v3734
        %v3749 = vadd.f32 %v3728, %v3734
        %v3750 = vmul.f32 %v3736, %v3736
        %v3751 = vmul.f32 %v3737, %v3737
        %v3752 = vmul.f32 %v3738, %v3738
        %v3753 = vmul.f32 %v3739, %v3739
        %v3754 = vmul.f32 %v3740, %v3740
        %v3755 = vmul.f32 %v3741, %v3741
        %v3756 = vmul.f32 %v3742, %v3742
        %v3757 = vmul.f32 %v3743, %v3743
        %v3758 = vmul.f32 %v3744, %v3744
        %v3759 = vmul.f32 %v3745, %v3745
        %v3760 = vmul.f32 %v3746, %v3746
        %v3761 = vmul.f32 %v3747, %v3747
        %v3762 = vmul.f32 %v3748, %v3748
        %v3763 = vmul.f32 %v3749, %v3749
        %v3778 = vcombine.high %v3750, %v3750
        %v3780 = vunpack.c.l.s4 1966171168
        %v3781 = vunpack.c.0.s8 %v3780
        %v3782 = vlaneseq
        %v3783 = vshrl.u32 %v3782, 7
        %v3784 = vsub.s32 %v3781, %v3783
        %v3785 = vrot.slane %v3750, %v3784
        %v3787 = vunpack.c.l.s4 1966171168
        %v3788 = vunpack.c.0.s8 %v3787
        %v3789 = vlaneseq
        %v3790 = vshrl.u32 %v3789, 7
        %v3791 = vsub.s32 %v3788, %v3790
        %v3792 = vrot.slane %v3778, %v3791
        %v3793 = vcombine.high %v3785, %v3785
        %v3794 = vcombine.high %v3792, %v3792
        %v3796 = vunpack.c.l.s4 1966171168
        %v3797 = vunpack.c.0.s8 %v3796
        %v3798 = vlaneseq
        %v3799 = vshrl.u32 %v3798, 7
        %v3800 = vsub.s32 %v3797, %v3799
        %v3801 = vrot.slane %v3785, %v3800
        %v3803 = vunpack.c.l.s4 1966171168
        %v3804 = vunpack.c.0.s8 %v3803
        %v3805 = vlaneseq
        %v3806 = vshrl.u32 %v3805, 7
        %v3807 = vsub.s32 %v3804, %v3806
        %v3808 = vrot.slane %v3792, %v3807
        %v3810 = vunpack.c.l.s4 1966171168
        %v3811 = vunpack.c.0.s8 %v3810
        %v3812 = vlaneseq
        %v3813 = vshrl.u32 %v3812, 7
        %v3814 = vsub.s32 %v3811, %v3813
        %v3815 = vrot.slane %v3793, %v3814
        %v3817 = vunpack.c.l.s4 1966171168
        %v3818 = vunpack.c.0.s8 %v3817
        %v3819 = vlaneseq
        %v3820 = vshrl.u32 %v3819, 7
        %v3821 = vsub.s32 %v3818, %v3820
        %v3822 = vrot.slane %v3794, %v3821
        %v3823 = vcombine.high %v3801, %v3801
        %v3824 = vcombine.high %v3808, %v3808
        %v3825 = vcombine.high %v3815, %v3815
        %v3826 = vcombine.high %v3822, %v3822
        %v3827 = vcombine.high %v3751, %v3751
        %v3829 = vunpack.c.l.s4 1966171168
        %v3830 = vunpack.c.0.s8 %v3829
        %v3831 = vlaneseq
        %v3832 = vshrl.u32 %v3831, 7
        %v3833 = vsub.s32 %v3830, %v3832
        %v3834 = vrot.slane %v3751, %v3833
        %v3836 = vunpack.c.l.s4 1966171168
        %v3837 = vunpack.c.0.s8 %v3836
        %v3838 = vlaneseq
        %v3839 = vshrl.u32 %v3838, 7
        %v3840 = vsub.s32 %v3837, %v3839
        %v3841 = vrot.slane %v3827, %v3840
        %v3842 = vcombine.high %v3834, %v3834
        %v3843 = vcombine.high %v3841, %v3841
        %v3845 = vunpack.c.l.s4 1966171168
        %v3846 = vunpack.c.0.s8 %v3845
        %v3847 = vlaneseq
        %v3848 = vshrl.u32 %v3847, 7
        %v3849 = vsub.s32 %v3846, %v3848
        %v3850 = vrot.slane %v3834, %v3849
        %v3852 = vunpack.c.l.s4 1966171168
        %v3853 = vunpack.c.0.s8 %v3852
        %v3854 = vlaneseq
        %v3855 = vshrl.u32 %v3854, 7
        %v3856 = vsub.s32 %v3853, %v3855
        %v3857 = vrot.slane %v3841, %v3856
        %v3859 = vunpack.c.l.s4 1966171168
        %v3860 = vunpack.c.0.s8 %v3859
        %v3861 = vlaneseq
        %v3862 = vshrl.u32 %v3861, 7
        %v3863 = vsub.s32 %v3860, %v3862
        %v3864 = vrot.slane %v3842, %v3863
        %v3866 = vunpack.c.l.s4 1966171168
        %v3867 = vunpack.c.0.s8 %v3866
        %v3868 = vlaneseq
        %v3869 = vshrl.u32 %v3868, 7
        %v3870 = vsub.s32 %v3867, %v3869
        %v3871 = vrot.slane %v3843, %v3870
        %v3872 = vcombine.high %v3850, %v3850
        %v3873 = vcombine.high %v3857, %v3857
        %v3874 = vcombine.high %v3864, %v3864
        %v3875 = vcombine.high %v3871, %v3871
        %v3876 = vcombine.high %v3752, %v3752
        %v3878 = vunpack.c.l.s4 1966171168
        %v3879 = vunpack.c.0.s8 %v3878
        %v3880 = vlaneseq
        %v3881 = vshrl.u32 %v3880, 7
        %v3882 = vsub.s32 %v3879, %v3881
        %v3883 = vrot.slane %v3752, %v3882
        %v3885 = vunpack.c.l.s4 1966171168
        %v3886 = vunpack.c.0.s8 %v3885
        %v3887 = vlaneseq
        %v3888 = vshrl.u32 %v3887, 7
        %v3889 = vsub.s32 %v3886, %v3888
        %v3890 = vrot.slane %v3876, %v3889
        %v3891 = vcombine.high %v3883, %v3883
        %v3892 = vcombine.high %v3890, %v3890
        %v3894 = vunpack.c.l.s4 1966171168
        %v3895 = vunpack.c.0.s8 %v3894
        %v3896 = vlaneseq
        %v3897 = vshrl.u32 %v3896, 7
        %v3898 = vsub.s32 %v3895, %v3897
        %v3899 = vrot.slane %v3883, %v3898
        %v3901 = vunpack.c.l.s4 1966171168
        %v3902 = vunpack.c.0.s8 %v3901
        %v3903 = vlaneseq
        %v3904 = vshrl.u32 %v3903, 7
        %v3905 = vsub.s32 %v3902, %v3904
        %v3906 = vrot.slane %v3890, %v3905
        %v3908 = vunpack.c.l.s4 1966171168
        %v3909 = vunpack.c.0.s8 %v3908
        %v3910 = vlaneseq
        %v3911 = vshrl.u32 %v3910, 7
        %v3912 = vsub.s32 %v3909, %v3911
        %v3913 = vrot.slane %v3891, %v3912
        %v3915 = vunpack.c.l.s4 1966171168
        %v3916 = vunpack.c.0.s8 %v3915
        %v3917 = vlaneseq
        %v3918 = vshrl.u32 %v3917, 7
        %v3919 = vsub.s32 %v3916, %v3918
        %v3920 = vrot.slane %v3892, %v3919
        %v3921 = vcombine.high %v3899, %v3899
        %v3922 = vcombine.high %v3906, %v3906
        %v3923 = vcombine.high %v3913, %v3913
        %v3924 = vcombine.high %v3920, %v3920
        %v3925 = vcombine.high %v3753, %v3753
        %v3927 = vunpack.c.l.s4 1966171168
        %v3928 = vunpack.c.0.s8 %v3927
        %v3929 = vlaneseq
        %v3930 = vshrl.u32 %v3929, 7
        %v3931 = vsub.s32 %v3928, %v3930
        %v3932 = vrot.slane %v3753, %v3931
        %v3934 = vunpack.c.l.s4 1966171168
        %v3935 = vunpack.c.0.s8 %v3934
        %v3936 = vlaneseq
        %v3937 = vshrl.u32 %v3936, 7
        %v3938 = vsub.s32 %v3935, %v3937
        %v3939 = vrot.slane %v3925, %v3938
        %v3940 = vcombine.high %v3932, %v3932
        %v3941 = vcombine.high %v3939, %v3939
        %v3943 = vunpack.c.l.s4 1966171168
        %v3944 = vunpack.c.0.s8 %v3943
        %v3945 = vlaneseq
        %v3946 = vshrl.u32 %v3945, 7
        %v3947 = vsub.s32 %v3944, %v3946
        %v3948 = vrot.slane %v3932, %v3947
        %v3950 = vunpack.c.l.s4 1966171168
        %v3951 = vunpack.c.0.s8 %v3950
        %v3952 = vlaneseq
        %v3953 = vshrl.u32 %v3952, 7
        %v3954 = vsub.s32 %v3951, %v3953
        %v3955 = vrot.slane %v3939, %v3954
        %v3957 = vunpack.c.l.s4 1966171168
        %v3958 = vunpack.c.0.s8 %v3957
        %v3959 = vlaneseq
        %v3960 = vshrl.u32 %v3959, 7
        %v3961 = vsub.s32 %v3958, %v3960
        %v3962 = vrot.slane %v3940, %v3961
        %v3964 = vunpack.c.l.s4 1966171168
        %v3965 = vunpack.c.0.s8 %v3964
        %v3966 = vlaneseq
        %v3967 = vshrl.u32 %v3966, 7
        %v3968 = vsub.s32 %v3965, %v3967
        %v3969 = vrot.slane %v3941, %v3968
        %v3970 = vcombine.high %v3948, %v3948
        %v3971 = vcombine.high %v3955, %v3955
        %v3972 = vcombine.high %v3962, %v3962
        %v3973 = vcombine.high %v3969, %v3969
        %v3974 = vcombine.high %v3754, %v3754
        %v3976 = vunpack.c.l.s4 1966171168
        %v3977 = vunpack.c.0.s8 %v3976
        %v3978 = vlaneseq
        %v3979 = vshrl.u32 %v3978, 7
        %v3980 = vsub.s32 %v3977, %v3979
        %v3981 = vrot.slane %v3754, %v3980
        %v3983 = vunpack.c.l.s4 1966171168
        %v3984 = vunpack.c.0.s8 %v3983
        %v3985 = vlaneseq
        %v3986 = vshrl.u32 %v3985, 7
        %v3987 = vsub.s32 %v3984, %v3986
        %v3988 = vrot.slane %v3974, %v3987
        %v3989 = vcombine.high %v3981, %v3981
        %v3990 = vcombine.high %v3988, %v3988
        %v3992 = vunpack.c.l.s4 1966171168
        %v3993 = vunpack.c.0.s8 %v3992
        %v3994 = vlaneseq
        %v3995 = vshrl.u32 %v3994, 7
        %v3996 = vsub.s32 %v3993, %v3995
        %v3997 = vrot.slane %v3981, %v3996
        %v3999 = vunpack.c.l.s4 1966171168
        %v4000 = vunpack.c.0.s8 %v3999
        %v4001 = vlaneseq
        %v4002 = vshrl.u32 %v4001, 7
        %v4003 = vsub.s32 %v4000, %v4002
        %v4004 = vrot.slane %v3988, %v4003
        %v4006 = vunpack.c.l.s4 1966171168
        %v4007 = vunpack.c.0.s8 %v4006
        %v4008 = vlaneseq
        %v4009 = vshrl.u32 %v4008, 7
        %v4010 = vsub.s32 %v4007, %v4009
        %v4011 = vrot.slane %v3989, %v4010
        %v4013 = vunpack.c.l.s4 1966171168
        %v4014 = vunpack.c.0.s8 %v4013
        %v4015 = vlaneseq
        %v4016 = vshrl.u32 %v4015, 7
        %v4017 = vsub.s32 %v4014, %v4016
        %v4018 = vrot.slane %v3990, %v4017
        %v4019 = vcombine.high %v3997, %v3997
        %v4020 = vcombine.high %v4004, %v4004
        %v4021 = vcombine.high %v4011, %v4011
        %v4022 = vcombine.high %v4018, %v4018
        %v4023 = vcombine.high %v3755, %v3755
        %v4025 = vunpack.c.l.s4 1966171168
        %v4026 = vunpack.c.0.s8 %v4025
        %v4027 = vlaneseq
        %v4028 = vshrl.u32 %v4027, 7
        %v4029 = vsub.s32 %v4026, %v4028
        %v4030 = vrot.slane %v3755, %v4029
        %v4032 = vunpack.c.l.s4 1966171168
        %v4033 = vunpack.c.0.s8 %v4032
        %v4034 = vlaneseq
        %v4035 = vshrl.u32 %v4034, 7
        %v4036 = vsub.s32 %v4033, %v4035
        %v4037 = vrot.slane %v4023, %v4036
        %v4038 = vcombine.high %v4030, %v4030
        %v4039 = vcombine.high %v4037, %v4037
        %v4041 = vunpack.c.l.s4 1966171168
        %v4042 = vunpack.c.0.s8 %v4041
        %v4043 = vlaneseq
        %v4044 = vshrl.u32 %v4043, 7
        %v4045 = vsub.s32 %v4042, %v4044
        %v4046 = vrot.slane %v4030, %v4045
        %v4048 = vunpack.c.l.s4 1966171168
        %v4049 = vunpack.c.0.s8 %v4048
        %v4050 = vlaneseq
        %v4051 = vshrl.u32 %v4050, 7
        %v4052 = vsub.s32 %v4049, %v4051
        %v4053 = vrot.slane %v4037, %v4052
        %v4055 = vunpack.c.l.s4 1966171168
        %v4056 = vunpack.c.0.s8 %v4055
        %v4057 = vlaneseq
        %v4058 = vshrl.u32 %v4057, 7
        %v4059 = vsub.s32 %v4056, %v4058
        %v4060 = vrot.slane %v4038, %v4059
        %v4062 = vunpack.c.l.s4 1966171168
        %v4063 = vunpack.c.0.s8 %v4062
        %v4064 = vlaneseq
        %v4065 = vshrl.u32 %v4064, 7
        %v4066 = vsub.s32 %v4063, %v4065
        %v4067 = vrot.slane %v4039, %v4066
        %v4068 = vcombine.high %v4046, %v4046
        %v4069 = vcombine.high %v4053, %v4053
        %v4070 = vcombine.high %v4060, %v4060
        %v4071 = vcombine.high %v4067, %v4067
        %v4072 = vcombine.high %v3756, %v3756
        %v4074 = vunpack.c.l.s4 1966171168
        %v4075 = vunpack.c.0.s8 %v4074
        %v4076 = vlaneseq
        %v4077 = vshrl.u32 %v4076, 7
        %v4078 = vsub.s32 %v4075, %v4077
        %v4079 = vrot.slane %v3756, %v4078
        %v4081 = vunpack.c.l.s4 1966171168
        %v4082 = vunpack.c.0.s8 %v4081
        %v4083 = vlaneseq
        %v4084 = vshrl.u32 %v4083, 7
        %v4085 = vsub.s32 %v4082, %v4084
        %v4086 = vrot.slane %v4072, %v4085
        %v4087 = vcombine.high %v4079, %v4079
        %v4088 = vcombine.high %v4086, %v4086
        %v4090 = vunpack.c.l.s4 1966171168
        %v4091 = vunpack.c.0.s8 %v4090
        %v4092 = vlaneseq
        %v4093 = vshrl.u32 %v4092, 7
        %v4094 = vsub.s32 %v4091, %v4093
        %v4095 = vrot.slane %v4079, %v4094
        %v4097 = vunpack.c.l.s4 1966171168
        %v4098 = vunpack.c.0.s8 %v4097
        %v4099 = vlaneseq
        %v4100 = vshrl.u32 %v4099, 7
        %v4101 = vsub.s32 %v4098, %v4100
        %v4102 = vrot.slane %v4086, %v4101
        %v4104 = vunpack.c.l.s4 1966171168
        %v4105 = vunpack.c.0.s8 %v4104
        %v4106 = vlaneseq
        %v4107 = vshrl.u32 %v4106, 7
        %v4108 = vsub.s32 %v4105, %v4107
        %v4109 = vrot.slane %v4087, %v4108
        %v4111 = vunpack.c.l.s4 1966171168
        %v4112 = vunpack.c.0.s8 %v4111
        %v4113 = vlaneseq
        %v4114 = vshrl.u32 %v4113, 7
        %v4115 = vsub.s32 %v4112, %v4114
        %v4116 = vrot.slane %v4088, %v4115
        %v4117 = vcombine.high %v4095, %v4095
        %v4118 = vcombine.high %v4102, %v4102
        %v4119 = vcombine.high %v4109, %v4109
        %v4120 = vcombine.high %v4116, %v4116
        %v4121 = vcombine.high %v3757, %v3757
        %v4123 = vunpack.c.l.s4 1966171168
        %v4124 = vunpack.c.0.s8 %v4123
        %v4125 = vlaneseq
        %v4126 = vshrl.u32 %v4125, 7
        %v4127 = vsub.s32 %v4124, %v4126
        %v4128 = vrot.slane %v3757, %v4127
        %v4130 = vunpack.c.l.s4 1966171168
        %v4131 = vunpack.c.0.s8 %v4130
        %v4132 = vlaneseq
        %v4133 = vshrl.u32 %v4132, 7
        %v4134 = vsub.s32 %v4131, %v4133
        %v4135 = vrot.slane %v4121, %v4134
        %v4136 = vcombine.high %v4128, %v4128
        %v4137 = vcombine.high %v4135, %v4135
        %v4139 = vunpack.c.l.s4 1966171168
        %v4140 = vunpack.c.0.s8 %v4139
        %v4141 = vlaneseq
        %v4142 = vshrl.u32 %v4141, 7
        %v4143 = vsub.s32 %v4140, %v4142
        %v4144 = vrot.slane %v4128, %v4143
        %v4146 = vunpack.c.l.s4 1966171168
        %v4147 = vunpack.c.0.s8 %v4146
        %v4148 = vlaneseq
        %v4149 = vshrl.u32 %v4148, 7
        %v4150 = vsub.s32 %v4147, %v4149
        %v4151 = vrot.slane %v4135, %v4150
        %v4153 = vunpack.c.l.s4 1966171168
        %v4154 = vunpack.c.0.s8 %v4153
        %v4155 = vlaneseq
        %v4156 = vshrl.u32 %v4155, 7
        %v4157 = vsub.s32 %v4154, %v4156
        %v4158 = vrot.slane %v4136, %v4157
        %v4160 = vunpack.c.l.s4 1966171168
        %v4161 = vunpack.c.0.s8 %v4160
        %v4162 = vlaneseq
        %v4163 = vshrl.u32 %v4162, 7
        %v4164 = vsub.s32 %v4161, %v4163
        %v4165 = vrot.slane %v4137, %v4164
        %v4166 = vcombine.high %v4144, %v4144
        %v4167 = vcombine.high %v4151, %v4151
        %v4168 = vcombine.high %v4158, %v4158
        %v4169 = vcombine.high %v4165, %v4165
        %v4170 = vcombine.high %v3758, %v3758
        %v4172 = vunpack.c.l.s4 1966171168
        %v4173 = vunpack.c.0.s8 %v4172
        %v4174 = vlaneseq
        %v4175 = vshrl.u32 %v4174, 7
        %v4176 = vsub.s32 %v4173, %v4175
        %v4177 = vrot.slane %v3758, %v4176
        %v4179 = vunpack.c.l.s4 1966171168
        %v4180 = vunpack.c.0.s8 %v4179
        %v4181 = vlaneseq
        %v4182 = vshrl.u32 %v4181, 7
        %v4183 = vsub.s32 %v4180, %v4182
        %v4184 = vrot.slane %v4170, %v4183
        %v4185 = vcombine.high %v4177, %v4177
        %v4186 = vcombine.high %v4184, %v4184
        %v4188 = vunpack.c.l.s4 1966171168
        %v4189 = vunpack.c.0.s8 %v4188
        %v4190 = vlaneseq
        %v4191 = vshrl.u32 %v4190, 7
        %v4192 = vsub.s32 %v4189, %v4191
        %v4193 = vrot.slane %v4177, %v4192
        %v4195 = vunpack.c.l.s4 1966171168
        %v4196 = vunpack.c.0.s8 %v4195
        %v4197 = vlaneseq
        %v4198 = vshrl.u32 %v4197, 7
        %v4199 = vsub.s32 %v4196, %v4198
        %v4200 = vrot.slane %v4184, %v4199
        %v4202 = vunpack.c.l.s4 1966171168
        %v4203 = vunpack.c.0.s8 %v4202
        %v4204 = vlaneseq
        %v4205 = vshrl.u32 %v4204, 7
        %v4206 = vsub.s32 %v4203, %v4205
        %v4207 = vrot.slane %v4185, %v4206
        %v4209 = vunpack.c.l.s4 1966171168
        %v4210 = vunpack.c.0.s8 %v4209
        %v4211 = vlaneseq
        %v4212 = vshrl.u32 %v4211, 7
        %v4213 = vsub.s32 %v4210, %v4212
        %v4214 = vrot.slane %v4186, %v4213
        %v4215 = vcombine.high %v4193, %v4193
        %v4216 = vcombine.high %v4200, %v4200
        %v4217 = vcombine.high %v4207, %v4207
        %v4218 = vcombine.high %v4214, %v4214
        %v4219 = vcombine.high %v3759, %v3759
        %v4221 = vunpack.c.l.s4 1966171168
        %v4222 = vunpack.c.0.s8 %v4221
        %v4223 = vlaneseq
        %v4224 = vshrl.u32 %v4223, 7
        %v4225 = vsub.s32 %v4222, %v4224
        %v4226 = vrot.slane %v3759, %v4225
        %v4228 = vunpack.c.l.s4 1966171168
        %v4229 = vunpack.c.0.s8 %v4228
        %v4230 = vlaneseq
        %v4231 = vshrl.u32 %v4230, 7
        %v4232 = vsub.s32 %v4229, %v4231
        %v4233 = vrot.slane %v4219, %v4232
        %v4234 = vcombine.high %v4226, %v4226
        %v4235 = vcombine.high %v4233, %v4233
        %v4237 = vunpack.c.l.s4 1966171168
        %v4238 = vunpack.c.0.s8 %v4237
        %v4239 = vlaneseq
        %v4240 = vshrl.u32 %v4239, 7
        %v4241 = vsub.s32 %v4238, %v4240
        %v4242 = vrot.slane %v4226, %v4241
        %v4244 = vunpack.c.l.s4 1966171168
        %v4245 = vunpack.c.0.s8 %v4244
        %v4246 = vlaneseq
        %v4247 = vshrl.u32 %v4246, 7
        %v4248 = vsub.s32 %v4245, %v4247
        %v4249 = vrot.slane %v4233, %v4248
        %v4251 = vunpack.c.l.s4 1966171168
        %v4252 = vunpack.c.0.s8 %v4251
        %v4253 = vlaneseq
        %v4254 = vshrl.u32 %v4253, 7
        %v4255 = vsub.s32 %v4252, %v4254
        %v4256 = vrot.slane %v4234, %v4255
        %v4258 = vunpack.c.l.s4 1966171168
        %v4259 = vunpack.c.0.s8 %v4258
        %v4260 = vlaneseq
        %v4261 = vshrl.u32 %v4260, 7
        %v4262 = vsub.s32 %v4259, %v4261
        %v4263 = vrot.slane %v4235, %v4262
        %v4264 = vcombine.high %v4242, %v4242
        %v4265 = vcombine.high %v4249, %v4249
        %v4266 = vcombine.high %v4256, %v4256
        %v4267 = vcombine.high %v4263, %v4263
        %v4268 = vcombine.high %v3760, %v3760
        %v4270 = vunpack.c.l.s4 1966171168
        %v4271 = vunpack.c.0.s8 %v4270
        %v4272 = vlaneseq
        %v4273 = vshrl.u32 %v4272, 7
        %v4274 = vsub.s32 %v4271, %v4273
        %v4275 = vrot.slane %v3760, %v4274
        %v4277 = vunpack.c.l.s4 1966171168
        %v4278 = vunpack.c.0.s8 %v4277
        %v4279 = vlaneseq
        %v4280 = vshrl.u32 %v4279, 7
        %v4281 = vsub.s32 %v4278, %v4280
        %v4282 = vrot.slane %v4268, %v4281
        %v4283 = vcombine.high %v4275, %v4275
        %v4284 = vcombine.high %v4282, %v4282
        %v4286 = vunpack.c.l.s4 1966171168
        %v4287 = vunpack.c.0.s8 %v4286
        %v4288 = vlaneseq
        %v4289 = vshrl.u32 %v4288, 7
        %v4290 = vsub.s32 %v4287, %v4289
        %v4291 = vrot.slane %v4275, %v4290
        %v4293 = vunpack.c.l.s4 1966171168
        %v4294 = vunpack.c.0.s8 %v4293
        %v4295 = vlaneseq
        %v4296 = vshrl.u32 %v4295, 7
        %v4297 = vsub.s32 %v4294, %v4296
        %v4298 = vrot.slane %v4282, %v4297
        %v4300 = vunpack.c.l.s4 1966171168
        %v4301 = vunpack.c.0.s8 %v4300
        %v4302 = vlaneseq
        %v4303 = vshrl.u32 %v4302, 7
        %v4304 = vsub.s32 %v4301, %v4303
        %v4305 = vrot.slane %v4283, %v4304
        %v4307 = vunpack.c.l.s4 1966171168
        %v4308 = vunpack.c.0.s8 %v4307
        %v4309 = vlaneseq
        %v4310 = vshrl.u32 %v4309, 7
        %v4311 = vsub.s32 %v4308, %v4310
        %v4312 = vrot.slane %v4284, %v4311
        %v4313 = vcombine.high %v4291, %v4291
        %v4314 = vcombine.high %v4298, %v4298
        %v4315 = vcombine.high %v4305, %v4305
        %v4316 = vcombine.high %v4312, %v4312
        %v4317 = vcombine.high %v3761, %v3761
        %v4319 = vunpack.c.l.s4 1966171168
        %v4320 = vunpack.c.0.s8 %v4319
        %v4321 = vlaneseq
        %v4322 = vshrl.u32 %v4321, 7
        %v4323 = vsub.s32 %v4320, %v4322
        %v4324 = vrot.slane %v3761, %v4323
        %v4326 = vunpack.c.l.s4 1966171168
        %v4327 = vunpack.c.0.s8 %v4326
        %v4328 = vlaneseq
        %v4329 = vshrl.u32 %v4328, 7
        %v4330 = vsub.s32 %v4327, %v4329
        %v4331 = vrot.slane %v4317, %v4330
        %v4332 = vcombine.high %v4324, %v4324
        %v4333 = vcombine.high %v4331, %v4331
        %v4335 = vunpack.c.l.s4 1966171168
        %v4336 = vunpack.c.0.s8 %v4335
        %v4337 = vlaneseq
        %v4338 = vshrl.u32 %v4337, 7
        %v4339 = vsub.s32 %v4336, %v4338
        %v4340 = vrot.slane %v4324, %v4339
        %v4342 = vunpack.c.l.s4 1966171168
        %v4343 = vunpack.c.0.s8 %v4342
        %v4344 = vlaneseq
        %v4345 = vshrl.u32 %v4344, 7
        %v4346 = vsub.s32 %v4343, %v4345
        %v4347 = vrot.slane %v4331, %v4346
        %v4349 = vunpack.c.l.s4 1966171168
        %v4350 = vunpack.c.0.s8 %v4349
        %v4351 = vlaneseq
        %v4352 = vshrl.u32 %v4351, 7
        %v4353 = vsub.s32 %v4350, %v4352
        %v4354 = vrot.slane %v4332, %v4353
        %v4356 = vunpack.c.l.s4 1966171168
        %v4357 = vunpack.c.0.s8 %v4356
        %v4358 = vlaneseq
        %v4359 = vshrl.u32 %v4358, 7
        %v4360 = vsub.s32 %v4357, %v4359
        %v4361 = vrot.slane %v4333, %v4360
        %v4362 = vcombine.high %v4340, %v4340
        %v4363 = vcombine.high %v4347, %v4347
        %v4364 = vcombine.high %v4354, %v4354
        %v4365 = vcombine.high %v4361, %v4361
        %v4366 = vcombine.high %v3762, %v3762
        %v4368 = vunpack.c.l.s4 1966171168
        %v4369 = vunpack.c.0.s8 %v4368
        %v4370 = vlaneseq
        %v4371 = vshrl.u32 %v4370, 7
        %v4372 = vsub.s32 %v4369, %v4371
        %v4373 = vrot.slane %v3762, %v4372
        %v4375 = vunpack.c.l.s4 1966171168
        %v4376 = vunpack.c.0.s8 %v4375
        %v4377 = vlaneseq
        %v4378 = vshrl.u32 %v4377, 7
        %v4379 = vsub.s32 %v4376, %v4378
        %v4380 = vrot.slane %v4366, %v4379
        %v4381 = vcombine.high %v4373, %v4373
        %v4382 = vcombine.high %v4380, %v4380
        %v4384 = vunpack.c.l.s4 1966171168
        %v4385 = vunpack.c.0.s8 %v4384
        %v4386 = vlaneseq
        %v4387 = vshrl.u32 %v4386, 7
        %v4388 = vsub.s32 %v4385, %v4387
        %v4389 = vrot.slane %v4373, %v4388
        %v4391 = vunpack.c.l.s4 1966171168
        %v4392 = vunpack.c.0.s8 %v4391
        %v4393 = vlaneseq
        %v4394 = vshrl.u32 %v4393, 7
        %v4395 = vsub.s32 %v4392, %v4394
        %v4396 = vrot.slane %v4380, %v4395
        %v4398 = vunpack.c.l.s4 1966171168
        %v4399 = vunpack.c.0.s8 %v4398
        %v4400 = vlaneseq
        %v4401 = vshrl.u32 %v4400, 7
        %v4402 = vsub.s32 %v4399, %v4401
        %v4403 = vrot.slane %v4381, %v4402
        %v4405 = vunpack.c.l.s4 1966171168
        %v4406 = vunpack.c.0.s8 %v4405
        %v4407 = vlaneseq
        %v4408 = vshrl.u32 %v4407, 7
        %v4409 = vsub.s32 %v4406, %v4408
        %v4410 = vrot.slane %v4382, %v4409
        %v4411 = vcombine.high %v4389, %v4389
        %v4412 = vcombine.high %v4396, %v4396
        %v4413 = vcombine.high %v4403, %v4403
        %v4414 = vcombine.high %v4410, %v4410
        %v4416 = vunpack.c.l.s4 1966171168
        %v4417 = vunpack.c.0.s8 %v4416
        %v4418 = vlaneseq
        %v4419 = vshrl.u32 %v4418, 7
        %v4420 = vsub.s32 %v4417, %v4419
        %v4421 = vrot.slane %v3763, %v4420
        %v4423 = vunpack.c.l.s4 1966171168
        %v4424 = vunpack.c.0.s8 %v4423
        %v4425 = vlaneseq
        %v4426 = vshrl.u32 %v4425, 7
        %v4427 = vsub.s32 %v4424, %v4426
        %v4428 = vrot.slane %v4421, %v4427
        %v4429 = vcombine.low %v3801, %v3815
        %v4430 = vcombine.low %v3823, %v3825
        %v4431 = vcombine.low %v3808, %v3822
        %v4432 = vcombine.low %v3824, %v3826
        %v4434 = vunpack.c.l.s4 1966171168
        %v4435 = vunpack.c.0.s8 %v4434
        %v4436 = vlaneseq
        %v4437 = vshrl.u32 %v4436, 7
        %v4438 = vsub.s32 %v4435, %v4437
        %v4439 = vrot.slane %v4429, %v4438
        %v4441 = vunpack.c.l.s4 1966171168
        %v4442 = vunpack.c.0.s8 %v4441
        %v4443 = vlaneseq
        %v4444 = vshrl.u32 %v4443, 7
        %v4445 = vsub.s32 %v4442, %v4444
        %v4446 = vrot.slane %v4430, %v4445
        %v4448 = vunpack.c.l.s4 1966171168
        %v4449 = vunpack.c.0.s8 %v4448
        %v4450 = vlaneseq
        %v4451 = vshrl.u32 %v4450, 7
        %v4452 = vsub.s32 %v4449, %v4451
        %v4453 = vrot.slane %v4431, %v4452
        %v4455 = vunpack.c.l.s4 1966171168
        %v4456 = vunpack.c.0.s8 %v4455
        %v4457 = vlaneseq
        %v4458 = vshrl.u32 %v4457, 7
        %v4459 = vsub.s32 %v4456, %v4458
        %v4460 = vrot.slane %v4432, %v4459
        %v4461 = vcombine.low %v4439, %v4446
        %v4462 = vcombine.low %v4453, %v4460
        %v4464 = vunpack.c.l.s4 1966171168
        %v4465 = vunpack.c.0.s8 %v4464
        %v4466 = vlaneseq
        %v4467 = vshrl.u32 %v4466, 7
        %v4468 = vsub.s32 %v4465, %v4467
        %v4469 = vrot.slane %v4461, %v4468
        %v4471 = vunpack.c.l.s4 1966171168
        %v4472 = vunpack.c.0.s8 %v4471
        %v4473 = vlaneseq
        %v4474 = vshrl.u32 %v4473, 7
        %v4475 = vsub.s32 %v4472, %v4474
        %v4476 = vrot.slane %v4462, %v4475
        %v4477 = vcombine.low %v4469, %v4476
        %v4478 = vcombine.low %v3850, %v3864
        %v4479 = vcombine.low %v3872, %v3874
        %v4480 = vcombine.low %v3857, %v3871
        %v4482 = vunpack.c.l.s4 1966171168
        %v4483 = vunpack.c.0.s8 %v4482
        %v4484 = vlaneseq
        %v4485 = vshrl.u32 %v4484, 7
        %v4486 = vsub.s32 %v4483, %v4485
        %v4487 = vrot.slane %v4478, %v4486
        %v4489 = vunpack.c.l.s4 1966171168
        %v4490 = vunpack.c.0.s8 %v4489
        %v4491 = vlaneseq
        %v4492 = vshrl.u32 %v4491, 7
        %v4493 = vsub.s32 %v4490, %v4492
        %v4494 = vrot.slane %v4479, %v4493
        %v4496 = vunpack.c.l.s4 1966171168
        %v4497 = vunpack.c.0.s8 %v4496
        %v4498 = vlaneseq
        %v4499 = vshrl.u32 %v4498, 7
        %v4500 = vsub.s32 %v4497, %v4499
        %v4501 = vrot.slane %v4480, %v4500
        %v4503 = vunpack.c.l.s4 1966171168
        %v4504 = vunpack.c.0.s8 %v4503
        %v4505 = vlaneseq
        %v4506 = vshrl.u32 %v4505, 7
        %v4507 = vsub.s32 %v4504, %v4506
        %v4508 = vrot.slane %v3873, %v4507
        %v4509 = vcombine.low %v4487, %v4494
        %v4510 = vcombine.low %v4501, %v4508
        %v4512 = vunpack.c.l.s4 1966171168
        %v4513 = vunpack.c.0.s8 %v4512
        %v4514 = vlaneseq
        %v4515 = vshrl.u32 %v4514, 7
        %v4516 = vsub.s32 %v4513, %v4515
        %v4517 = vrot.slane %v4509, %v4516
        %v4519 = vunpack.c.l.s4 1966171168
        %v4520 = vunpack.c.0.s8 %v4519
        %v4521 = vlaneseq
        %v4522 = vshrl.u32 %v4521, 7
        %v4523 = vsub.s32 %v4520, %v4522
        %v4524 = vrot.slane %v4510, %v4523
        %v4525 = vcombine.low %v4517, %v4524
        %v4526 = vcombine.low %v3875, %v3899
        %v4527 = vcombine.low %v3913, %v3921
        %v4528 = vcombine.low %v3923, %v3906
        %v4529 = vcombine.low %v3920, %v3922
        %v4531 = vunpack.c.l.s4 1966171168
        %v4532 = vunpack.c.0.s8 %v4531
        %v4533 = vlaneseq
        %v4534 = vshrl.u32 %v4533, 7
        %v4535 = vsub.s32 %v4532, %v4534
        %v4536 = vrot.slane %v4526, %v4535
        %v4538 = vunpack.c.l.s4 1966171168
        %v4539 = vunpack.c.0.s8 %v4538
        %v4540 = vlaneseq
        %v4541 = vshrl.u32 %v4540, 7
        %v4542 = vsub.s32 %v4539, %v4541
        %v4543 = vrot.slane %v4527, %v4542
        %v4545 = vunpack.c.l.s4 1966171168
        %v4546 = vunpack.c.0.s8 %v4545
        %v4547 = vlaneseq
        %v4548 = vshrl.u32 %v4547, 7
        %v4549 = vsub.s32 %v4546, %v4548
        %v4550 = vrot.slane %v4528, %v4549
        %v4552 = vunpack.c.l.s4 1966171168
        %v4553 = vunpack.c.0.s8 %v4552
        %v4554 = vlaneseq
        %v4555 = vshrl.u32 %v4554, 7
        %v4556 = vsub.s32 %v4553, %v4555
        %v4557 = vrot.slane %v4529, %v4556
        %v4558 = vcombine.low %v4536, %v4543
        %v4559 = vcombine.low %v4550, %v4557
        %v4561 = vunpack.c.l.s4 1966171168
        %v4562 = vunpack.c.0.s8 %v4561
        %v4563 = vlaneseq
        %v4564 = vshrl.u32 %v4563, 7
        %v4565 = vsub.s32 %v4562, %v4564
        %v4566 = vrot.slane %v4558, %v4565
        %v4568 = vunpack.c.l.s4 1966171168
        %v4569 = vunpack.c.0.s8 %v4568
        %v4570 = vlaneseq
        %v4571 = vshrl.u32 %v4570, 7
        %v4572 = vsub.s32 %v4569, %v4571
        %v4573 = vrot.slane %v4559, %v4572
        %v4574 = vcombine.low %v4566, %v4573
        %v4575 = vcombine.low %v3924, %v3948
        %v4576 = vcombine.low %v3962, %v3970
        %v4577 = vcombine.low %v3972, %v3955
        %v4579 = vunpack.c.l.s4 1966171168
        %v4580 = vunpack.c.0.s8 %v4579
        %v4581 = vlaneseq
        %v4582 = vshrl.u32 %v4581, 7
        %v4583 = vsub.s32 %v4580, %v4582
        %v4584 = vrot.slane %v4575, %v4583
        %v4586 = vunpack.c.l.s4 1966171168
        %v4587 = vunpack.c.0.s8 %v4586
        %v4588 = vlaneseq
        %v4589 = vshrl.u32 %v4588, 7
        %v4590 = vsub.s32 %v4587, %v4589
        %v4591 = vrot.slane %v4576, %v4590
        %v4593 = vunpack.c.l.s4 1966171168
        %v4594 = vunpack.c.0.s8 %v4593
        %v4595 = vlaneseq
        %v4596 = vshrl.u32 %v4595, 7
        %v4597 = vsub.s32 %v4594, %v4596
        %v4598 = vrot.slane %v4577, %v4597
        %v4600 = vunpack.c.l.s4 1966171168
        %v4601 = vunpack.c.0.s8 %v4600
        %v4602 = vlaneseq
        %v4603 = vshrl.u32 %v4602, 7
        %v4604 = vsub.s32 %v4601, %v4603
        %v4605 = vrot.slane %v3969, %v4604
        %v4606 = vcombine.low %v4584, %v4591
        %v4607 = vcombine.low %v4598, %v4605
        %v4609 = vunpack.c.l.s4 1966171168
        %v4610 = vunpack.c.0.s8 %v4609
        %v4611 = vlaneseq
        %v4612 = vshrl.u32 %v4611, 7
        %v4613 = vsub.s32 %v4610, %v4612
        %v4614 = vrot.slane %v4606, %v4613
        %v4616 = vunpack.c.l.s4 1966171168
        %v4617 = vunpack.c.0.s8 %v4616
        %v4618 = vlaneseq
        %v4619 = vshrl.u32 %v4618, 7
        %v4620 = vsub.s32 %v4617, %v4619
        %v4621 = vrot.slane %v4607, %v4620
        %v4622 = vcombine.low %v4614, %v4621
        %v4623 = vcombine.low %v3971, %v3973
        %v4624 = vcombine.low %v3997, %v4011
        %v4625 = vcombine.low %v4019, %v4021
        %v4626 = vcombine.low %v4004, %v4018
        %v4628 = vunpack.c.l.s4 1966171168
        %v4629 = vunpack.c.0.s8 %v4628
        %v4630 = vlaneseq
        %v4631 = vshrl.u32 %v4630, 7
        %v4632 = vsub.s32 %v4629, %v4631
        %v4633 = vrot.slane %v4623, %v4632
        %v4635 = vunpack.c.l.s4 1966171168
        %v4636 = vunpack.c.0.s8 %v4635
        %v4637 = vlaneseq
        %v4638 = vshrl.u32 %v4637, 7
        %v4639 = vsub.s32 %v4636, %v4638
        %v4640 = vrot.slane %v4624, %v4639
        %v4642 = vunpack.c.l.s4 1966171168
        %v4643 = vunpack.c.0.s8 %v4642
        %v4644 = vlaneseq
        %v4645 = vshrl.u32 %v4644, 7
        %v4646 = vsub.s32 %v4643, %v4645
        %v4647 = vrot.slane %v4625, %v4646
        %v4649 = vunpack.c.l.s4 1966171168
        %v4650 = vunpack.c.0.s8 %v4649
        %v4651 = vlaneseq
        %v4652 = vshrl.u32 %v4651, 7
        %v4653 = vsub.s32 %v4650, %v4652
        %v4654 = vrot.slane %v4626, %v4653
        %v4655 = vcombine.low %v4633, %v4640
        %v4656 = vcombine.low %v4647, %v4654
        %v4658 = vunpack.c.l.s4 1966171168
        %v4659 = vunpack.c.0.s8 %v4658
        %v4660 = vlaneseq
        %v4661 = vshrl.u32 %v4660, 7
        %v4662 = vsub.s32 %v4659, %v4661
        %v4663 = vrot.slane %v4655, %v4662
        %v4665 = vunpack.c.l.s4 1966171168
        %v4666 = vunpack.c.0.s8 %v4665
        %v4667 = vlaneseq
        %v4668 = vshrl.u32 %v4667, 7
        %v4669 = vsub.s32 %v4666, %v4668
        %v4670 = vrot.slane %v4656, %v4669
        %v4671 = vcombine.low %v4663, %v4670
        %v4672 = vcombine.low %v4020, %v4022
        %v4673 = vcombine.low %v4046, %v4060
        %v4674 = vcombine.low %v4068, %v4070
        %v4676 = vunpack.c.l.s4 1966171168
        %v4677 = vunpack.c.0.s8 %v4676
        %v4678 = vlaneseq
        %v4679 = vshrl.u32 %v4678, 7
        %v4680 = vsub.s32 %v4677, %v4679
        %v4681 = vrot.slane %v4672, %v4680
        %v4683 = vunpack.c.l.s4 1966171168
        %v4684 = vunpack.c.0.s8 %v4683
        %v4685 = vlaneseq
        %v4686 = vshrl.u32 %v4685, 7
        %v4687 = vsub.s32 %v4684, %v4686
        %v4688 = vrot.slane %v4673, %v4687
        %v4690 = vunpack.c.l.s4 1966171168
        %v4691 = vunpack.c.0.s8 %v4690
        %v4692 = vlaneseq
        %v4693 = vshrl.u32 %v4692, 7
        %v4694 = vsub.s32 %v4691, %v4693
        %v4695 = vrot.slane %v4674, %v4694
        %v4697 = vunpack.c.l.s4 1966171168
        %v4698 = vunpack.c.0.s8 %v4697
        %v4699 = vlaneseq
        %v4700 = vshrl.u32 %v4699, 7
        %v4701 = vsub.s32 %v4698, %v4700
        %v4702 = vrot.slane %v4053, %v4701
        %v4703 = vcombine.low %v4681, %v4688
        %v4704 = vcombine.low %v4695, %v4702
        %v4706 = vunpack.c.l.s4 1966171168
        %v4707 = vunpack.c.0.s8 %v4706
        %v4708 = vlaneseq
        %v4709 = vshrl.u32 %v4708, 7
        %v4710 = vsub.s32 %v4707, %v4709
        %v4711 = vrot.slane %v4703, %v4710
        %v4713 = vunpack.c.l.s4 1966171168
        %v4714 = vunpack.c.0.s8 %v4713
        %v4715 = vlaneseq
        %v4716 = vshrl.u32 %v4715, 7
        %v4717 = vsub.s32 %v4714, %v4716
        %v4718 = vrot.slane %v4704, %v4717
        %v4719 = vcombine.low %v4711, %v4718
        %v4720 = vcombine.low %v4067, %v4069
        %v4721 = vcombine.low %v4071, %v4095
        %v4722 = vcombine.low %v4109, %v4117
        %v4723 = vcombine.low %v4119, %v4102
        %v4725 = vunpack.c.l.s4 1966171168
        %v4726 = vunpack.c.0.s8 %v4725
        %v4727 = vlaneseq
        %v4728 = vshrl.u32 %v4727, 7
        %v4729 = vsub.s32 %v4726, %v4728
        %v4730 = vrot.slane %v4720, %v4729
        %v4732 = vunpack.c.l.s4 1966171168
        %v4733 = vunpack.c.0.s8 %v4732
        %v4734 = vlaneseq
        %v4735 = vshrl.u32 %v4734, 7
        %v4736 = vsub.s32 %v4733, %v4735
        %v4737 = vrot.slane %v4721, %v4736
        %v4739 = vunpack.c.l.s4 1966171168
        %v4740 = vunpack.c.0.s8 %v4739
        %v4741 = vlaneseq
        %v4742 = vshrl.u32 %v4741, 7
        %v4743 = vsub.s32 %v4740, %v4742
        %v4744 = vrot.slane %v4722, %v4743
        %v4746 = vunpack.c.l.s4 1966171168
        %v4747 = vunpack.c.0.s8 %v4746
        %v4748 = vlaneseq
        %v4749 = vshrl.u32 %v4748, 7
        %v4750 = vsub.s32 %v4747, %v4749
        %v4751 = vrot.slane %v4723, %v4750
        %v4752 = vcombine.low %v4730, %v4737
        %v4753 = vcombine.low %v4744, %v4751
        %v4755 = vunpack.c.l.s4 1966171168
        %v4756 = vunpack.c.0.s8 %v4755
        %v4757 = vlaneseq
        %v4758 = vshrl.u32 %v4757, 7
        %v4759 = vsub.s32 %v4756, %v4758
        %v4760 = vrot.slane %v4752, %v4759
        %v4762 = vunpack.c.l.s4 1966171168
        %v4763 = vunpack.c.0.s8 %v4762
        %v4764 = vlaneseq
        %v4765 = vshrl.u32 %v4764, 7
        %v4766 = vsub.s32 %v4763, %v4765
        %v4767 = vrot.slane %v4753, %v4766
        %v4768 = vcombine.low %v4760, %v4767
        %v4769 = vcombine.low %v4116, %v4118
        %v4770 = vcombine.low %v4120, %v4144
        %v4771 = vcombine.low %v4158, %v4166
        %v4773 = vunpack.c.l.s4 1966171168
        %v4774 = vunpack.c.0.s8 %v4773
        %v4775 = vlaneseq
        %v4776 = vshrl.u32 %v4775, 7
        %v4777 = vsub.s32 %v4774, %v4776
        %v4778 = vrot.slane %v4769, %v4777
        %v4780 = vunpack.c.l.s4 1966171168
        %v4781 = vunpack.c.0.s8 %v4780
        %v4782 = vlaneseq
        %v4783 = vshrl.u32 %v4782, 7
        %v4784 = vsub.s32 %v4781, %v4783
        %v4785 = vrot.slane %v4770, %v4784
        %v4787 = vunpack.c.l.s4 1966171168
        %v4788 = vunpack.c.0.s8 %v4787
        %v4789 = vlaneseq
        %v4790 = vshrl.u32 %v4789, 7
        %v4791 = vsub.s32 %v4788, %v4790
        %v4792 = vrot.slane %v4771, %v4791
        %v4794 = vunpack.c.l.s4 1966171168
        %v4795 = vunpack.c.0.s8 %v4794
        %v4796 = vlaneseq
        %v4797 = vshrl.u32 %v4796, 7
        %v4798 = vsub.s32 %v4795, %v4797
        %v4799 = vrot.slane %v4168, %v4798
        %v4800 = vcombine.low %v4778, %v4785
        %v4801 = vcombine.low %v4792, %v4799
        %v4803 = vunpack.c.l.s4 1966171168
        %v4804 = vunpack.c.0.s8 %v4803
        %v4805 = vlaneseq
        %v4806 = vshrl.u32 %v4805, 7
        %v4807 = vsub.s32 %v4804, %v4806
        %v4808 = vrot.slane %v4800, %v4807
        %v4810 = vunpack.c.l.s4 1966171168
        %v4811 = vunpack.c.0.s8 %v4810
        %v4812 = vlaneseq
        %v4813 = vshrl.u32 %v4812, 7
        %v4814 = vsub.s32 %v4811, %v4813
        %v4815 = vrot.slane %v4801, %v4814
        %v4816 = vcombine.low %v4808, %v4815
        %v4817 = vcombine.low %v4151, %v4165
        %v4818 = vcombine.low %v4167, %v4169
        %v4819 = vcombine.low %v4193, %v4207
        %v4820 = vcombine.low %v4215, %v4217
        %v4822 = vunpack.c.l.s4 1966171168
        %v4823 = vunpack.c.0.s8 %v4822
        %v4824 = vlaneseq
        %v4825 = vshrl.u32 %v4824, 7
        %v4826 = vsub.s32 %v4823, %v4825
        %v4827 = vrot.slane %v4817, %v4826
        %v4829 = vunpack.c.l.s4 1966171168
        %v4830 = vunpack.c.0.s8 %v4829
        %v4831 = vlaneseq
        %v4832 = vshrl.u32 %v4831, 7
        %v4833 = vsub.s32 %v4830, %v4832
        %v4834 = vrot.slane %v4818, %v4833
        %v4836 = vunpack.c.l.s4 1966171168
        %v4837 = vunpack.c.0.s8 %v4836
        %v4838 = vlaneseq
        %v4839 = vshrl.u32 %v4838, 7
        %v4840 = vsub.s32 %v4837, %v4839
        %v4841 = vrot.slane %v4819, %v4840
        %v4843 = vunpack.c.l.s4 1966171168
        %v4844 = vunpack.c.0.s8 %v4843
        %v4845 = vlaneseq
        %v4846 = vshrl.u32 %v4845, 7
        %v4847 = vsub.s32 %v4844, %v4846
        %v4848 = vrot.slane %v4820, %v4847
        %v4849 = vcombine.low %v4827, %v4834
        %v4850 = vcombine.low %v4841, %v4848
        %v4852 = vunpack.c.l.s4 1966171168
        %v4853 = vunpack.c.0.s8 %v4852
        %v4854 = vlaneseq
        %v4855 = vshrl.u32 %v4854, 7
        %v4856 = vsub.s32 %v4853, %v4855
        %v4857 = vrot.slane %v4849, %v4856
        %v4859 = vunpack.c.l.s4 1966171168
        %v4860 = vunpack.c.0.s8 %v4859
        %v4861 = vlaneseq
        %v4862 = vshrl.u32 %v4861, 7
        %v4863 = vsub.s32 %v4860, %v4862
        %v4864 = vrot.slane %v4850, %v4863
        %v4865 = vcombine.low %v4857, %v4864
        %v4866 = vcombine.low %v4200, %v4214
        %v4867 = vcombine.low %v4216, %v4218
        %v4868 = vcombine.low %v4242, %v4256
        %v4870 = vunpack.c.l.s4 1966171168
        %v4871 = vunpack.c.0.s8 %v4870
        %v4872 = vlaneseq
        %v4873 = vshrl.u32 %v4872, 7
        %v4874 = vsub.s32 %v4871, %v4873
        %v4875 = vrot.slane %v4866, %v4874
        %v4877 = vunpack.c.l.s4 1966171168
        %v4878 = vunpack.c.0.s8 %v4877
        %v4879 = vlaneseq
        %v4880 = vshrl.u32 %v4879, 7
        %v4881 = vsub.s32 %v4878, %v4880
        %v4882 = vrot.slane %v4867, %v4881
        %v4884 = vunpack.c.l.s4 1966171168
        %v4885 = vunpack.c.0.s8 %v4884
        %v4886 = vlaneseq
        %v4887 = vshrl.u32 %v4886, 7
        %v4888 = vsub.s32 %v4885, %v4887
        %v4889 = vrot.slane %v4868, %v4888
        %v4891 = vunpack.c.l.s4 1966171168
        %v4892 = vunpack.c.0.s8 %v4891
        %v4893 = vlaneseq
        %v4894 = vshrl.u32 %v4893, 7
        %v4895 = vsub.s32 %v4892, %v4894
        %v4896 = vrot.slane %v4264, %v4895
        %v4897 = vcombine.low %v4875, %v4882
        %v4898 = vcombine.low %v4889, %v4896
        %v4900 = vunpack.c.l.s4 1966171168
        %v4901 = vunpack.c.0.s8 %v4900
        %v4902 = vlaneseq
        %v4903 = vshrl.u32 %v4902, 7
        %v4904 = vsub.s32 %v4901, %v4903
        %v4905 = vrot.slane %v4897, %v4904
        %v4907 = vunpack.c.l.s4 1966171168
        %v4908 = vunpack.c.0.s8 %v4907
        %v4909 = vlaneseq
        %v4910 = vshrl.u32 %v4909, 7
        %v4911 = vsub.s32 %v4908, %v4910
        %v4912 = vrot.slane %v4898, %v4911
        %v4913 = vcombine.low %v4905, %v4912
        %v4914 = vcombine.low %v4266, %v4249
        %v4915 = vcombine.low %v4263, %v4265
        %v4916 = vcombine.low %v4267, %v4291
        %v4917 = vcombine.low %v4305, %v4313
        %v4919 = vunpack.c.l.s4 1966171168
        %v4920 = vunpack.c.0.s8 %v4919
        %v4921 = vlaneseq
        %v4922 = vshrl.u32 %v4921, 7
        %v4923 = vsub.s32 %v4920, %v4922
        %v4924 = vrot.slane %v4914, %v4923
        %v4926 = vunpack.c.l.s4 1966171168
        %v4927 = vunpack.c.0.s8 %v4926
        %v4928 = vlaneseq
        %v4929 = vshrl.u32 %v4928, 7
        %v4930 = vsub.s32 %v4927, %v4929
        %v4931 = vrot.slane %v4915, %v4930
        %v4933 = vunpack.c.l.s4 1966171168
        %v4934 = vunpack.c.0.s8 %v4933
        %v4935 = vlaneseq
        %v4936 = vshrl.u32 %v4935, 7
        %v4937 = vsub.s32 %v4934, %v4936
        %v4938 = vrot.slane %v4916, %v4937
        %v4940 = vunpack.c.l.s4 1966171168
        %v4941 = vunpack.c.0.s8 %v4940
        %v4942 = vlaneseq
        %v4943 = vshrl.u32 %v4942, 7
        %v4944 = vsub.s32 %v4941, %v4943
        %v4945 = vrot.slane %v4917, %v4944
        %v4946 = vcombine.low %v4924, %v4931
        %v4947 = vcombine.low %v4938, %v4945
        %v4949 = vunpack.c.l.s4 1966171168
        %v4950 = vunpack.c.0.s8 %v4949
        %v4951 = vlaneseq
        %v4952 = vshrl.u32 %v4951, 7
        %v4953 = vsub.s32 %v4950, %v4952
        %v4954 = vrot.slane %v4946, %v4953
        %v4956 = vunpack.c.l.s4 1966171168
        %v4957 = vunpack.c.0.s8 %v4956
        %v4958 = vlaneseq
        %v4959 = vshrl.u32 %v4958, 7
        %v4960 = vsub.s32 %v4957, %v4959
        %v4961 = vrot.slane %v4947, %v4960
        %v4962 = vcombine.low %v4954, %v4961
        %v4963 = vcombine.low %v4315, %v4298
        %v4964 = vcombine.low %v4312, %v4314
        %v4965 = vcombine.low %v4316, %v4340
        %v4967 = vunpack.c.l.s4 1966171168
        %v4968 = vunpack.c.0.s8 %v4967
        %v4969 = vlaneseq
        %v4970 = vshrl.u32 %v4969, 7
        %v4971 = vsub.s32 %v4968, %v4970
        %v4972 = vrot.slane %v4963, %v4971
        %v4974 = vunpack.c.l.s4 1966171168
        %v4975 = vunpack.c.0.s8 %v4974
        %v4976 = vlaneseq
        %v4977 = vshrl.u32 %v4976, 7
        %v4978 = vsub.s32 %v4975, %v4977
        %v4979 = vrot.slane %v4964, %v4978
        %v4981 = vunpack.c.l.s4 1966171168
        %v4982 = vunpack.c.0.s8 %v4981
        %v4983 = vlaneseq
        %v4984 = vshrl.u32 %v4983, 7
        %v4985 = vsub.s32 %v4982, %v4984
        %v4986 = vrot.slane %v4965, %v4985
        %v4988 = vunpack.c.l.s4 1966171168
        %v4989 = vunpack.c.0.s8 %v4988
        %v4990 = vlaneseq
        %v4991 = vshrl.u32 %v4990, 7
        %v4992 = vsub.s32 %v4989, %v4991
        %v4993 = vrot.slane %v4354, %v4992
        %v4994 = vcombine.low %v4972, %v4979
        %v4995 = vcombine.low %v4986, %v4993
        %v4997 = vunpack.c.l.s4 1966171168
        %v4998 = vunpack.c.0.s8 %v4997
        %v4999 = vlaneseq
        %v5000 = vshrl.u32 %v4999, 7
        %v5001 = vsub.s32 %v4998, %v5000
        %v5002 = vrot.slane %v4994, %v5001
        %v5004 = vunpack.c.l.s4 1966171168
        %v5005 = vunpack.c.0.s8 %v5004
        %v5006 = vlaneseq
        %v5007 = vshrl.u32 %v5006, 7
        %v5008 = vsub.s32 %v5005, %v5007
        %v5009 = vrot.slane %v4995, %v5008
        %v5010 = vcombine.low %v5002, %v5009
        %v5011 = vcombine.low %v4362, %v4364
        %v5012 = vcombine.low %v4347, %v4361
        %v5013 = vcombine.low %v4363, %v4365
        %v5014 = vcombine.low %v4389, %v4403
        %v5016 = vunpack.c.l.s4 1966171168
        %v5017 = vunpack.c.0.s8 %v5016
        %v5018 = vlaneseq
        %v5019 = vshrl.u32 %v5018, 7
        %v5020 = vsub.s32 %v5017, %v5019
        %v5021 = vrot.slane %v5011, %v5020
        %v5023 = vunpack.c.l.s4 1966171168
        %v5024 = vunpack.c.0.s8 %v5023
        %v5025 = vlaneseq
        %v5026 = vshrl.u32 %v5025, 7
        %v5027 = vsub.s32 %v5024, %v5026
        %v5028 = vrot.slane %v5012, %v5027
        %v5030 = vunpack.c.l.s4 1966171168
        %v5031 = vunpack.c.0.s8 %v5030
        %v5032 = vlaneseq
        %v5033 = vshrl.u32 %v5032, 7
        %v5034 = vsub.s32 %v5031, %v5033
        %v5035 = vrot.slane %v5013, %v5034
        %v5037 = vunpack.c.l.s4 1966171168
        %v5038 = vunpack.c.0.s8 %v5037
        %v5039 = vlaneseq
        %v5040 = vshrl.u32 %v5039, 7
        %v5041 = vsub.s32 %v5038, %v5040
        %v5042 = vrot.slane %v5014, %v5041
        %v5043 = vcombine.low %v5021, %v5028
        %v5044 = vcombine.low %v5035, %v5042
        %v5046 = vunpack.c.l.s4 1966171168
        %v5047 = vunpack.c.0.s8 %v5046
        %v5048 = vlaneseq
        %v5049 = vshrl.u32 %v5048, 7
        %v5050 = vsub.s32 %v5047, %v5049
        %v5051 = vrot.slane %v5043, %v5050
        %v5053 = vunpack.c.l.s4 1966171168
        %v5054 = vunpack.c.0.s8 %v5053
        %v5055 = vlaneseq
        %v5056 = vshrl.u32 %v5055, 7
        %v5057 = vsub.s32 %v5054, %v5056
        %v5058 = vrot.slane %v5044, %v5057
        %v5059 = vcombine.low %v5051, %v5058
        %v5060 = vcombine.low %v4411, %v4413
        %v5061 = vcombine.low %v4396, %v4410
        %v5062 = vcombine.low %v4412, %v4414
        %v5064 = vunpack.c.l.s4 1966171168
        %v5065 = vunpack.c.0.s8 %v5064
        %v5066 = vlaneseq
        %v5067 = vshrl.u32 %v5066, 7
        %v5068 = vsub.s32 %v5065, %v5067
        %v5069 = vrot.slane %v5060, %v5068
        %v5071 = vunpack.c.l.s4 1966171168
        %v5072 = vunpack.c.0.s8 %v5071
        %v5073 = vlaneseq
        %v5074 = vshrl.u32 %v5073, 7
        %v5075 = vsub.s32 %v5072, %v5074
        %v5076 = vrot.slane %v5061, %v5075
        %v5078 = vunpack.c.l.s4 1966171168
        %v5079 = vunpack.c.0.s8 %v5078
        %v5080 = vlaneseq
        %v5081 = vshrl.u32 %v5080, 7
        %v5082 = vsub.s32 %v5079, %v5081
        %v5083 = vrot.slane %v5062, %v5082
        %v5085 = vunpack.c.l.s4 1966171168
        %v5086 = vunpack.c.0.s8 %v5085
        %v5087 = vlaneseq
        %v5088 = vshrl.u32 %v5087, 7
        %v5089 = vsub.s32 %v5086, %v5088
        %v5090 = vrot.slane %v4428, %v5089
        %v5091 = vcombine.low %v5069, %v5076
        %v5092 = vcombine.low %v5083, %v5090
        %v5094 = vunpack.c.l.s4 1966171168
        %v5095 = vunpack.c.0.s8 %v5094
        %v5096 = vlaneseq
        %v5097 = vshrl.u32 %v5096, 7
        %v5098 = vsub.s32 %v5095, %v5097
        %v5099 = vrot.slane %v5091, %v5098
        %v5101 = vunpack.c.l.s4 1966171168
        %v5102 = vunpack.c.0.s8 %v5101
        %v5103 = vlaneseq
        %v5104 = vshrl.u32 %v5103, 7
        %v5105 = vsub.s32 %v5102, %v5104
        %v5106 = vrot.slane %v5092, %v5105
        %v5107 = vcombine.low %v5099, %v5106
        %vm5122 = vcmask 1046528
        %v5123 = vsel %vm5122, %v4525, 0.0
        %v5124 = vadd.f32 %v4477, %v5123
        %v5125 = vrot.slane %v5124, 4
        %v5126 = vadd.f32 %v5124, %v5125
        %v5127 = vrot.slane %v5126, 2
        %v5128 = vadd.f32 %v5126, %v5127
        %v5129 = vrot.slane %v5128, 1
        %v5130 = vadd.f32 %v5128, %v5129
        %v5131 = vsel %vm5122, %v4622, 0.0
        %v5132 = vadd.f32 %v4574, %v5131
        %v5133 = vrot.slane %v5132, 4
        %v5134 = vadd.f32 %v5132, %v5133
        %v5135 = vrot.slane %v5134, 2
        %v5136 = vadd.f32 %v5134, %v5135
        %v5137 = vrot.slane %v5136, 1
        %v5138 = vadd.f32 %v5136, %v5137
        %v5139 = vsel %vm5122, %v4719, 0.0
        %v5140 = vadd.f32 %v4671, %v5139
        %v5141 = vrot.slane %v5140, 4
        %v5142 = vadd.f32 %v5140, %v5141
        %v5143 = vrot.slane %v5142, 2
        %v5144 = vadd.f32 %v5142, %v5143
        %v5145 = vrot.slane %v5144, 1
        %v5146 = vadd.f32 %v5144, %v5145
        %v5147 = vsel %vm5122, %v4816, 0.0
        %v5148 = vadd.f32 %v4768, %v5147
        %v5149 = vrot.slane %v5148, 4
        %v5150 = vadd.f32 %v5148, %v5149
        %v5151 = vrot.slane %v5150, 2
        %v5152 = vadd.f32 %v5150, %v5151
        %v5153 = vrot.slane %v5152, 1
        %v5154 = vadd.f32 %v5152, %v5153
        %v5155 = vsel %vm5122, %v4913, 0.0
        %v5156 = vadd.f32 %v4865, %v5155
        %v5157 = vrot.slane %v5156, 4
        %v5158 = vadd.f32 %v5156, %v5157
        %v5159 = vrot.slane %v5158, 2
        %v5160 = vadd.f32 %v5158, %v5159
        %v5161 = vrot.slane %v5160, 1
        %v5162 = vadd.f32 %v5160, %v5161
        %v5163 = vsel %vm5122, %v5010, 0.0
        %v5164 = vadd.f32 %v4962, %v5163
        %v5165 = vrot.slane %v5164, 4
        %v5166 = vadd.f32 %v5164, %v5165
        %v5167 = vrot.slane %v5166, 2
        %v5168 = vadd.f32 %v5166, %v5167
        %v5169 = vrot.slane %v5168, 1
        %v5170 = vadd.f32 %v5168, %v5169
        %v5171 = vsel %vm5122, %v5107, 0.0
        %v5172 = vadd.f32 %v5059, %v5171
        %v5173 = vrot.slane %v5172, 4
        %v5174 = vadd.f32 %v5172, %v5173
        %v5175 = vrot.slane %v5174, 2
        %v5176 = vadd.f32 %v5174, %v5175
        %v5177 = vrot.slane %v5176, 1
        %v5178 = vadd.f32 %v5176, %v5177
        %v5179 = vadd.f32 %v5130, %v5138
        %v5180 = vadd.f32 %v5138, %v5146
        %v5181 = vadd.f32 %v5146, %v5154
        %v5182 = vadd.f32 %v5179, %v5146
        %v5183 = vadd.f32 %v5180, %v5154
        %v5184 = vadd.f32 %v5181, %v5162
        %v5185 = vadd.f32 %v5182, %v5154
        %v5186 = vadd.f32 %v5183, %v5162
        %v5187 = vadd.f32 %v5184, %v5170
        %v5188 = vadd.f32 %v5185, %v5162
        %v5189 = vadd.f32 %v5186, %v5170
        %v5190 = vadd.f32 %v5187, %v5178
        %v5191 = vmul.f32 %v5188, 0.013333334
        %v5192 = vmul.f32 %v5189, 0.013333334
        %v5193 = vmul.f32 %v5190, 0.013333334
        %v5194 = vmax.f32 %v5191, 1e-06
        %v5195 = vmax.f32 %v5192, 1e-06
        %v5196 = vmax.f32 %v5193, 1e-06
        %v5197 = vlog2.pop %v5194
        %v5198 = vmul.f32 %v5197, 0.6931472
        %v5199 = vlog2.pop %v5195
        %v5200 = vmul.f32 %v5199, 0.6931472
        %v5201 = vlog2.pop %v5196
        %v5202 = vmul.f32 %v5201, 0.6931472
        %vm5206 = vcmask 1041409
        %v5207 = vsel %vm5206, %v5200, %v5198
        %vm5208 = vcmask 1042434
        %v5209 = vsel %vm5208, %v5202, %v5207
        %5211 = vst [vmem:[%s259] sm:$0x7] %v5209
        %v5212 = vld [vmem:[%s3] sm:$0xff]
        %v5213 = vld [vmem:[%s3 + $0x8] sm:$0xff]
        %v5214 = vld [vmem:[%s3 + $0x10] sm:$0xff]
        %v5215 = vld [vmem:[%s3 + $0x18] sm:$0xff]
        %v5216 = vld [vmem:[%s3 + $0x20] sm:$0xff]
        %v5217 = vld [vmem:[%s3 + $0x28] sm:$0xff]
        %v5218 = vld [vmem:[%s3 + $0x30] sm:$0xff]
        %v5219 = vld [vmem:[%s3 + $0x38] sm:$0xff]
        %v5220 = vld [vmem:[%s3 + $0x40] sm:$0xff]
        %v5221 = vld [vmem:[%s3 + $0x48] sm:$0xff]
        %v5222 = vld [vmem:[%s3 + $0x50] sm:$0xff]
        %v5223 = vld [vmem:[%s3 + $0x58] sm:$0xff]
        %v5224 = vld [vmem:[%s3 + $0x60] sm:$0xff]
        %v5225 = vld [vmem:[%s3 + $0x68] sm:$0xff]
        %v5226 = vld [vmem:[%s3 + $0x70] sm:$0xff]
        %v5227 = vld [vmem:[%s3 + $0x78] sm:$0xff]
        %v5228 = vld [vmem:[%s3 + $0x80] sm:$0xff]
        %v5229 = vld [vmem:[%s3 + $0x88] sm:$0xff]
        %v5230 = vld [vmem:[%s3 + $0x90] sm:$0xff]
        %v5231 = vld [vmem:[%s3 + $0x98] sm:$0xff]
        %v5232 = vld [vmem:[%s3 + $0xa0] sm:$0xff]
        %v5233 = vld [vmem:[%s3 + $0xa8] sm:$0xff]
        %v5234 = vld [vmem:[%s3 + $0xb0] sm:$0xff]
        %v5235 = vld [vmem:[%s3 + $0xb8] sm:$0xff]
        %v5236 = vld [vmem:[%s3 + $0xc0] sm:$0xff]
        %v5237 = vld [vmem:[%s3 + $0xc8] sm:$0xff]
        %v5238 = vld [vmem:[%s3 + $0xd0] sm:$0xff]
        %v5239 = vld [vmem:[%s3 + $0xd8] sm:$0xff]
        %v5240 = vld [vmem:[%s3 + $0xe0] sm:$0xff]
        %v5241 = vld [vmem:[%s3 + $0xe8] sm:$0xff]
        %v5242 = vld [vmem:[%s3 + $0xf0] sm:$0xff]
        %v5243 = vld [vmem:[%s3 + $0xf8] sm:$0xff]
        %v5244 = vld [vmem:[%s3 + $0x100] sm:$0xff]
        %v5245 = vld [vmem:[%s3 + $0x108] sm:$0xff]
        %v5246 = vld [vmem:[%s3 + $0x110] sm:$0xff]
        %v5247 = vld [vmem:[%s3 + $0x118] sm:$0xff]
        %v5248 = vld [vmem:[%s3 + $0x120] sm:$0xff]
        %v5249 = vld [vmem:[%s3 + $0x128] sm:$0xff]
        %v5250 = vld [vmem:[%s3 + $0x130] sm:$0xff]
        %v5251 = vld [vmem:[%s3 + $0x138] sm:$0xff]
        %v5252 = vld [vmem:[%s3 + $0x140] sm:$0xff]
        %v5253 = vld [vmem:[%s3 + $0x148] sm:$0xff]
        %v5254 = vld [vmem:[%s3 + $0x150] sm:$0xff]
        %v5255 = vld [vmem:[%s3 + $0x158] sm:$0xff]
        %v5256 = vld [vmem:[%s3 + $0x160] sm:$0xff]
        %v5257 = vld [vmem:[%s3 + $0x168] sm:$0xff]
        %v5258 = vld [vmem:[%s3 + $0x170] sm:$0xff]
        %v5259 = vld [vmem:[%s3 + $0x178] sm:$0xff]
        %v5260 = vld [vmem:[%s4] sm:$0x1]
        %v5262 = vlaneseq
        %v5263 = vshrl.u32 %v5262, 7
        %v5264 = vsub.s32 0, %v5263
        %v5265 = vrot.slane %v5209, %v5264
        %v5266 = vlaneseq
        %v5267 = vshrl.u32 %v5266, 7
        %v5268 = vsub.s32 1, %v5267
        %v5269 = vrot.slane %v5209, %v5268
        %v5270 = vlaneseq
        %v5271 = vshrl.u32 %v5270, 7
        %v5272 = vsub.s32 2, %v5271
        %v5273 = vrot.slane %v5209, %v5272
        %5277 = vmatprep.subr.mxu0 0.0
        %5278 = vmatpush1.msra.mxu0 %v5212
        %5279 = vmatprep.subr.mxu0 0.0
        %5280 = vmatpush1.msra.mxu0 %v5213
        %5281 = vmatprep.subr.mxu0 0.0
        %5282 = vmatpush1.msra.mxu0 %v5214
        %5283 = vmatprep.subr.mxu0 0.0
        %5284 = vmatpush1.msra.mxu0 %v5215
        %5285 = vmatprep.subr.mxu0 0.0
        %5286 = vmatpush1.msra.mxu0 %v5216
        %5287 = vmatprep.subr.mxu0 0.0
        %5288 = vmatpush1.msra.mxu0 %v5217
        %5289 = vmatprep.subr.mxu0 0.0
        %5290 = vmatpush1.msra.mxu0 %v5218
        %5291 = vmatprep.subr.mxu0 0.0
        %5292 = vmatpush1.msra.mxu0 %v5219
        %5293 = vmatprep.subr.mxu0 0.0
        %5294 = vmatpush1.msra.mxu0 %v5220
        %5295 = vmatprep.subr.mxu0 0.0
        %5296 = vmatpush1.msra.mxu0 %v5221
        %5297 = vmatprep.subr.mxu0 0.0
        %5298 = vmatpush1.msra.mxu0 %v5222
        %5299 = vmatprep.subr.mxu0 0.0
        %5300 = vmatpush1.msra.mxu0 %v5223
        %5301 = vmatprep.subr.mxu0 0.0
        %5302 = vmatpush1.msra.mxu0 %v5224
        %5303 = vmatprep.subr.mxu0 0.0
        %5304 = vmatpush1.msra.mxu0 %v5225
        %5305 = vmatprep.subr.mxu0 0.0
        %5306 = vmatpush1.msra.mxu0 %v5226
        %5307 = vmatprep.subr.mxu0 0.0
        %5308 = vmatpush1.msra.mxu0 %v5227
        %5309 = vmatprep.subr.mxu0 0.0
        %5310 = vmatpush1.msra.mxu0 %v5228
        %5311 = vmatprep.subr.mxu0 0.0
        %5312 = vmatpush1.msra.mxu0 %v5229
        %5313 = vmatprep.subr.mxu0 0.0
        %5314 = vmatpush1.msra.mxu0 %v5230
        %5315 = vmatprep.subr.mxu0 0.0
        %5316 = vmatpush1.msra.mxu0 %v5231
        %5317 = vmatprep.subr.mxu0 0.0
        %5318 = vmatpush1.msra.mxu0 %v5232
        %5319 = vmatprep.subr.mxu0 0.0
        %5320 = vmatpush1.msra.mxu0 %v5233
        %5321 = vmatprep.subr.mxu0 0.0
        %5322 = vmatpush1.msra.mxu0 %v5234
        %5323 = vmatprep.subr.mxu0 0.0
        %5324 = vmatpush1.msra.mxu0 %v5235
        %5325 = vmatprep.subr.mxu0 0.0
        %5326 = vmatpush1.msra.mxu0 %v5236
        %5327 = vmatprep.subr.mxu0 0.0
        %5328 = vmatpush1.msra.mxu0 %v5237
        %5329 = vmatprep.subr.mxu0 0.0
        %5330 = vmatpush1.msra.mxu0 %v5238
        %5331 = vmatprep.subr.mxu0 0.0
        %5332 = vmatpush1.msra.mxu0 %v5239
        %5333 = vmatprep.subr.mxu0 0.0
        %5334 = vmatpush1.msra.mxu0 %v5240
        %5335 = vmatprep.subr.mxu0 0.0
        %5336 = vmatpush1.msra.mxu0 %v5241
        %5337 = vmatprep.subr.mxu0 0.0
        %5338 = vmatpush1.msra.mxu0 %v5242
        %5339 = vmatprep.subr.mxu0 0.0
        %5340 = vmatpush1.msra.mxu0 %v5243
        %5341 = vmatprep.mubr.f32.mxu0 %v5269
        %5342 = vmatmul.mubr.f32.gmra.mrb[0].mxu0 %v5265
        %v5343 = vpop.f32.mrb[0].mxu0
        %v5344 = vadd.f32 %v5260, %v5343
        %v5345 = vpop.f32.mrb[0].mxu0
        %5346 = vdwg.mxu0
        %5347 = vmatprep.subr.mxu0 0.0
        %5348 = vmatpush1.msra.mxu0 %v5244
        %5349 = vmatprep.subr.mxu0 0.0
        %5350 = vmatpush1.msra.mxu0 %v5245
        %5351 = vmatprep.subr.mxu0 0.0
        %5352 = vmatpush1.msra.mxu0 %v5246
        %5353 = vmatprep.subr.mxu0 0.0
        %5354 = vmatpush1.msra.mxu0 %v5247
        %5355 = vmatprep.subr.mxu0 0.0
        %5356 = vmatpush1.msra.mxu0 %v5248
        %5357 = vmatprep.subr.mxu0 0.0
        %5358 = vmatpush1.msra.mxu0 %v5249
        %5359 = vmatprep.subr.mxu0 0.0
        %5360 = vmatpush1.msra.mxu0 %v5250
        %5361 = vmatprep.subr.mxu0 0.0
        %5362 = vmatpush1.msra.mxu0 %v5251
        %5363 = vmatprep.subr.mxu0 0.0
        %5364 = vmatpush1.msra.mxu0 %v5252
        %5365 = vmatprep.subr.mxu0 0.0
        %5366 = vmatpush1.msra.mxu0 %v5253
        %5367 = vmatprep.subr.mxu0 0.0
        %5368 = vmatpush1.msra.mxu0 %v5254
        %5369 = vmatprep.subr.mxu0 0.0
        %5370 = vmatpush1.msra.mxu0 %v5255
        %5371 = vmatprep.subr.mxu0 0.0
        %5372 = vmatpush1.msra.mxu0 %v5256
        %5373 = vmatprep.subr.mxu0 0.0
        %5374 = vmatpush1.msra.mxu0 %v5257
        %5375 = vmatprep.subr.mxu0 0.0
        %5376 = vmatpush1.msra.mxu0 %v5258
        %5377 = vmatprep.subr.mxu0 0.0
        %5378 = vmatpush1.msra.mxu0 %v5259
        %5379 = vmatprep.subr.mxu0 0.0
        %5380 = vmatpush1.msra.mxu0 0.0
        %5381 = vmatprep.subr.mxu0 0.0
        %5382 = vmatpush1.msra.mxu0 0.0
        %5383 = vmatprep.subr.mxu0 0.0
        %5384 = vmatpush1.msra.mxu0 0.0
        %5385 = vmatprep.subr.mxu0 0.0
        %5386 = vmatpush1.msra.mxu0 0.0
        %5387 = vmatprep.subr.mxu0 0.0
        %5388 = vmatpush1.msra.mxu0 0.0
        %5389 = vmatprep.subr.mxu0 0.0
        %5390 = vmatpush1.msra.mxu0 0.0
        %5391 = vmatprep.subr.mxu0 0.0
        %5392 = vmatpush1.msra.mxu0 0.0
        %5393 = vmatprep.subr.mxu0 0.0
        %5394 = vmatpush1.msra.mxu0 0.0
        %5395 = vmatprep.subr.mxu0 0.0
        %5396 = vmatpush1.msra.mxu0 0.0
        %5397 = vmatprep.subr.mxu0 0.0
        %5398 = vmatpush1.msra.mxu0 0.0
        %5399 = vmatprep.subr.mxu0 0.0
        %5400 = vmatpush1.msra.mxu0 0.0
        %5401 = vmatprep.subr.mxu0 0.0
        %5402 = vmatpush1.msra.mxu0 0.0
        %5403 = vmatprep.subr.mxu0 0.0
        %5404 = vmatpush1.msra.mxu0 0.0
        %5405 = vmatprep.subr.mxu0 0.0
        %5406 = vmatpush1.msra.mxu0 0.0
        %5407 = vmatprep.subr.mxu0 0.0
        %5408 = vmatpush1.msra.mxu0 0.0
        %5409 = vmatprep.subr.mxu0 0.0
        %5410 = vmatpush1.msra.mxu0 0.0
        %5411 = vmatprep.mubr.f32.mxu0 0.0
        %5412 = vmatmul.mubr.f32.gmra.mrb[0].mxu0 %v5273
        %v5413 = vpop.f32.mrb[0].mxu0
        %v5414 = vadd.f32 %v5344, %v5413
        %v5415 = vpop.f32.mrb[0].mxu0
        %5416 = vdwg.mxu0
        %vm5417 = vcmask 16384
        %v5418 = vsel %vm5417, %v5414, -inf
        %5419 = vmax.xlane.f32.xlu0 %v5418
        %v5420 = vpop.xlane.xlu0 %5419
        %v5421 = vsub.f32 %v5414, %v5420
        %v5422 = vmul.f32 %v5421, 1.442695
        %v5423 = vpow.pop %v5422
        %v5424 = vsel %vm5417, %v5423, 0.0
        %5425 = vadd.xlane.f32.xlu0 %v5424
        %v5426 = vpop.xlane.xlu0 %5425
        %v5427 = vlog2.pop %v5426
        %v5428 = vmul.f32 %v5427, 0.6931472
        %v5429 = vsub.f32 %v5421, %v5428
        %5430 = vst.msk [vmem:[%s250] sm:$0x1] %vm5417, %v5429
        %p5431 = scmp.lt.s32.totalorder %s21, 1
        %s5432 = scalar_select %p5431, %s21, 1
        %s5433 = smul.addr %s5432, 4
        %s5434 = scalar_lea.vmem %s5, %s5433
        %s5435 = sand.u32 %s165, 1
        %s5436 = scalar_lea.sflag [#allocation3], %s5435
        %s5437 = sand.u32 %s165, 1
        %s5438 = scalar_lea.vmem [#allocation2], %s5437
        // Predicated region
        $region41: #{shallow_fbcsp_forward.1} parent=39 // pred_check
          %p5439 = pneg %p149
        $region42: #{shallow_fbcsp_forward.1} parent=39 // pred_check_branch
          %5441 = sbr.rel (%p5439) target = $region44
        $region43: #{shallow_fbcsp_forward.1} parent=39 // pred_region
          _
        $region44: #{shallow_fbcsp_forward.1} parent=39 // pred_fallthru
          _
        // Predicated region
        $region45: #{shallow_fbcsp_forward.1} parent=39 // pred_check
          %p5442 = pneg %p175
        $region46: #{shallow_fbcsp_forward.1} parent=39 // pred_check_branch
          %5444 = sbr.rel (%p5442) target = $region48
        $region47: #{shallow_fbcsp_forward.1} parent=39 // pred_region
          %s5446 = ssub.s32 16, 16
          %5447 = vsyncadd %s5436, %s5446
          %s5448 = smul.addr %s21, 16
          %s5449 = scalar_lea.hbm %s6, %s5448
          %s5451 = sshll.u32 %s5438, 4
          %s5452 = int_to_ptr.vmem [resolvable:$true] %s5451
          %5454 = dma.vmem_to_hbm [thread:$0]  %s5452, 16, %s5449, %s5436
        $region48: #{shallow_fbcsp_forward.1} parent=39 // pred_fallthru
          _
      $region40: #{shallow_fbcsp_forward.1} parent=5 // pred_fallthru
        _
      %p5455 = scmp.le.s32.totalorder 2, %s16
      // Predicated region
      $region49: #{shallow_fbcsp_forward.1} parent=5 // pred_check
        %p5456 = pneg %p5455
      $region50: #{shallow_fbcsp_forward.1} parent=5 // pred_check_branch
        %5458 = sbr.rel (%p5456) target = $region52
      $region51: #{shallow_fbcsp_forward.1} parent=5 // pred_region
        %s5459 = ssub.s32 %s16, 2
        // Predicated region
        $region53: #{shallow_fbcsp_forward.1} parent=51 // pred_check
          %p5460 = pneg %p155
        $region54: #{shallow_fbcsp_forward.1} parent=51 // pred_check_branch
          %5462 = sbr.rel (%p5460) target = $region56
        $region55: #{shallow_fbcsp_forward.1} parent=51 // pred_region
          %p5463 = scmp.lt.s32.totalorder %s22, 1
          %s5464 = scalar_select %p5463, %s22, 1
          %s5465 = smul.addr %s5464, 4
          %s5466 = scalar_lea.vmem %s5, %s5465
        $region56: #{shallow_fbcsp_forward.1} parent=51 // pred_fallthru
          _
        // Predicated region
        $region57: #{shallow_fbcsp_forward.1} parent=51 // pred_check
          %p5467 = pneg %p181
        $region58: #{shallow_fbcsp_forward.1} parent=51 // pred_check_branch
          %5469 = sbr.rel (%p5467) target = $region60
        $region59: #{shallow_fbcsp_forward.1} parent=51 // pred_region
          %s5470 = sand.u32 %s166, 1
          %s5471 = scalar_lea.sflag [#allocation3], %s5470
          %s5472 = sand.u32 %s166, 1
          %s5473 = scalar_lea.vmem [#allocation2], %s5472
          %5474 = dma.done %s5471, 16
        $region60: #{shallow_fbcsp_forward.1} parent=51 // pred_fallthru
          _
      $region52: #{shallow_fbcsp_forward.1} parent=5 // pred_fallthru
        _
    $region6: #{shallow_fbcsp_forward.1} parent=1 // loop_footer
      %s20 = sadd.s32 1, %s16
    $region7: #{shallow_fbcsp_forward.1} parent=1 // loop_footer_branch
      %15 = sbr.rel target = $region3
    $region8: #{shallow_fbcsp_forward.1} parent=1 // loop_exit
      _
    %5475 = vsyncpa [#allocation3], 1
    %s5476 = scalar_lea.sflag [#allocation3], 1
    %5477 = vsyncpa %s5476, 1

</llo_original>
